<compile_context>
chip_gen: v7x
topology: tpu7x:2x2x1
jax: 0.10.0
libtpu: 0.0.40
codegen_flags: <defaults>
</compile_context>

<pallas_src>
import functools

import jax
import jax.numpy as jnp
from jax import lax
from jax.experimental import pallas as pl
from jax.experimental.pallas import tpu as pltpu
import numpy as np


# ----------------------------- Pallas kernel ------------------------------- #

def _make_bottleneck_kernel(D, H, W):
    M = D * H * W

    def kernel(x_ref, w1_ref, w2_ref, w3_ref, b1_ref, b2_ref, b3_ref,
               mask_ref, o_ref):
        # x block: (1, Cin, M) bf16 -> (Cin, M)
        x_bf = x_ref[0]
        x_f32 = x_bf.astype(jnp.float32)          # residual path (f32 epilogue)

        # ---- conv1 (1x1x1) + bn1 + relu ----  (BN scale folded into w1)
        h1 = jnp.dot(w1_ref[...], x_bf,
                     preferred_element_type=jnp.float32)        # (P, M)
        h1 = jnp.maximum(h1 + b1_ref[...], 0.0)                  # f32

        # ---- conv2 (3x3x3, stride 1, pad 1) + bn2 + relu ----
        # 27 shifted + masked matmul taps accumulated in f32; no im2col in HBM.
        planes = h1.shape[0]
        acc = jnp.zeros((planes, M), jnp.float32)
        t = 0
        for kd in range(3):
            for kh in range(3):
                for kw in range(3):
                    s = (kd - 1) * H * W + (kh - 1) * W + (kw - 1)
                    sh = (-s) % M                      # out[m] <- h1[(m+s) % M]
                    shifted = h1 if sh == 0 else pltpu.roll(h1, sh, 1)
                    tap = (shifted * mask_ref[t]).astype(jnp.bfloat16)
                    acc = acc + jnp.dot(w2_ref[t], tap,
                                        preferred_element_type=jnp.float32)
                    t += 1
        h2 = jnp.maximum(acc + b2_ref[...], 0.0).astype(jnp.bfloat16)

        # ---- conv3 (1x1x1) + bn3 + residual add + relu ----
        h3 = jnp.dot(w3_ref[...], h2,
                     preferred_element_type=jnp.float32)        # (4P, M)
        h3 = h3 + b3_ref[...] + x_f32
        o_ref[0] = jnp.maximum(h3, 0.0)

    return kernel


# ------------------------------ JAX glue ----------------------------------- #

def fold_bn(gamma, beta, mean, var, eps=1e-5):
    scale = gamma / jnp.sqrt(var + eps)
    bias = beta - mean * scale
    return scale, bias


def _conv2_tap_masks(D, H, W):
    """(27, 1, D*H*W) float32 validity masks for the 3x3x3 taps (pad=1)."""
    M = D * H * W
    d = np.arange(D)[:, None, None]
    h = np.arange(H)[None, :, None]
    w = np.arange(W)[None, None, :]
    masks = []
    for kd in range(3):
        for kh in range(3):
            for kw in range(3):
                dd, dh, dw = kd - 1, kh - 1, kw - 1
                ok = ((d + dd >= 0) & (d + dd < D) &
                      (h + dh >= 0) & (h + dh < H) &
                      (w + dw >= 0) & (w + dw < W))
                masks.append(ok.reshape(1, M))
    return np.stack(masks).astype(np.float32)


def bottleneck_forward_pallas(x_ncdhw, params, eps=1e-5):
    """ResNetBottleneck forward (stride=1, downsample=None) as one fused kernel."""
    N, Cin, D, H, W = x_ncdhw.shape
    M = D * H * W
    planes = params["w1"].shape[0]
    cout = params["w3"].shape[0]
    assert cout == Cin, "identity residual requires in_planes == planes*expansion"

    s1, b1 = fold_bn(*params["bn1"], eps=eps)
    s2, b2 = fold_bn(*params["bn2"], eps=eps)
    s3, b3 = fold_bn(*params["bn3"], eps=eps)

    # Fold BN scale into the conv weights (per output-channel rows); bf16 for MXU.
    w1f = (params["w1"].reshape(planes, Cin) * s1[:, None]).astype(jnp.bfloat16)
    w2f = params["w2"] * s2[:, None, None, None, None]               # (P,P,3,3,3)
    w2f = jnp.transpose(w2f, (2, 3, 4, 0, 1)).reshape(27, planes, planes)
    w2f = w2f.astype(jnp.bfloat16)                                   # tap-major
    w3f = (params["w3"].reshape(cout, planes) * s3[:, None]).astype(jnp.bfloat16)

    b1c = b1.reshape(planes, 1).astype(jnp.float32)
    b2c = b2.reshape(planes, 1).astype(jnp.float32)
    b3c = b3.reshape(cout, 1).astype(jnp.float32)

    masks = jnp.asarray(_conv2_tap_masks(D, H, W))                   # (27,1,M)

    # Channels-first is already the matmul-friendly layout here: pure reshape,
    # no transpose of the activation tensor.
    x2d = x_ncdhw.reshape(N, Cin, M).astype(jnp.bfloat16)

    kernel = _make_bottleneck_kernel(D, H, W)

    out = pl.pallas_call(
        kernel,
        out_shape=jax.ShapeDtypeStruct((N, cout, M), jnp.float32),
        grid=(N,),
        in_specs=[
            pl.BlockSpec((1, Cin, M), lambda n: (n, 0, 0)),          # x / residual
            pl.BlockSpec((planes, Cin), lambda n: (0, 0)),           # w1 (folded)
            pl.BlockSpec((27, planes, planes), lambda n: (0, 0, 0)), # w2 (folded)
            pl.BlockSpec((cout, planes), lambda n: (0, 0)),          # w3 (folded)
            pl.BlockSpec((planes, 1), lambda n: (0, 0)),             # bn1 bias
            pl.BlockSpec((planes, 1), lambda n: (0, 0)),             # bn2 bias
            pl.BlockSpec((cout, 1), lambda n: (0, 0)),               # bn3 bias
            pl.BlockSpec((27, 1, M), lambda n: (0, 0, 0)),           # tap masks
        ],
        out_specs=pl.BlockSpec((1, cout, M), lambda n: (n, 0, 0)),
        compiler_params=pltpu.CompilerParams(
            dimension_semantics=("parallel",),
            vmem_limit_bytes=32 * 1024 * 1024),
    )(x2d, w1f, w2f, w3f, b1c, b2c, b3c, masks)

    return out.reshape(N, cout, D, H, W)


def bottleneck_forward_ref(x, params, eps=1e-5):
    """Pure-JAX f32 reference (lax.conv, NCDHW) for correctness checking."""
    conv = functools.partial(
        lax.conv_general_dilated, window_strides=(1, 1, 1),
        dimension_numbers=("NCDHW", "OIDHW", "NCDHW"))

    def bn(y, p):
        scale, bias = fold_bn(*p, eps=eps)
        return y * scale.reshape(1, -1, 1, 1, 1) + bias.reshape(1, -1, 1, 1, 1)

    h = jnp.maximum(bn(conv(x, params["w1"], padding="VALID"), params["bn1"]), 0.0)
    h = jnp.maximum(bn(conv(h, params["w2"], padding=[(1, 1)] * 3), params["bn2"]), 0.0)
    h = bn(conv(h, params["w3"], padding="VALID"), params["bn3"])
    return jnp.maximum(h + x, 0.0)


# ------------------------------ main --------------------------------------- #

if __name__ == "__main__":
    # ResNetBottleneck(in_planes=32, planes=8, spatial_dims=3, stride=1,
    # downsample=None): in_planes == planes*expansion so the identity residual
    # is valid.
    N, Cin, D, H, W = 2, 32, 8, 8, 8
    planes = 8
    expansion = 4

    key = jax.random.PRNGKey(0)
    ks = jax.random.split(key, 16)

    def bn_params(k, c):
        k1, k2, k3, k4 = jax.random.split(k, 4)
        gamma = jax.random.uniform(k1, (c,), jnp.float32, 0.5, 1.5)
        beta = 0.1 * jax.random.normal(k2, (c,), jnp.float32)
        mean = 0.1 * jax.random.normal(k3, (c,), jnp.float32)
        var = jax.random.uniform(k4, (c,), jnp.float32, 0.5, 1.5)
        return gamma, beta, mean, var

    params = {
        "w1": 0.1 * jax.random.normal(ks[0], (planes, Cin, 1, 1, 1), jnp.float32),
        "w2": 0.1 * jax.random.normal(ks[1], (planes, planes, 3, 3, 3), jnp.float32),
        "w3": 0.1 * jax.random.normal(ks[2], (planes * expansion, planes, 1, 1, 1),
                                      jnp.float32),
        "bn1": bn_params(ks[3], planes),
        "bn2": bn_params(ks[4], planes),
        "bn3": bn_params(ks[5], planes * expansion),
    }

    x = jax.random.normal(ks[6], (N, Cin, D, H, W), jnp.float32)

    out = jax.block_until_ready(bottleneck_forward_pallas(x, params))
    ref = jax.block_until_ready(bottleneck_forward_ref(x, params))

    assert out.shape == (N, planes * expansion, D, H, W)
    # bf16 matmul inputs + f32 accumulation: well within this tolerance.
    np.testing.assert_allclose(np.asarray(out), np.asarray(ref),
                               atol=5e-2, rtol=5e-2)

    print("KERNEL_OK")
</pallas_src>

<mosaic_0001>
module attributes {stable_mosaic.version = 11 : i64} {
  func.func @kernel(%arg0: i32, %arg1: memref<1x32x512xbf16, #tpu.memory_space<vmem>>, %arg2: memref<8x32xbf16, #tpu.memory_space<vmem>>, %arg3: memref<27x8x8xbf16, #tpu.memory_space<vmem>>, %arg4: memref<32x8xbf16, #tpu.memory_space<vmem>>, %arg5: memref<8x1xf32, #tpu.memory_space<vmem>>, %arg6: memref<8x1xf32, #tpu.memory_space<vmem>>, %arg7: memref<32x1xf32, #tpu.memory_space<vmem>>, %arg8: memref<27x1x512xf32, #tpu.memory_space<vmem>>, %arg9: memref<1x32x512xf32, #tpu.memory_space<vmem>>) attributes {dimension_semantics = [#tpu.dimension_semantics<parallel>], iteration_bounds = array<i64: 2>, scalar_prefetch = 0 : i64, scratch_operands = 0 : i64, tpu.core_type = #tpu.core_type<tc>, window_params = [{transform_indices = @transform_0, window_bounds = array<i64: 1, 32, 512>}, {pipeline_mode = #tpu.pipeline_mode<synchronous>, transform_indices = @transform_1, window_bounds = array<i64: 8, 32>}, {pipeline_mode = #tpu.pipeline_mode<synchronous>, transform_indices = @transform_2, window_bounds = array<i64: 27, 8, 8>}, {pipeline_mode = #tpu.pipeline_mode<synchronous>, transform_indices = @transform_3, window_bounds = array<i64: 32, 8>}, {pipeline_mode = #tpu.pipeline_mode<synchronous>, transform_indices = @transform_4, window_bounds = array<i64: 8, 1>}, {pipeline_mode = #tpu.pipeline_mode<synchronous>, transform_indices = @transform_5, window_bounds = array<i64: 8, 1>}, {pipeline_mode = #tpu.pipeline_mode<synchronous>, transform_indices = @transform_6, window_bounds = array<i64: 32, 1>}, {pipeline_mode = #tpu.pipeline_mode<synchronous>, transform_indices = @transform_7, window_bounds = array<i64: 27, 1, 512>}, {transform_indices = @transform_8, window_bounds = array<i64: 1, 32, 512>}]} {
    %c0 = arith.constant 0 : index
    %c0_0 = arith.constant 0 : index
    %c0_1 = arith.constant 0 : index
    %0 = vector.load %arg1[%c0, %c0_0, %c0_1] : memref<1x32x512xbf16, #tpu.memory_space<vmem>>, vector<1x32x512xbf16>
    %1 = vector.shape_cast %0 : vector<1x32x512xbf16> to vector<32x512xbf16>
    %2 = arith.extf %1 : vector<32x512xbf16> to vector<32x512xf32>
    %c0_2 = arith.constant 0 : index
    %c0_3 = arith.constant 0 : index
    %3 = vector.load %arg2[%c0_2, %c0_3] : memref<8x32xbf16, #tpu.memory_space<vmem>>, vector<8x32xbf16>
    %cst = arith.constant dense<0.000000e+00> : vector<8x512xf32>
    %4 = tpu.matmul %3, %1, %cst {dimension_numbers = #tpu.dot_dimension_numbers<[1], [0], [0], [1], [0, 0, 1, 1], [], []>} : vector<8x32xbf16>, vector<32x512xbf16>, vector<8x512xf32> -> vector<8x512xf32>
    %c0_4 = arith.constant 0 : index
    %c0_5 = arith.constant 0 : index
    %5 = vector.load %arg5[%c0_4, %c0_5] : memref<8x1xf32, #tpu.memory_space<vmem>>, vector<8x1xf32>
    %6 = vector.broadcast %5 : vector<8x1xf32> to vector<8x512xf32>
    %7 = arith.addf %4, %6 : vector<8x512xf32>
    %cst_6 = arith.constant 0.000000e+00 : f32
    %8 = vector.broadcast %cst_6 : f32 to vector<8x512xf32>
    %9 = arith.maximumf %7, %8 : vector<8x512xf32>
    %cst_7 = arith.constant 0.000000e+00 : f32
    %10 = vector.broadcast %cst_7 : f32 to vector<8x512xf32>
    %c73_i32 = arith.constant 73 : i32
    %11 = tpu.dynamic_rotate %9 by %c73_i32 dim 1 : vector<8x512xf32>, i32 -> vector<8x512xf32>
    %c0_8 = arith.constant 0 : index
    %c0_9 = arith.constant 0 : index
    %c0_10 = arith.constant 0 : index
    %12 = vector.load %arg8[%c0_8, %c0_9, %c0_10] : memref<27x1x512xf32, #tpu.memory_space<vmem>>, vector<1x1x512xf32>
    %13 = vector.shape_cast %12 : vector<1x1x512xf32> to vector<1x512xf32>
    %14 = vector.broadcast %13 : vector<1x512xf32> to vector<8x512xf32>
    %15 = arith.mulf %11, %14 : vector<8x512xf32>
    %16 = arith.truncf %15 : vector<8x512xf32> to vector<8x512xbf16>
    %c0_11 = arith.constant 0 : index
    %c0_12 = arith.constant 0 : index
    %c0_13 = arith.constant 0 : index
    %17 = vector.load %arg3[%c0_11, %c0_12, %c0_13] : memref<27x8x8xbf16, #tpu.memory_space<vmem>>, vector<1x8x8xbf16>
    %18 = vector.shape_cast %17 : vector<1x8x8xbf16> to vector<8x8xbf16>
    %cst_14 = arith.constant dense<0.000000e+00> : vector<8x512xf32>
    %19 = tpu.matmul %18, %16, %cst_14 {dimension_numbers = #tpu.dot_dimension_numbers<[1], [0], [0], [1], [0, 0, 1, 1], [], []>} : vector<8x8xbf16>, vector<8x512xbf16>, vector<8x512xf32> -> vector<8x512xf32>
    %20 = arith.addf %10, %19 : vector<8x512xf32>
    %c72_i32 = arith.constant 72 : i32
    %21 = tpu.dynamic_rotate %9 by %c72_i32 dim 1 : vector<8x512xf32>, i32 -> vector<8x512xf32>
    %c1 = arith.constant 1 : index
    %c0_15 = arith.constant 0 : index
    %c0_16 = arith.constant 0 : index
    %22 = vector.load %arg8[%c1, %c0_15, %c0_16] : memref<27x1x512xf32, #tpu.memory_space<vmem>>, vector<1x1x512xf32>
    %23 = vector.shape_cast %22 : vector<1x1x512xf32> to vector<1x512xf32>
    %24 = vector.broadcast %23 : vector<1x512xf32> to vector<8x512xf32>
    %25 = arith.mulf %21, %24 : vector<8x512xf32>
    %26 = arith.truncf %25 : vector<8x512xf32> to vector<8x512xbf16>
    %c1_17 = arith.constant 1 : index
    %c0_18 = arith.constant 0 : index
    %c0_19 = arith.constant 0 : index
    %27 = vector.load %arg3[%c1_17, %c0_18, %c0_19] : memref<27x8x8xbf16, #tpu.memory_space<vmem>>, vector<1x8x8xbf16>
    %28 = vector.shape_cast %27 : vector<1x8x8xbf16> to vector<8x8xbf16>
    %cst_20 = arith.constant dense<0.000000e+00> : vector<8x512xf32>
    %29 = tpu.matmul %28, %26, %cst_20 {dimension_numbers = #tpu.dot_dimension_numbers<[1], [0], [0], [1], [0, 0, 1, 1], [], []>} : vector<8x8xbf16>, vector<8x512xbf16>, vector<8x512xf32> -> vector<8x512xf32>
    %30 = arith.addf %20, %29 : vector<8x512xf32>
    %c71_i32 = arith.constant 71 : i32
    %31 = tpu.dynamic_rotate %9 by %c71_i32 dim 1 : vector<8x512xf32>, i32 -> vector<8x512xf32>
    %c2 = arith.constant 2 : index
    %c0_21 = arith.constant 0 : index
    %c0_22 = arith.constant 0 : index
    %32 = vector.load %arg8[%c2, %c0_21, %c0_22] : memref<27x1x512xf32, #tpu.memory_space<vmem>>, vector<1x1x512xf32>
    %33 = vector.shape_cast %32 : vector<1x1x512xf32> to vector<1x512xf32>
    %34 = vector.broadcast %33 : vector<1x512xf32> to vector<8x512xf32>
    %35 = arith.mulf %31, %34 : vector<8x512xf32>
    %36 = arith.truncf %35 : vector<8x512xf32> to vector<8x512xbf16>
    %c2_23 = arith.constant 2 : index
    %c0_24 = arith.constant 0 : index
    %c0_25 = arith.constant 0 : index
    %37 = vector.load %arg3[%c2_23, %c0_24, %c0_25] : memref<27x8x8xbf16, #tpu.memory_space<vmem>>, vector<1x8x8xbf16>
    %38 = vector.shape_cast %37 : vector<1x8x8xbf16> to vector<8x8xbf16>
    %cst_26 = arith.constant dense<0.000000e+00> : vector<8x512xf32>
    %39 = tpu.matmul %38, %36, %cst_26 {dimension_numbers = #tpu.dot_dimension_numbers<[1], [0], [0], [1], [0, 0, 1, 1], [], []>} : vector<8x8xbf16>, vector<8x512xbf16>, vector<8x512xf32> -> vector<8x512xf32>
    %40 = arith.addf %30, %39 : vector<8x512xf32>
    %c65_i32 = arith.constant 65 : i32
    %41 = tpu.dynamic_rotate %9 by %c65_i32 dim 1 : vector<8x512xf32>, i32 -> vector<8x512xf32>
    %c3 = arith.constant 3 : index
    %c0_27 = arith.constant 0 : index
    %c0_28 = arith.constant 0 : index
    %42 = vector.load %arg8[%c3, %c0_27, %c0_28] : memref<27x1x512xf32, #tpu.memory_space<vmem>>, vector<1x1x512xf32>
    %43 = vector.shape_cast %42 : vector<1x1x512xf32> to vector<1x512xf32>
    %44 = vector.broadcast %43 : vector<1x512xf32> to vector<8x512xf32>
    %45 = arith.mulf %41, %44 : vector<8x512xf32>
    %46 = arith.truncf %45 : vector<8x512xf32> to vector<8x512xbf16>
    %c3_29 = arith.constant 3 : index
    %c0_30 = arith.constant 0 : index
    %c0_31 = arith.constant 0 : index
    %47 = vector.load %arg3[%c3_29, %c0_30, %c0_31] : memref<27x8x8xbf16, #tpu.memory_space<vmem>>, vector<1x8x8xbf16>
    %48 = vector.shape_cast %47 : vector<1x8x8xbf16> to vector<8x8xbf16>
    %cst_32 = arith.constant dense<0.000000e+00> : vector<8x512xf32>
    %49 = tpu.matmul %48, %46, %cst_32 {dimension_numbers = #tpu.dot_dimension_numbers<[1], [0], [0], [1], [0, 0, 1, 1], [], []>} : vector<8x8xbf16>, vector<8x512xbf16>, vector<8x512xf32> -> vector<8x512xf32>
    %50 = arith.addf %40, %49 : vector<8x512xf32>
    %c64_i32 = arith.constant 64 : i32
    %51 = tpu.dynamic_rotate %9 by %c64_i32 dim 1 : vector<8x512xf32>, i32 -> vector<8x512xf32>
    %c4 = arith.constant 4 : index
    %c0_33 = arith.constant 0 : index
    %c0_34 = arith.constant 0 : index
    %52 = vector.load %arg8[%c4, %c0_33, %c0_34] : memref<27x1x512xf32, #tpu.memory_space<vmem>>, vector<1x1x512xf32>
    %53 = vector.shape_cast %52 : vector<1x1x512xf32> to vector<1x512xf32>
    %54 = vector.broadcast %53 : vector<1x512xf32> to vector<8x512xf32>
    %55 = arith.mulf %51, %54 : vector<8x512xf32>
    %56 = arith.truncf %55 : vector<8x512xf32> to vector<8x512xbf16>
    %c4_35 = arith.constant 4 : index
    %c0_36 = arith.constant 0 : index
    %c0_37 = arith.constant 0 : index
    %57 = vector.load %arg3[%c4_35, %c0_36, %c0_37] : memref<27x8x8xbf16, #tpu.memory_space<vmem>>, vector<1x8x8xbf16>
    %58 = vector.shape_cast %57 : vector<1x8x8xbf16> to vector<8x8xbf16>
    %cst_38 = arith.constant dense<0.000000e+00> : vector<8x512xf32>
    %59 = tpu.matmul %58, %56, %cst_38 {dimension_numbers = #tpu.dot_dimension_numbers<[1], [0], [0], [1], [0, 0, 1, 1], [], []>} : vector<8x8xbf16>, vector<8x512xbf16>, vector<8x512xf32> -> vector<8x512xf32>
    %60 = arith.addf %50, %59 : vector<8x512xf32>
    %c63_i32 = arith.constant 63 : i32
    %61 = tpu.dynamic_rotate %9 by %c63_i32 dim 1 : vector<8x512xf32>, i32 -> vector<8x512xf32>
    %c5 = arith.constant 5 : index
    %c0_39 = arith.constant 0 : index
    %c0_40 = arith.constant 0 : index
    %62 = vector.load %arg8[%c5, %c0_39, %c0_40] : memref<27x1x512xf32, #tpu.memory_space<vmem>>, vector<1x1x512xf32>
    %63 = vector.shape_cast %62 : vector<1x1x512xf32> to vector<1x512xf32>
    %64 = vector.broadcast %63 : vector<1x512xf32> to vector<8x512xf32>
    %65 = arith.mulf %61, %64 : vector<8x512xf32>
    %66 = arith.truncf %65 : vector<8x512xf32> to vector<8x512xbf16>
    %c5_41 = arith.constant 5 : index
    %c0_42 = arith.constant 0 : index
    %c0_43 = arith.constant 0 : index
    %67 = vector.load %arg3[%c5_41, %c0_42, %c0_43] : memref<27x8x8xbf16, #tpu.memory_space<vmem>>, vector<1x8x8xbf16>
    %68 = vector.shape_cast %67 : vector<1x8x8xbf16> to vector<8x8xbf16>
    %cst_44 = arith.constant dense<0.000000e+00> : vector<8x512xf32>
    %69 = tpu.matmul %68, %66, %cst_44 {dimension_numbers = #tpu.dot_dimension_numbers<[1], [0], [0], [1], [0, 0, 1, 1], [], []>} : vector<8x8xbf16>, vector<8x512xbf16>, vector<8x512xf32> -> vector<8x512xf32>
    %70 = arith.addf %60, %69 : vector<8x512xf32>
    %c57_i32 = arith.constant 57 : i32
    %71 = tpu.dynamic_rotate %9 by %c57_i32 dim 1 : vector<8x512xf32>, i32 -> vector<8x512xf32>
    %c6 = arith.constant 6 : index
    %c0_45 = arith.constant 0 : index
    %c0_46 = arith.constant 0 : index
    %72 = vector.load %arg8[%c6, %c0_45, %c0_46] : memref<27x1x512xf32, #tpu.memory_space<vmem>>, vector<1x1x512xf32>
    %73 = vector.shape_cast %72 : vector<1x1x512xf32> to vector<1x512xf32>
    %74 = vector.broadcast %73 : vector<1x512xf32> to vector<8x512xf32>
    %75 = arith.mulf %71, %74 : vector<8x512xf32>
    %76 = arith.truncf %75 : vector<8x512xf32> to vector<8x512xbf16>
    %c6_47 = arith.constant 6 : index
    %c0_48 = arith.constant 0 : index
    %c0_49 = arith.constant 0 : index
    %77 = vector.load %arg3[%c6_47, %c0_48, %c0_49] : memref<27x8x8xbf16, #tpu.memory_space<vmem>>, vector<1x8x8xbf16>
    %78 = vector.shape_cast %77 : vector<1x8x8xbf16> to vector<8x8xbf16>
    %cst_50 = arith.constant dense<0.000000e+00> : vector<8x512xf32>
    %79 = tpu.matmul %78, %76, %cst_50 {dimension_numbers = #tpu.dot_dimension_numbers<[1], [0], [0], [1], [0, 0, 1, 1], [], []>} : vector<8x8xbf16>, vector<8x512xbf16>, vector<8x512xf32> -> vector<8x512xf32>
    %80 = arith.addf %70, %79 : vector<8x512xf32>
    %c56_i32 = arith.constant 56 : i32
    %81 = tpu.dynamic_rotate %9 by %c56_i32 dim 1 : vector<8x512xf32>, i32 -> vector<8x512xf32>
    %c7 = arith.constant 7 : index
    %c0_51 = arith.constant 0 : index
    %c0_52 = arith.constant 0 : index
    %82 = vector.load %arg8[%c7, %c0_51, %c0_52] : memref<27x1x512xf32, #tpu.memory_space<vmem>>, vector<1x1x512xf32>
    %83 = vector.shape_cast %82 : vector<1x1x512xf32> to vector<1x512xf32>
    %84 = vector.broadcast %83 : vector<1x512xf32> to vector<8x512xf32>
    %85 = arith.mulf %81, %84 : vector<8x512xf32>
    %86 = arith.truncf %85 : vector<8x512xf32> to vector<8x512xbf16>
    %c7_53 = arith.constant 7 : index
    %c0_54 = arith.constant 0 : index
    %c0_55 = arith.constant 0 : index
    %87 = vector.load %arg3[%c7_53, %c0_54, %c0_55] : memref<27x8x8xbf16, #tpu.memory_space<vmem>>, vector<1x8x8xbf16>
    %88 = vector.shape_cast %87 : vector<1x8x8xbf16> to vector<8x8xbf16>
    %cst_56 = arith.constant dense<0.000000e+00> : vector<8x512xf32>
    %89 = tpu.matmul %88, %86, %cst_56 {dimension_numbers = #tpu.dot_dimension_numbers<[1], [0], [0], [1], [0, 0, 1, 1], [], []>} : vector<8x8xbf16>, vector<8x512xbf16>, vector<8x512xf32> -> vector<8x512xf32>
    %90 = arith.addf %80, %89 : vector<8x512xf32>
    %c55_i32 = arith.constant 55 : i32
    %91 = tpu.dynamic_rotate %9 by %c55_i32 dim 1 : vector<8x512xf32>, i32 -> vector<8x512xf32>
    %c8 = arith.constant 8 : index
    %c0_57 = arith.constant 0 : index
    %c0_58 = arith.constant 0 : index
    %92 = vector.load %arg8[%c8, %c0_57, %c0_58] : memref<27x1x512xf32, #tpu.memory_space<vmem>>, vector<1x1x512xf32>
    %93 = vector.shape_cast %92 : vector<1x1x512xf32> to vector<1x512xf32>
    %94 = vector.broadcast %93 : vector<1x512xf32> to vector<8x512xf32>
    %95 = arith.mulf %91, %94 : vector<8x512xf32>
    %96 = arith.truncf %95 : vector<8x512xf32> to vector<8x512xbf16>
    %c8_59 = arith.constant 8 : index
    %c0_60 = arith.constant 0 : index
    %c0_61 = arith.constant 0 : index
    %97 = vector.load %arg3[%c8_59, %c0_60, %c0_61] : memref<27x8x8xbf16, #tpu.memory_space<vmem>>, vector<1x8x8xbf16>
    %98 = vector.shape_cast %97 : vector<1x8x8xbf16> to vector<8x8xbf16>
    %cst_62 = arith.constant dense<0.000000e+00> : vector<8x512xf32>
    %99 = tpu.matmul %98, %96, %cst_62 {dimension_numbers = #tpu.dot_dimension_numbers<[1], [0], [0], [1], [0, 0, 1, 1], [], []>} : vector<8x8xbf16>, vector<8x512xbf16>, vector<8x512xf32> -> vector<8x512xf32>
    %100 = arith.addf %90, %99 : vector<8x512xf32>
    %c9_i32 = arith.constant 9 : i32
    %101 = tpu.dynamic_rotate %9 by %c9_i32 dim 1 : vector<8x512xf32>, i32 -> vector<8x512xf32>
    %c9 = arith.constant 9 : index
    %c0_63 = arith.constant 0 : index
    %c0_64 = arith.constant 0 : index
    %102 = vector.load %arg8[%c9, %c0_63, %c0_64] : memref<27x1x512xf32, #tpu.memory_space<vmem>>, vector<1x1x512xf32>
    %103 = vector.shape_cast %102 : vector<1x1x512xf32> to vector<1x512xf32>
    %104 = vector.broadcast %103 : vector<1x512xf32> to vector<8x512xf32>
    %105 = arith.mulf %101, %104 : vector<8x512xf32>
    %106 = arith.truncf %105 : vector<8x512xf32> to vector<8x512xbf16>
    %c9_65 = arith.constant 9 : index
    %c0_66 = arith.constant 0 : index
    %c0_67 = arith.constant 0 : index
    %107 = vector.load %arg3[%c9_65, %c0_66, %c0_67] : memref<27x8x8xbf16, #tpu.memory_space<vmem>>, vector<1x8x8xbf16>
    %108 = vector.shape_cast %107 : vector<1x8x8xbf16> to vector<8x8xbf16>
    %cst_68 = arith.constant dense<0.000000e+00> : vector<8x512xf32>
    %109 = tpu.matmul %108, %106, %cst_68 {dimension_numbers = #tpu.dot_dimension_numbers<[1], [0], [0], [1], [0, 0, 1, 1], [], []>} : vector<8x8xbf16>, vector<8x512xbf16>, vector<8x512xf32> -> vector<8x512xf32>
    %110 = arith.addf %100, %109 : vector<8x512xf32>
    %c8_i32 = arith.constant 8 : i32
    %111 = tpu.dynamic_rotate %9 by %c8_i32 dim 1 : vector<8x512xf32>, i32 -> vector<8x512xf32>
    %c10 = arith.constant 10 : index
    %c0_69 = arith.constant 0 : index
    %c0_70 = arith.constant 0 : index
    %112 = vector.load %arg8[%c10, %c0_69, %c0_70] : memref<27x1x512xf32, #tpu.memory_space<vmem>>, vector<1x1x512xf32>
    %113 = vector.shape_cast %112 : vector<1x1x512xf32> to vector<1x512xf32>
    %114 = vector.broadcast %113 : vector<1x512xf32> to vector<8x512xf32>
    %115 = arith.mulf %111, %114 : vector<8x512xf32>
    %116 = arith.truncf %115 : vector<8x512xf32> to vector<8x512xbf16>
    %c10_71 = arith.constant 10 : index
    %c0_72 = arith.constant 0 : index
    %c0_73 = arith.constant 0 : index
    %117 = vector.load %arg3[%c10_71, %c0_72, %c0_73] : memref<27x8x8xbf16, #tpu.memory_space<vmem>>, vector<1x8x8xbf16>
    %118 = vector.shape_cast %117 : vector<1x8x8xbf16> to vector<8x8xbf16>
    %cst_74 = arith.constant dense<0.000000e+00> : vector<8x512xf32>
    %119 = tpu.matmul %118, %116, %cst_74 {dimension_numbers = #tpu.dot_dimension_numbers<[1], [0], [0], [1], [0, 0, 1, 1], [], []>} : vector<8x8xbf16>, vector<8x512xbf16>, vector<8x512xf32> -> vector<8x512xf32>
    %120 = arith.addf %110, %119 : vector<8x512xf32>
    %c7_i32 = arith.constant 7 : i32
    %121 = tpu.dynamic_rotate %9 by %c7_i32 dim 1 : vector<8x512xf32>, i32 -> vector<8x512xf32>
    %c11 = arith.constant 11 : index
    %c0_75 = arith.constant 0 : index
    %c0_76 = arith.constant 0 : index
    %122 = vector.load %arg8[%c11, %c0_75, %c0_76] : memref<27x1x512xf32, #tpu.memory_space<vmem>>, vector<1x1x512xf32>
    %123 = vector.shape_cast %122 : vector<1x1x512xf32> to vector<1x512xf32>
    %124 = vector.broadcast %123 : vector<1x512xf32> to vector<8x512xf32>
    %125 = arith.mulf %121, %124 : vector<8x512xf32>
    %126 = arith.truncf %125 : vector<8x512xf32> to vector<8x512xbf16>
    %c11_77 = arith.constant 11 : index
    %c0_78 = arith.constant 0 : index
    %c0_79 = arith.constant 0 : index
    %127 = vector.load %arg3[%c11_77, %c0_78, %c0_79] : memref<27x8x8xbf16, #tpu.memory_space<vmem>>, vector<1x8x8xbf16>
    %128 = vector.shape_cast %127 : vector<1x8x8xbf16> to vector<8x8xbf16>
    %cst_80 = arith.constant dense<0.000000e+00> : vector<8x512xf32>
    %129 = tpu.matmul %128, %126, %cst_80 {dimension_numbers = #tpu.dot_dimension_numbers<[1], [0], [0], [1], [0, 0, 1, 1], [], []>} : vector<8x8xbf16>, vector<8x512xbf16>, vector<8x512xf32> -> vector<8x512xf32>
    %130 = arith.addf %120, %129 : vector<8x512xf32>
    %c1_i32 = arith.constant 1 : i32
    %131 = tpu.dynamic_rotate %9 by %c1_i32 dim 1 : vector<8x512xf32>, i32 -> vector<8x512xf32>
    %c12 = arith.constant 12 : index
    %c0_81 = arith.constant 0 : index
    %c0_82 = arith.constant 0 : index
    %132 = vector.load %arg8[%c12, %c0_81, %c0_82] : memref<27x1x512xf32, #tpu.memory_space<vmem>>, vector<1x1x512xf32>
    %133 = vector.shape_cast %132 : vector<1x1x512xf32> to vector<1x512xf32>
    %134 = vector.broadcast %133 : vector<1x512xf32> to vector<8x512xf32>
    %135 = arith.mulf %131, %134 : vector<8x512xf32>
    %136 = arith.truncf %135 : vector<8x512xf32> to vector<8x512xbf16>
    %c12_83 = arith.constant 12 : index
    %c0_84 = arith.constant 0 : index
    %c0_85 = arith.constant 0 : index
    %137 = vector.load %arg3[%c12_83, %c0_84, %c0_85] : memref<27x8x8xbf16, #tpu.memory_space<vmem>>, vector<1x8x8xbf16>
    %138 = vector.shape_cast %137 : vector<1x8x8xbf16> to vector<8x8xbf16>
    %cst_86 = arith.constant dense<0.000000e+00> : vector<8x512xf32>
    %139 = tpu.matmul %138, %136, %cst_86 {dimension_numbers = #tpu.dot_dimension_numbers<[1], [0], [0], [1], [0, 0, 1, 1], [], []>} : vector<8x8xbf16>, vector<8x512xbf16>, vector<8x512xf32> -> vector<8x512xf32>
    %140 = arith.addf %130, %139 : vector<8x512xf32>
    %c13 = arith.constant 13 : index
    %c0_87 = arith.constant 0 : index
    %c0_88 = arith.constant 0 : index
    %141 = vector.load %arg8[%c13, %c0_87, %c0_88] : memref<27x1x512xf32, #tpu.memory_space<vmem>>, vector<1x1x512xf32>
    %142 = vector.shape_cast %141 : vector<1x1x512xf32> to vector<1x512xf32>
    %143 = vector.broadcast %142 : vector<1x512xf32> to vector<8x512xf32>
    %144 = arith.mulf %9, %143 : vector<8x512xf32>
    %145 = arith.truncf %144 : vector<8x512xf32> to vector<8x512xbf16>
    %c13_89 = arith.constant 13 : index
    %c0_90 = arith.constant 0 : index
    %c0_91 = arith.constant 0 : index
    %146 = vector.load %arg3[%c13_89, %c0_90, %c0_91] : memref<27x8x8xbf16, #tpu.memory_space<vmem>>, vector<1x8x8xbf16>
    %147 = vector.shape_cast %146 : vector<1x8x8xbf16> to vector<8x8xbf16>
    %cst_92 = arith.constant dense<0.000000e+00> : vector<8x512xf32>
    %148 = tpu.matmul %147, %145, %cst_92 {dimension_numbers = #tpu.dot_dimension_numbers<[1], [0], [0], [1], [0, 0, 1, 1], [], []>} : vector<8x8xbf16>, vector<8x512xbf16>, vector<8x512xf32> -> vector<8x512xf32>
    %149 = arith.addf %140, %148 : vector<8x512xf32>
    %c511_i32 = arith.constant 511 : i32
    %150 = tpu.dynamic_rotate %9 by %c511_i32 dim 1 : vector<8x512xf32>, i32 -> vector<8x512xf32>
    %c14 = arith.constant 14 : index
    %c0_93 = arith.constant 0 : index
    %c0_94 = arith.constant 0 : index
    %151 = vector.load %arg8[%c14, %c0_93, %c0_94] : memref<27x1x512xf32, #tpu.memory_space<vmem>>, vector<1x1x512xf32>
    %152 = vector.shape_cast %151 : vector<1x1x512xf32> to vector<1x512xf32>
    %153 = vector.broadcast %152 : vector<1x512xf32> to vector<8x512xf32>
    %154 = arith.mulf %150, %153 : vector<8x512xf32>
    %155 = arith.truncf %154 : vector<8x512xf32> to vector<8x512xbf16>
    %c14_95 = arith.constant 14 : index
    %c0_96 = arith.constant 0 : index
    %c0_97 = arith.constant 0 : index
    %156 = vector.load %arg3[%c14_95, %c0_96, %c0_97] : memref<27x8x8xbf16, #tpu.memory_space<vmem>>, vector<1x8x8xbf16>
    %157 = vector.shape_cast %156 : vector<1x8x8xbf16> to vector<8x8xbf16>
    %cst_98 = arith.constant dense<0.000000e+00> : vector<8x512xf32>
    %158 = tpu.matmul %157, %155, %cst_98 {dimension_numbers = #tpu.dot_dimension_numbers<[1], [0], [0], [1], [0, 0, 1, 1], [], []>} : vector<8x8xbf16>, vector<8x512xbf16>, vector<8x512xf32> -> vector<8x512xf32>
    %159 = arith.addf %149, %158 : vector<8x512xf32>
    %c505_i32 = arith.constant 505 : i32
    %160 = tpu.dynamic_rotate %9 by %c505_i32 dim 1 : vector<8x512xf32>, i32 -> vector<8x512xf32>
    %c15 = arith.constant 15 : index
    %c0_99 = arith.constant 0 : index
    %c0_100 = arith.constant 0 : index
    %161 = vector.load %arg8[%c15, %c0_99, %c0_100] : memref<27x1x512xf32, #tpu.memory_space<vmem>>, vector<1x1x512xf32>
    %162 = vector.shape_cast %161 : vector<1x1x512xf32> to vector<1x512xf32>
    %163 = vector.broadcast %162 : vector<1x512xf32> to vector<8x512xf32>
    %164 = arith.mulf %160, %163 : vector<8x512xf32>
    %165 = arith.truncf %164 : vector<8x512xf32> to vector<8x512xbf16>
    %c15_101 = arith.constant 15 : index
    %c0_102 = arith.constant 0 : index
    %c0_103 = arith.constant 0 : index
    %166 = vector.load %arg3[%c15_101, %c0_102, %c0_103] : memref<27x8x8xbf16, #tpu.memory_space<vmem>>, vector<1x8x8xbf16>
    %167 = vector.shape_cast %166 : vector<1x8x8xbf16> to vector<8x8xbf16>
    %cst_104 = arith.constant dense<0.000000e+00> : vector<8x512xf32>
    %168 = tpu.matmul %167, %165, %cst_104 {dimension_numbers = #tpu.dot_dimension_numbers<[1], [0], [0], [1], [0, 0, 1, 1], [], []>} : vector<8x8xbf16>, vector<8x512xbf16>, vector<8x512xf32> -> vector<8x512xf32>
    %169 = arith.addf %159, %168 : vector<8x512xf32>
    %c504_i32 = arith.constant 504 : i32
    %170 = tpu.dynamic_rotate %9 by %c504_i32 dim 1 : vector<8x512xf32>, i32 -> vector<8x512xf32>
    %c16 = arith.constant 16 : index
    %c0_105 = arith.constant 0 : index
    %c0_106 = arith.constant 0 : index
    %171 = vector.load %arg8[%c16, %c0_105, %c0_106] : memref<27x1x512xf32, #tpu.memory_space<vmem>>, vector<1x1x512xf32>
    %172 = vector.shape_cast %171 : vector<1x1x512xf32> to vector<1x512xf32>
    %173 = vector.broadcast %172 : vector<1x512xf32> to vector<8x512xf32>
    %174 = arith.mulf %170, %173 : vector<8x512xf32>
    %175 = arith.truncf %174 : vector<8x512xf32> to vector<8x512xbf16>
    %c16_107 = arith.constant 16 : index
    %c0_108 = arith.constant 0 : index
    %c0_109 = arith.constant 0 : index
    %176 = vector.load %arg3[%c16_107, %c0_108, %c0_109] : memref<27x8x8xbf16, #tpu.memory_space<vmem>>, vector<1x8x8xbf16>
    %177 = vector.shape_cast %176 : vector<1x8x8xbf16> to vector<8x8xbf16>
    %cst_110 = arith.constant dense<0.000000e+00> : vector<8x512xf32>
    %178 = tpu.matmul %177, %175, %cst_110 {dimension_numbers = #tpu.dot_dimension_numbers<[1], [0], [0], [1], [0, 0, 1, 1], [], []>} : vector<8x8xbf16>, vector<8x512xbf16>, vector<8x512xf32> -> vector<8x512xf32>
    %179 = arith.addf %169, %178 : vector<8x512xf32>
    %c503_i32 = arith.constant 503 : i32
    %180 = tpu.dynamic_rotate %9 by %c503_i32 dim 1 : vector<8x512xf32>, i32 -> vector<8x512xf32>
    %c17 = arith.constant 17 : index
    %c0_111 = arith.constant 0 : index
    %c0_112 = arith.constant 0 : index
    %181 = vector.load %arg8[%c17, %c0_111, %c0_112] : memref<27x1x512xf32, #tpu.memory_space<vmem>>, vector<1x1x512xf32>
    %182 = vector.shape_cast %181 : vector<1x1x512xf32> to vector<1x512xf32>
    %183 = vector.broadcast %182 : vector<1x512xf32> to vector<8x512xf32>
    %184 = arith.mulf %180, %183 : vector<8x512xf32>
    %185 = arith.truncf %184 : vector<8x512xf32> to vector<8x512xbf16>
    %c17_113 = arith.constant 17 : index
    %c0_114 = arith.constant 0 : index
    %c0_115 = arith.constant 0 : index
    %186 = vector.load %arg3[%c17_113, %c0_114, %c0_115] : memref<27x8x8xbf16, #tpu.memory_space<vmem>>, vector<1x8x8xbf16>
    %187 = vector.shape_cast %186 : vector<1x8x8xbf16> to vector<8x8xbf16>
    %cst_116 = arith.constant dense<0.000000e+00> : vector<8x512xf32>
    %188 = tpu.matmul %187, %185, %cst_116 {dimension_numbers = #tpu.dot_dimension_numbers<[1], [0], [0], [1], [0, 0, 1, 1], [], []>} : vector<8x8xbf16>, vector<8x512xbf16>, vector<8x512xf32> -> vector<8x512xf32>
    %189 = arith.addf %179, %188 : vector<8x512xf32>
    %c457_i32 = arith.constant 457 : i32
    %190 = tpu.dynamic_rotate %9 by %c457_i32 dim 1 : vector<8x512xf32>, i32 -> vector<8x512xf32>
    %c18 = arith.constant 18 : index
    %c0_117 = arith.constant 0 : index
    %c0_118 = arith.constant 0 : index
    %191 = vector.load %arg8[%c18, %c0_117, %c0_118] : memref<27x1x512xf32, #tpu.memory_space<vmem>>, vector<1x1x512xf32>
    %192 = vector.shape_cast %191 : vector<1x1x512xf32> to vector<1x512xf32>
    %193 = vector.broadcast %192 : vector<1x512xf32> to vector<8x512xf32>
    %194 = arith.mulf %190, %193 : vector<8x512xf32>
    %195 = arith.truncf %194 : vector<8x512xf32> to vector<8x512xbf16>
    %c18_119 = arith.constant 18 : index
    %c0_120 = arith.constant 0 : index
    %c0_121 = arith.constant 0 : index
    %196 = vector.load %arg3[%c18_119, %c0_120, %c0_121] : memref<27x8x8xbf16, #tpu.memory_space<vmem>>, vector<1x8x8xbf16>
    %197 = vector.shape_cast %196 : vector<1x8x8xbf16> to vector<8x8xbf16>
    %cst_122 = arith.constant dense<0.000000e+00> : vector<8x512xf32>
    %198 = tpu.matmul %197, %195, %cst_122 {dimension_numbers = #tpu.dot_dimension_numbers<[1], [0], [0], [1], [0, 0, 1, 1], [], []>} : vector<8x8xbf16>, vector<8x512xbf16>, vector<8x512xf32> -> vector<8x512xf32>
    %199 = arith.addf %189, %198 : vector<8x512xf32>
    %c456_i32 = arith.constant 456 : i32
    %200 = tpu.dynamic_rotate %9 by %c456_i32 dim 1 : vector<8x512xf32>, i32 -> vector<8x512xf32>
    %c19 = arith.constant 19 : index
    %c0_123 = arith.constant 0 : index
    %c0_124 = arith.constant 0 : index
    %201 = vector.load %arg8[%c19, %c0_123, %c0_124] : memref<27x1x512xf32, #tpu.memory_space<vmem>>, vector<1x1x512xf32>
    %202 = vector.shape_cast %201 : vector<1x1x512xf32> to vector<1x512xf32>
    %203 = vector.broadcast %202 : vector<1x512xf32> to vector<8x512xf32>
    %204 = arith.mulf %200, %203 : vector<8x512xf32>
    %205 = arith.truncf %204 : vector<8x512xf32> to vector<8x512xbf16>
    %c19_125 = arith.constant 19 : index
    %c0_126 = arith.constant 0 : index
    %c0_127 = arith.constant 0 : index
    %206 = vector.load %arg3[%c19_125, %c0_126, %c0_127] : memref<27x8x8xbf16, #tpu.memory_space<vmem>>, vector<1x8x8xbf16>
    %207 = vector.shape_cast %206 : vector<1x8x8xbf16> to vector<8x8xbf16>
    %cst_128 = arith.constant dense<0.000000e+00> : vector<8x512xf32>
    %208 = tpu.matmul %207, %205, %cst_128 {dimension_numbers = #tpu.dot_dimension_numbers<[1], [0], [0], [1], [0, 0, 1, 1], [], []>} : vector<8x8xbf16>, vector<8x512xbf16>, vector<8x512xf32> -> vector<8x512xf32>
    %209 = arith.addf %199, %208 : vector<8x512xf32>
    %c455_i32 = arith.constant 455 : i32
    %210 = tpu.dynamic_rotate %9 by %c455_i32 dim 1 : vector<8x512xf32>, i32 -> vector<8x512xf32>
    %c20 = arith.constant 20 : index
    %c0_129 = arith.constant 0 : index
    %c0_130 = arith.constant 0 : index
    %211 = vector.load %arg8[%c20, %c0_129, %c0_130] : memref<27x1x512xf32, #tpu.memory_space<vmem>>, vector<1x1x512xf32>
    %212 = vector.shape_cast %211 : vector<1x1x512xf32> to vector<1x512xf32>
    %213 = vector.broadcast %212 : vector<1x512xf32> to vector<8x512xf32>
    %214 = arith.mulf %210, %213 : vector<8x512xf32>
    %215 = arith.truncf %214 : vector<8x512xf32> to vector<8x512xbf16>
    %c20_131 = arith.constant 20 : index
    %c0_132 = arith.constant 0 : index
    %c0_133 = arith.constant 0 : index
    %216 = vector.load %arg3[%c20_131, %c0_132, %c0_133] : memref<27x8x8xbf16, #tpu.memory_space<vmem>>, vector<1x8x8xbf16>
    %217 = vector.shape_cast %216 : vector<1x8x8xbf16> to vector<8x8xbf16>
    %cst_134 = arith.constant dense<0.000000e+00> : vector<8x512xf32>
    %218 = tpu.matmul %217, %215, %cst_134 {dimension_numbers = #tpu.dot_dimension_numbers<[1], [0], [0], [1], [0, 0, 1, 1], [], []>} : vector<8x8xbf16>, vector<8x512xbf16>, vector<8x512xf32> -> vector<8x512xf32>
    %219 = arith.addf %209, %218 : vector<8x512xf32>
    %c449_i32 = arith.constant 449 : i32
    %220 = tpu.dynamic_rotate %9 by %c449_i32 dim 1 : vector<8x512xf32>, i32 -> vector<8x512xf32>
    %c21 = arith.constant 21 : index
    %c0_135 = arith.constant 0 : index
    %c0_136 = arith.constant 0 : index
    %221 = vector.load %arg8[%c21, %c0_135, %c0_136] : memref<27x1x512xf32, #tpu.memory_space<vmem>>, vector<1x1x512xf32>
    %222 = vector.shape_cast %221 : vector<1x1x512xf32> to vector<1x512xf32>
    %223 = vector.broadcast %222 : vector<1x512xf32> to vector<8x512xf32>
    %224 = arith.mulf %220, %223 : vector<8x512xf32>
    %225 = arith.truncf %224 : vector<8x512xf32> to vector<8x512xbf16>
    %c21_137 = arith.constant 21 : index
    %c0_138 = arith.constant 0 : index
    %c0_139 = arith.constant 0 : index
    %226 = vector.load %arg3[%c21_137, %c0_138, %c0_139] : memref<27x8x8xbf16, #tpu.memory_space<vmem>>, vector<1x8x8xbf16>
    %227 = vector.shape_cast %226 : vector<1x8x8xbf16> to vector<8x8xbf16>
    %cst_140 = arith.constant dense<0.000000e+00> : vector<8x512xf32>
    %228 = tpu.matmul %227, %225, %cst_140 {dimension_numbers = #tpu.dot_dimension_numbers<[1], [0], [0], [1], [0, 0, 1, 1], [], []>} : vector<8x8xbf16>, vector<8x512xbf16>, vector<8x512xf32> -> vector<8x512xf32>
    %229 = arith.addf %219, %228 : vector<8x512xf32>
    %c448_i32 = arith.constant 448 : i32
    %230 = tpu.dynamic_rotate %9 by %c448_i32 dim 1 : vector<8x512xf32>, i32 -> vector<8x512xf32>
    %c22 = arith.constant 22 : index
    %c0_141 = arith.constant 0 : index
    %c0_142 = arith.constant 0 : index
    %231 = vector.load %arg8[%c22, %c0_141, %c0_142] : memref<27x1x512xf32, #tpu.memory_space<vmem>>, vector<1x1x512xf32>
    %232 = vector.shape_cast %231 : vector<1x1x512xf32> to vector<1x512xf32>
    %233 = vector.broadcast %232 : vector<1x512xf32> to vector<8x512xf32>
    %234 = arith.mulf %230, %233 : vector<8x512xf32>
    %235 = arith.truncf %234 : vector<8x512xf32> to vector<8x512xbf16>
    %c22_143 = arith.constant 22 : index
    %c0_144 = arith.constant 0 : index
    %c0_145 = arith.constant 0 : index
    %236 = vector.load %arg3[%c22_143, %c0_144, %c0_145] : memref<27x8x8xbf16, #tpu.memory_space<vmem>>, vector<1x8x8xbf16>
    %237 = vector.shape_cast %236 : vector<1x8x8xbf16> to vector<8x8xbf16>
    %cst_146 = arith.constant dense<0.000000e+00> : vector<8x512xf32>
    %238 = tpu.matmul %237, %235, %cst_146 {dimension_numbers = #tpu.dot_dimension_numbers<[1], [0], [0], [1], [0, 0, 1, 1], [], []>} : vector<8x8xbf16>, vector<8x512xbf16>, vector<8x512xf32> -> vector<8x512xf32>
    %239 = arith.addf %229, %238 : vector<8x512xf32>
    %c447_i32 = arith.constant 447 : i32
    %240 = tpu.dynamic_rotate %9 by %c447_i32 dim 1 : vector<8x512xf32>, i32 -> vector<8x512xf32>
    %c23 = arith.constant 23 : index
    %c0_147 = arith.constant 0 : index
    %c0_148 = arith.constant 0 : index
    %241 = vector.load %arg8[%c23, %c0_147, %c0_148] : memref<27x1x512xf32, #tpu.memory_space<vmem>>, vector<1x1x512xf32>
    %242 = vector.shape_cast %241 : vector<1x1x512xf32> to vector<1x512xf32>
    %243 = vector.broadcast %242 : vector<1x512xf32> to vector<8x512xf32>
    %244 = arith.mulf %240, %243 : vector<8x512xf32>
    %245 = arith.truncf %244 : vector<8x512xf32> to vector<8x512xbf16>
    %c23_149 = arith.constant 23 : index
    %c0_150 = arith.constant 0 : index
    %c0_151 = arith.constant 0 : index
    %246 = vector.load %arg3[%c23_149, %c0_150, %c0_151] : memref<27x8x8xbf16, #tpu.memory_space<vmem>>, vector<1x8x8xbf16>
    %247 = vector.shape_cast %246 : vector<1x8x8xbf16> to vector<8x8xbf16>
    %cst_152 = arith.constant dense<0.000000e+00> : vector<8x512xf32>
    %248 = tpu.matmul %247, %245, %cst_152 {dimension_numbers = #tpu.dot_dimension_numbers<[1], [0], [0], [1], [0, 0, 1, 1], [], []>} : vector<8x8xbf16>, vector<8x512xbf16>, vector<8x512xf32> -> vector<8x512xf32>
    %249 = arith.addf %239, %248 : vector<8x512xf32>
    %c441_i32 = arith.constant 441 : i32
    %250 = tpu.dynamic_rotate %9 by %c441_i32 dim 1 : vector<8x512xf32>, i32 -> vector<8x512xf32>
    %c24 = arith.constant 24 : index
    %c0_153 = arith.constant 0 : index
    %c0_154 = arith.constant 0 : index
    %251 = vector.load %arg8[%c24, %c0_153, %c0_154] : memref<27x1x512xf32, #tpu.memory_space<vmem>>, vector<1x1x512xf32>
    %252 = vector.shape_cast %251 : vector<1x1x512xf32> to vector<1x512xf32>
    %253 = vector.broadcast %252 : vector<1x512xf32> to vector<8x512xf32>
    %254 = arith.mulf %250, %253 : vector<8x512xf32>
    %255 = arith.truncf %254 : vector<8x512xf32> to vector<8x512xbf16>
    %c24_155 = arith.constant 24 : index
    %c0_156 = arith.constant 0 : index
    %c0_157 = arith.constant 0 : index
    %256 = vector.load %arg3[%c24_155, %c0_156, %c0_157] : memref<27x8x8xbf16, #tpu.memory_space<vmem>>, vector<1x8x8xbf16>
    %257 = vector.shape_cast %256 : vector<1x8x8xbf16> to vector<8x8xbf16>
    %cst_158 = arith.constant dense<0.000000e+00> : vector<8x512xf32>
    %258 = tpu.matmul %257, %255, %cst_158 {dimension_numbers = #tpu.dot_dimension_numbers<[1], [0], [0], [1], [0, 0, 1, 1], [], []>} : vector<8x8xbf16>, vector<8x512xbf16>, vector<8x512xf32> -> vector<8x512xf32>
    %259 = arith.addf %249, %258 : vector<8x512xf32>
    %c440_i32 = arith.constant 440 : i32
    %260 = tpu.dynamic_rotate %9 by %c440_i32 dim 1 : vector<8x512xf32>, i32 -> vector<8x512xf32>
    %c25 = arith.constant 25 : index
    %c0_159 = arith.constant 0 : index
    %c0_160 = arith.constant 0 : index
    %261 = vector.load %arg8[%c25, %c0_159, %c0_160] : memref<27x1x512xf32, #tpu.memory_space<vmem>>, vector<1x1x512xf32>
    %262 = vector.shape_cast %261 : vector<1x1x512xf32> to vector<1x512xf32>
    %263 = vector.broadcast %262 : vector<1x512xf32> to vector<8x512xf32>
    %264 = arith.mulf %260, %263 : vector<8x512xf32>
    %265 = arith.truncf %264 : vector<8x512xf32> to vector<8x512xbf16>
    %c25_161 = arith.constant 25 : index
    %c0_162 = arith.constant 0 : index
    %c0_163 = arith.constant 0 : index
    %266 = vector.load %arg3[%c25_161, %c0_162, %c0_163] : memref<27x8x8xbf16, #tpu.memory_space<vmem>>, vector<1x8x8xbf16>
    %267 = vector.shape_cast %266 : vector<1x8x8xbf16> to vector<8x8xbf16>
    %cst_164 = arith.constant dense<0.000000e+00> : vector<8x512xf32>
    %268 = tpu.matmul %267, %265, %cst_164 {dimension_numbers = #tpu.dot_dimension_numbers<[1], [0], [0], [1], [0, 0, 1, 1], [], []>} : vector<8x8xbf16>, vector<8x512xbf16>, vector<8x512xf32> -> vector<8x512xf32>
    %269 = arith.addf %259, %268 : vector<8x512xf32>
    %c439_i32 = arith.constant 439 : i32
    %270 = tpu.dynamic_rotate %9 by %c439_i32 dim 1 : vector<8x512xf32>, i32 -> vector<8x512xf32>
    %c26 = arith.constant 26 : index
    %c0_165 = arith.constant 0 : index
    %c0_166 = arith.constant 0 : index
    %271 = vector.load %arg8[%c26, %c0_165, %c0_166] : memref<27x1x512xf32, #tpu.memory_space<vmem>>, vector<1x1x512xf32>
    %272 = vector.shape_cast %271 : vector<1x1x512xf32> to vector<1x512xf32>
    %273 = vector.broadcast %272 : vector<1x512xf32> to vector<8x512xf32>
    %274 = arith.mulf %270, %273 : vector<8x512xf32>
    %275 = arith.truncf %274 : vector<8x512xf32> to vector<8x512xbf16>
    %c26_167 = arith.constant 26 : index
    %c0_168 = arith.constant 0 : index
    %c0_169 = arith.constant 0 : index
    %276 = vector.load %arg3[%c26_167, %c0_168, %c0_169] : memref<27x8x8xbf16, #tpu.memory_space<vmem>>, vector<1x8x8xbf16>
    %277 = vector.shape_cast %276 : vector<1x8x8xbf16> to vector<8x8xbf16>
    %cst_170 = arith.constant dense<0.000000e+00> : vector<8x512xf32>
    %278 = tpu.matmul %277, %275, %cst_170 {dimension_numbers = #tpu.dot_dimension_numbers<[1], [0], [0], [1], [0, 0, 1, 1], [], []>} : vector<8x8xbf16>, vector<8x512xbf16>, vector<8x512xf32> -> vector<8x512xf32>
    %279 = arith.addf %269, %278 : vector<8x512xf32>
    %c0_171 = arith.constant 0 : index
    %c0_172 = arith.constant 0 : index
    %280 = vector.load %arg6[%c0_171, %c0_172] : memref<8x1xf32, #tpu.memory_space<vmem>>, vector<8x1xf32>
    %281 = vector.broadcast %280 : vector<8x1xf32> to vector<8x512xf32>
    %282 = arith.addf %279, %281 : vector<8x512xf32>
    %cst_173 = arith.constant 0.000000e+00 : f32
    %283 = vector.broadcast %cst_173 : f32 to vector<8x512xf32>
    %284 = arith.maximumf %282, %283 : vector<8x512xf32>
    %285 = arith.truncf %284 : vector<8x512xf32> to vector<8x512xbf16>
    %c0_174 = arith.constant 0 : index
    %c0_175 = arith.constant 0 : index
    %286 = vector.load %arg4[%c0_174, %c0_175] : memref<32x8xbf16, #tpu.memory_space<vmem>>, vector<32x8xbf16>
    %cst_176 = arith.constant dense<0.000000e+00> : vector<32x512xf32>
    %287 = tpu.matmul %286, %285, %cst_176 {dimension_numbers = #tpu.dot_dimension_numbers<[1], [0], [0], [1], [0, 0, 1, 1], [], []>} : vector<32x8xbf16>, vector<8x512xbf16>, vector<32x512xf32> -> vector<32x512xf32>
    %c0_177 = arith.constant 0 : index
    %c0_178 = arith.constant 0 : index
    %288 = vector.load %arg7[%c0_177, %c0_178] : memref<32x1xf32, #tpu.memory_space<vmem>>, vector<32x1xf32>
    %289 = vector.broadcast %288 : vector<32x1xf32> to vector<32x512xf32>
    %290 = arith.addf %287, %289 : vector<32x512xf32>
    %291 = arith.addf %290, %2 : vector<32x512xf32>
    %cst_179 = arith.constant 0.000000e+00 : f32
    %292 = vector.broadcast %cst_179 : f32 to vector<32x512xf32>
    %293 = arith.maximumf %291, %292 : vector<32x512xf32>
    %c0_180 = arith.constant 0 : index
    %c0_181 = arith.constant 0 : index
    %c0_182 = arith.constant 0 : index
    %294 = vector.load %arg9[%c0_180, %c0_181, %c0_182] : memref<1x32x512xf32, #tpu.memory_space<vmem>>, vector<1x32x512xf32>
    %295 = vector.shape_cast %294 : vector<1x32x512xf32> to vector<32x512xf32>
    %296 = vector.shape_cast %293 : vector<32x512xf32> to vector<1x32x512xf32>
    tpu.vector_store %arg9[%c0_180, %c0_181, %c0_182], %296 {strides = array<i32>} : memref<1x32x512xf32, #tpu.memory_space<vmem>>, vector<1x32x512xf32>,
    return
  }
  func.func @transform_0(%arg0: i32) -> (i32, i32, i32) {
    %c0_i32 = arith.constant 0 : i32
    %c0_i32_0 = arith.constant 0 : i32
    %c0_i32_1 = arith.constant 0 : i32
    return %arg0, %c0_i32, %c0_i32_0 : i32, i32, i32
  }
  func.func @transform_1(%arg0: i32) -> (i32, i32) {
    %c0_i32 = arith.constant 0 : i32
    %c0_i32_0 = arith.constant 0 : i32
    %c0_i32_1 = arith.constant 0 : i32
    return %c0_i32, %c0_i32_0 : i32, i32
  }
  func.func @transform_2(%arg0: i32) -> (i32, i32, i32) {
    %c0_i32 = arith.constant 0 : i32
    %c0_i32_0 = arith.constant 0 : i32
    %c0_i32_1 = arith.constant 0 : i32
    %c0_i32_2 = arith.constant 0 : i32
    return %c0_i32, %c0_i32_0, %c0_i32_1 : i32, i32, i32
  }
  func.func @transform_3(%arg0: i32) -> (i32, i32) {
    %c0_i32 = arith.constant 0 : i32
    %c0_i32_0 = arith.constant 0 : i32
    %c0_i32_1 = arith.constant 0 : i32
    return %c0_i32, %c0_i32_0 : i32, i32
  }
  func.func @transform_4(%arg0: i32) -> (i32, i32) {
    %c0_i32 = arith.constant 0 : i32
    %c0_i32_0 = arith.constant 0 : i32
    %c0_i32_1 = arith.constant 0 : i32
    return %c0_i32, %c0_i32_0 : i32, i32
  }
  func.func @transform_5(%arg0: i32) -> (i32, i32) {
    %c0_i32 = arith.constant 0 : i32
    %c0_i32_0 = arith.constant 0 : i32
    %c0_i32_1 = arith.constant 0 : i32
    return %c0_i32, %c0_i32_0 : i32, i32
  }
  func.func @transform_6(%arg0: i32) -> (i32, i32) {
    %c0_i32 = arith.constant 0 : i32
    %c0_i32_0 = arith.constant 0 : i32
    %c0_i32_1 = arith.constant 0 : i32
    return %c0_i32, %c0_i32_0 : i32, i32
  }
  func.func @transform_7(%arg0: i32) -> (i32, i32, i32) {
    %c0_i32 = arith.constant 0 : i32
    %c0_i32_0 = arith.constant 0 : i32
    %c0_i32_1 = arith.constant 0 : i32
    %c0_i32_2 = arith.constant 0 : i32
    return %c0_i32, %c0_i32_0, %c0_i32_1 : i32, i32, i32
  }
  func.func @transform_8(%arg0: i32) -> (i32, i32, i32) {
    %c0_i32 = arith.constant 0 : i32
    %c0_i32_0 = arith.constant 0 : i32
    %c0_i32_1 = arith.constant 0 : i32
    return %arg0, %c0_i32, %c0_i32_0 : i32, i32, i32
  }
}

</mosaic_0001>

<llo_original>
// kernel: tpu_custom_call.1
$region0: #{tpu_custom_call.1}
  #allocation0 [shape = 'u32[]', space=smem, size = 0x4, offset = 0x4, fixed_abs, tag = 'smem constant byte address 0x4 - core index']
  #allocation1 [shape = 'u32[144,128]{1,0:T(1,128)}', space=vmem, size = 0x12000, scoped, tag = 'internal scratch']
  %s0 = inlined_call_operand.vmem [shape: bf16[2,32,512], index: 0, kind: input, shape index: {}]
  %s1 = inlined_call_operand.hbm [shape: bf16[8,32], index: 1, kind: input, shape index: {}]
  %s2 = inlined_call_operand.vmem [shape: bf16[27,8,8], index: 2, kind: input, shape index: {}]
  %s3 = inlined_call_operand.vmem [shape: bf16[32,8], index: 3, kind: input, shape index: {}]
  %s4 = inlined_call_operand.vmem [shape: f32[8,1], index: 4, kind: input, shape index: {}]
  %s5 = inlined_call_operand.vmem [shape: f32[8,1], index: 5, kind: input, shape index: {}]
  %s6 = inlined_call_operand.vmem [shape: f32[32,1], index: 6, kind: input, shape index: {}]
  %s7 = inlined_call_operand.vmem [shape: f32[27,1,512], index: 7, kind: input, shape index: {}]
  %s8 = inlined_call_operand.hbm [shape: f32[2,32,512], index: 8, kind: output, shape index: {}]
  %s9 = sld [smem:[#allocation0]]
  $region69: #{tpu_custom_call.1} parent=0
    _
  %s11 = ssub.s32 1, %s9
  %s12 = scalar_select 0, %s11, %s9
  $region1: #{tpu_custom_call.1} parent=0
    #allocation2 [shape = 'u8[2048]{0}', space=vmem, size = 0x800, scoped, tag = 'input window, operand 1, single buffered']
    #allocation3 [shape = 's32[2]{0}', space=sflag, size = 0x8, scoped, tag = 'scoped memory for tpu_custom_call.1']
    #allocation4 [shape = 's32[2]{0}', space=sflag, size = 0x8, scoped, tag = 'scoped memory for tpu_custom_call.1']
    #allocation5 [shape = 'u8[131072]{0}', space=vmem, size = 0x20000, scoped, tag = 'output window, operand 0']
    %13 = vsyncpa [#allocation3], 0
    %14 = vsyncpa [#allocation4], 0
    %s15 = scalar_lea.sflag [#allocation4], 1
    %16 = vsyncpa %s15, 0
    loop: start=0, step=1, limit=4
    $region2: #{tpu_custom_call.1} parent=1 // loop_pre_header
      _
    $region3: #{tpu_custom_call.1} parent=1 // loop_header
      %s18 = sphi 0, %s22
      %p19 = scmp.ge.s32.totalorder %s18, 4
      %s28 = sphi 0, %s30
      %s31 = sphi 0, %s28
      %s32 = sphi 0, %s31
      %s48 = sphi 0, %s32
      %s52 = sphi 0, %s52
      %s54 = sphi 0, %s52
      %s55 = sphi 0, %s54
      %s69 = sphi 0, %s55
      %s73 = sphi 0, %s73
      %s75 = sphi 0, %s73
      %s76 = sphi 0, %s75
      %s90 = sphi 0, %s76
      %s94 = sphi 0, %s94
      %s96 = sphi 0, %s94
      %s97 = sphi 0, %s96
      %s111 = sphi 0, %s97
      %s115 = sphi 0, %s115
      %s117 = sphi 0, %s115
      %s118 = sphi 0, %s117
      %s132 = sphi 0, %s118
      %s136 = sphi 0, %s136
      %s138 = sphi 0, %s136
      %s139 = sphi 0, %s138
      %s153 = sphi 0, %s139
      %s157 = sphi 0, %s157
      %s159 = sphi 0, %s157
      %s160 = sphi 0, %s159
      %s174 = sphi 0, %s160
      %s178 = sphi 0, %s178
      %s180 = sphi 0, %s178
      %s181 = sphi 0, %s180
      %s195 = sphi 0, %s181
      %s201 = sphi 0, %s203
      %s204 = sphi 0, %s201
      %s205 = sphi 0, %s204
      %s221 = sphi 0, %s205
    $region4: #{tpu_custom_call.1} parent=1 // loop_header_branch
      %21 = sbr.rel (%p19) target = $region8
    $region5: #{tpu_custom_call.1} parent=1 // loop_body
      %s23 = ssub.s32 %s18, 1
      %s24 = ssub.s32 %s18, 2
      %s25 = sadd.s32 %s18, 1
      %s26 = ssub.s32 %s18, %s25
      %p27 = scmp.eq.s32.totalorder %s26, 0
      %s29 = sadd.s32 %s28, 1
      %s30 = scalar_select %p27, %s28, %s29
      %p33 = pneg %p27
      %p34 = scmp.eq.s32.totalorder %s18, 1
      %p35 = por %p33, %p34
      %p36 = scmp.ne.s32.totalorder %s28, %s31
      %p37 = scmp.eq.s32.totalorder %s18, 0
      %p38 = por %p36, %p37
      %p39 = scmp.ne.s32.totalorder %s28, %s31
      %p40 = scmp.eq.s32.totalorder %s23, 1
      %p41 = por %p39, %p40
      %p42 = scmp.ne.s32.totalorder %s31, %s32
      %p43 = scmp.eq.s32.totalorder %s23, 0
      %p44 = por %p42, %p43
      %p45 = scmp.ne.s32.totalorder %s31, %s32
      %p46 = scmp.eq.s32.totalorder %s24, 1
      %p47 = por %p45, %p46
      %p49 = scmp.ne.s32.totalorder %s32, %s48
      %p50 = scmp.eq.s32.totalorder %s24, 0
      %p51 = por %p49, %p50
      %s53 = sadd.s32 %s52, 1
      %p56 = scmp.eq.s32.totalorder %s18, 1
      %p57 = scmp.ne.s32.totalorder %s52, %s54
      %p58 = scmp.eq.s32.totalorder %s18, 0
      %p59 = por %p57, %p58
      %p60 = scmp.ne.s32.totalorder %s52, %s54
      %p61 = scmp.eq.s32.totalorder %s23, 1
      %p62 = por %p60, %p61
      %p63 = scmp.ne.s32.totalorder %s54, %s55
      %p64 = scmp.eq.s32.totalorder %s23, 0
      %p65 = por %p63, %p64
      %p66 = scmp.ne.s32.totalorder %s54, %s55
      %p67 = scmp.eq.s32.totalorder %s24, 1
      %p68 = por %p66, %p67
      %p70 = scmp.ne.s32.totalorder %s55, %s69
      %p71 = scmp.eq.s32.totalorder %s24, 0
      %p72 = por %p70, %p71
      %s74 = sadd.s32 %s73, 1
      %p77 = scmp.eq.s32.totalorder %s18, 1
      %p78 = scmp.ne.s32.totalorder %s73, %s75
      %p79 = scmp.eq.s32.totalorder %s18, 0
      %p80 = por %p78, %p79
      %p81 = scmp.ne.s32.totalorder %s73, %s75
      %p82 = scmp.eq.s32.totalorder %s23, 1
      %p83 = por %p81, %p82
      %p84 = scmp.ne.s32.totalorder %s75, %s76
      %p85 = scmp.eq.s32.totalorder %s23, 0
      %p86 = por %p84, %p85
      %p87 = scmp.ne.s32.totalorder %s75, %s76
      %p88 = scmp.eq.s32.totalorder %s24, 1
      %p89 = por %p87, %p88
      %p91 = scmp.ne.s32.totalorder %s76, %s90
      %p92 = scmp.eq.s32.totalorder %s24, 0
      %p93 = por %p91, %p92
      %s95 = sadd.s32 %s94, 1
      %p98 = scmp.eq.s32.totalorder %s18, 1
      %p99 = scmp.ne.s32.totalorder %s94, %s96
      %p100 = scmp.eq.s32.totalorder %s18, 0
      %p101 = por %p99, %p100
      %p102 = scmp.ne.s32.totalorder %s94, %s96
      %p103 = scmp.eq.s32.totalorder %s23, 1
      %p104 = por %p102, %p103
      %p105 = scmp.ne.s32.totalorder %s96, %s97
      %p106 = scmp.eq.s32.totalorder %s23, 0
      %p107 = por %p105, %p106
      %p108 = scmp.ne.s32.totalorder %s96, %s97
      %p109 = scmp.eq.s32.totalorder %s24, 1
      %p110 = por %p108, %p109
      %p112 = scmp.ne.s32.totalorder %s97, %s111
      %p113 = scmp.eq.s32.totalorder %s24, 0
      %p114 = por %p112, %p113
      %s116 = sadd.s32 %s115, 1
      %p119 = scmp.eq.s32.totalorder %s18, 1
      %p120 = scmp.ne.s32.totalorder %s115, %s117
      %p121 = scmp.eq.s32.totalorder %s18, 0
      %p122 = por %p120, %p121
      %p123 = scmp.ne.s32.totalorder %s115, %s117
      %p124 = scmp.eq.s32.totalorder %s23, 1
      %p125 = por %p123, %p124
      %p126 = scmp.ne.s32.totalorder %s117, %s118
      %p127 = scmp.eq.s32.totalorder %s23, 0
      %p128 = por %p126, %p127
      %p129 = scmp.ne.s32.totalorder %s117, %s118
      %p130 = scmp.eq.s32.totalorder %s24, 1
      %p131 = por %p129, %p130
      %p133 = scmp.ne.s32.totalorder %s118, %s132
      %p134 = scmp.eq.s32.totalorder %s24, 0
      %p135 = por %p133, %p134
      %s137 = sadd.s32 %s136, 1
      %p140 = scmp.eq.s32.totalorder %s18, 1
      %p141 = scmp.ne.s32.totalorder %s136, %s138
      %p142 = scmp.eq.s32.totalorder %s18, 0
      %p143 = por %p141, %p142
      %p144 = scmp.ne.s32.totalorder %s136, %s138
      %p145 = scmp.eq.s32.totalorder %s23, 1
      %p146 = por %p144, %p145
      %p147 = scmp.ne.s32.totalorder %s138, %s139
      %p148 = scmp.eq.s32.totalorder %s23, 0
      %p149 = por %p147, %p148
      %p150 = scmp.ne.s32.totalorder %s138, %s139
      %p151 = scmp.eq.s32.totalorder %s24, 1
      %p152 = por %p150, %p151
      %p154 = scmp.ne.s32.totalorder %s139, %s153
      %p155 = scmp.eq.s32.totalorder %s24, 0
      %p156 = por %p154, %p155
      %s158 = sadd.s32 %s157, 1
      %p161 = scmp.eq.s32.totalorder %s18, 1
      %p162 = scmp.ne.s32.totalorder %s157, %s159
      %p163 = scmp.eq.s32.totalorder %s18, 0
      %p164 = por %p162, %p163
      %p165 = scmp.ne.s32.totalorder %s157, %s159
      %p166 = scmp.eq.s32.totalorder %s23, 1
      %p167 = por %p165, %p166
      %p168 = scmp.ne.s32.totalorder %s159, %s160
      %p169 = scmp.eq.s32.totalorder %s23, 0
      %p170 = por %p168, %p169
      %p171 = scmp.ne.s32.totalorder %s159, %s160
      %p172 = scmp.eq.s32.totalorder %s24, 1
      %p173 = por %p171, %p172
      %p175 = scmp.ne.s32.totalorder %s160, %s174
      %p176 = scmp.eq.s32.totalorder %s24, 0
      %p177 = por %p175, %p176
      %s179 = sadd.s32 %s178, 1
      %p182 = scmp.eq.s32.totalorder %s18, 1
      %p183 = scmp.ne.s32.totalorder %s178, %s180
      %p184 = scmp.eq.s32.totalorder %s18, 0
      %p185 = por %p183, %p184
      %p186 = scmp.ne.s32.totalorder %s178, %s180
      %p187 = scmp.eq.s32.totalorder %s23, 1
      %p188 = por %p186, %p187
      %p189 = scmp.ne.s32.totalorder %s180, %s181
      %p190 = scmp.eq.s32.totalorder %s23, 0
      %p191 = por %p189, %p190
      %p192 = scmp.ne.s32.totalorder %s180, %s181
      %p193 = scmp.eq.s32.totalorder %s24, 1
      %p194 = por %p192, %p193
      %p196 = scmp.ne.s32.totalorder %s181, %s195
      %p197 = scmp.eq.s32.totalorder %s24, 0
      %p198 = por %p196, %p197
      %s199 = ssub.s32 %s18, %s25
      %p200 = scmp.eq.s32.totalorder %s199, 0
      %s202 = sadd.s32 %s201, 1
      %s203 = scalar_select %p200, %s201, %s202
      %p206 = pneg %p200
      %p207 = scmp.eq.s32.totalorder %s18, 1
      %p208 = por %p206, %p207
      %p209 = scmp.ne.s32.totalorder %s201, %s204
      %p210 = scmp.eq.s32.totalorder %s18, 0
      %p211 = por %p209, %p210
      %p212 = scmp.ne.s32.totalorder %s201, %s204
      %p213 = scmp.eq.s32.totalorder %s23, 1
      %p214 = por %p212, %p213
      %p215 = scmp.ne.s32.totalorder %s204, %s205
      %p216 = scmp.eq.s32.totalorder %s23, 0
      %p217 = por %p215, %p216
      %p218 = scmp.ne.s32.totalorder %s204, %s205
      %p219 = scmp.eq.s32.totalorder %s24, 1
      %p220 = por %p218, %p219
      %p222 = scmp.ne.s32.totalorder %s205, %s221
      %p223 = scmp.eq.s32.totalorder %s24, 0
      %p224 = por %p222, %p223
      %p225 = scmp.le.s32.totalorder 1, %s18
      %p226 = scmp.lt.s32.totalorder %s18, 3
      %p227 = pnand %p225, %p226
      %p228 = pneg %p227
      // Predicated region
      $region9: #{tpu_custom_call.1} parent=5 // pred_check
        _
      $region10: #{tpu_custom_call.1} parent=5 // pred_check_branch
        %230 = sbr.rel (%p227) target = $region12
      $region11: #{tpu_custom_call.1} parent=5 // pred_region
        %s231 = ssub.s32 %s18, 1
        // Predicated region
        $region13: #{tpu_custom_call.1} parent=11 // pred_check
          %p232 = pneg %p65
        $region14: #{tpu_custom_call.1} parent=11 // pred_check_branch
          %234 = sbr.rel (%p232) target = $region16
        $region15: #{tpu_custom_call.1} parent=11 // pred_region
          %s236 = ssub.s32 64, 64
          %237 = vsyncadd [#allocation3], %s236
          %s239 = sshll.u32 [#allocation2], 4
          %s240 = int_to_ptr.vmem [resolvable:$true] %s239
          %242 = dma.hbm_to_vmem [thread:$0]  %s1, 64, %s240, [#allocation3]
        $region16: #{tpu_custom_call.1} parent=11 // pred_fallthru
          _
        // Predicated region
        $region17: #{tpu_custom_call.1} parent=11 // pred_check
          %p243 = pneg %p86
        $region18: #{tpu_custom_call.1} parent=11 // pred_check_branch
          %245 = sbr.rel (%p243) target = $region20
        $region19: #{tpu_custom_call.1} parent=11 // pred_region
          _
        $region20: #{tpu_custom_call.1} parent=11 // pred_fallthru
          _
        // Predicated region
        $region21: #{tpu_custom_call.1} parent=11 // pred_check
          %p246 = pneg %p107
        $region22: #{tpu_custom_call.1} parent=11 // pred_check_branch
          %248 = sbr.rel (%p246) target = $region24
        $region23: #{tpu_custom_call.1} parent=11 // pred_region
          _
        $region24: #{tpu_custom_call.1} parent=11 // pred_fallthru
          _
        // Predicated region
        $region25: #{tpu_custom_call.1} parent=11 // pred_check
          %p249 = pneg %p128
        $region26: #{tpu_custom_call.1} parent=11 // pred_check_branch
          %251 = sbr.rel (%p249) target = $region28
        $region27: #{tpu_custom_call.1} parent=11 // pred_region
          _
        $region28: #{tpu_custom_call.1} parent=11 // pred_fallthru
          _
        // Predicated region
        $region29: #{tpu_custom_call.1} parent=11 // pred_check
          %p252 = pneg %p149
        $region30: #{tpu_custom_call.1} parent=11 // pred_check_branch
          %254 = sbr.rel (%p252) target = $region32
        $region31: #{tpu_custom_call.1} parent=11 // pred_region
          _
        $region32: #{tpu_custom_call.1} parent=11 // pred_fallthru
          _
        // Predicated region
        $region33: #{tpu_custom_call.1} parent=11 // pred_check
          %p255 = pneg %p170
        $region34: #{tpu_custom_call.1} parent=11 // pred_check_branch
          %257 = sbr.rel (%p255) target = $region36
        $region35: #{tpu_custom_call.1} parent=11 // pred_region
          _
        $region36: #{tpu_custom_call.1} parent=11 // pred_fallthru
          _
        // Predicated region
        $region37: #{tpu_custom_call.1} parent=11 // pred_check
          %p258 = pneg %p191
        $region38: #{tpu_custom_call.1} parent=11 // pred_check_branch
          %260 = sbr.rel (%p258) target = $region40
        $region39: #{tpu_custom_call.1} parent=11 // pred_region
          _
        $region40: #{tpu_custom_call.1} parent=11 // pred_fallthru
          _
      $region12: #{tpu_custom_call.1} parent=5 // pred_fallthru
        _
      %p261 = scmp.lt.s32.totalorder %s18, 2
      // Predicated region
      $region41: #{tpu_custom_call.1} parent=5 // pred_check
        %p262 = pneg %p261
      $region42: #{tpu_custom_call.1} parent=5 // pred_check_branch
        %264 = sbr.rel (%p262) target = $region44
      $region43: #{tpu_custom_call.1} parent=5 // pred_region
        // Predicated region
        $region45: #{tpu_custom_call.1} parent=43 // pred_check
          %p265 = pneg %p38
        $region46: #{tpu_custom_call.1} parent=43 // pred_check_branch
          %267 = sbr.rel (%p265) target = $region48
        $region47: #{tpu_custom_call.1} parent=43 // pred_region
          %p268 = scmp.lt.s32.totalorder %s18, 1
          %s269 = scalar_select %p268, %s18, 1
          %s270 = smul.addr %s269, 16
          %s271 = smul.addr %s270, 4
          %s272 = scalar_lea.vmem %s0, %s271
        $region48: #{tpu_custom_call.1} parent=43 // pred_fallthru
          _
      $region44: #{tpu_custom_call.1} parent=5 // pred_fallthru
        _
      %p273 = scmp.le.s32.totalorder 1, %s18
      %p274 = scmp.lt.s32.totalorder %s18, 3
      %p275 = pnand %p273, %p274
      %p276 = pneg %p275
      // Predicated region
      $region49: #{tpu_custom_call.1} parent=5 // pred_check
        _
      $region50: #{tpu_custom_call.1} parent=5 // pred_check_branch
        %278 = sbr.rel (%p275) target = $region52
      $region51: #{tpu_custom_call.1} parent=5 // pred_region
        %s279 = ssub.s32 %s18, 1
        // Predicated region
        $region53: #{tpu_custom_call.1} parent=51 // pred_check
          %p280 = pneg %p65
        $region54: #{tpu_custom_call.1} parent=51 // pred_check_branch
          %282 = sbr.rel (%p280) target = $region56
        $region55: #{tpu_custom_call.1} parent=51 // pred_region
          %283 = dma.done [#allocation3], 64
        $region56: #{tpu_custom_call.1} parent=51 // pred_fallthru
          _
        %p284 = scmp.lt.s32.totalorder %s23, 1
        %s285 = scalar_select %p284, %s23, 1
        %s286 = smul.addr %s285, 16
        %s287 = smul.addr %s286, 4
        %s288 = scalar_lea.vmem %s0, %s287
        %p289 = pneg %p44
        %p290 = pneg %p41
        %p291 = pneg %p65
        %p292 = pneg %p62
        %p293 = pneg %p86
        %p294 = pneg %p83
        %p295 = pneg %p107
        %p296 = pneg %p104
        %p297 = pneg %p128
        %p298 = pneg %p125
        %p299 = pneg %p149
        %p300 = pneg %p146
        %p301 = pneg %p170
        %p302 = pneg %p167
        %p303 = pneg %p191
        %p304 = pneg %p188
        %p305 = pneg %p217
        %p306 = pneg %p214
        %s307 = sand.u32 %s204, 1
        %s308 = scalar_lea.sflag [#allocation4], %s307
        %s309 = sand.u32 %s204, 1
        %s310 = smul.addr %s309, 128
        %s311 = scalar_lea.vmem [#allocation5], %s310
        %p312 = scmp.lt.s32.totalorder %s23, 1
        %s313 = scalar_select %p312, %s23, 1
        %s314 = smul.addr %s313, 16
        %s315 = smul.addr %s314, 4
        %s316 = scalar_lea.vmem %s0, %s315
        %v318 = vld [vmem:[%s316] sm:$0xff]
        %v319 = vld [vmem:[%s316 + $0x8] sm:$0xff]
        %v320 = vld [vmem:[%s316 + $0x10] sm:$0xff]
        %v321 = vld [vmem:[%s316 + $0x18] sm:$0xff]
        %v322 = vld [vmem:[%s316 + $0x20] sm:$0xff]
        %v323 = vld [vmem:[%s316 + $0x28] sm:$0xff]
        %v324 = vld [vmem:[%s316 + $0x30] sm:$0xff]
        %v325 = vld [vmem:[%s316 + $0x38] sm:$0xff]
        %v326 = vunpack.c.l.bf16 %v318
        %v327 = vunpack.c.h.bf16 %v318
        %v328 = vunpack.c.l.bf16 %v319
        %v329 = vunpack.c.h.bf16 %v319
        %v330 = vunpack.c.l.bf16 %v320
        %v331 = vunpack.c.h.bf16 %v320
        %v332 = vunpack.c.l.bf16 %v321
        %v333 = vunpack.c.h.bf16 %v321
        %v334 = vunpack.c.l.bf16 %v322
        %v335 = vunpack.c.h.bf16 %v322
        %v336 = vunpack.c.l.bf16 %v323
        %v337 = vunpack.c.h.bf16 %v323
        %v338 = vunpack.c.l.bf16 %v324
        %v339 = vunpack.c.h.bf16 %v324
        %v340 = vunpack.c.l.bf16 %v325
        %v341 = vunpack.c.h.bf16 %v325
        %v342 = vld [vmem:[#allocation2] sm:$0xf]
        %v343 = vld [vmem:[%s4] sm:$0xff]
        %345 = vset.pattern.permute.xlu0 0
        %346 = vperm.xlu0 %345, %v343
        %v347 = vpop.permute.xlu0 %346
        %v357 = vunpack.c.l.b16 %v318
        %v358 = vunpack.c.h.b16 %v318
        %v359 = vunpack.c.l.b16 %v319
        %v360 = vunpack.c.h.b16 %v319
        %v361 = vunpack.c.l.b16 %v320
        %v362 = vunpack.c.h.b16 %v320
        %v363 = vunpack.c.l.b16 %v321
        %v364 = vunpack.c.h.b16 %v321
        %v365 = vunpack.c.l.b16 %v322
        %v366 = vunpack.c.h.b16 %v322
        %v367 = vunpack.c.l.b16 %v323
        %v368 = vunpack.c.h.b16 %v323
        %v369 = vunpack.c.l.b16 %v324
        %v370 = vunpack.c.h.b16 %v324
        %v371 = vunpack.c.l.b16 %v325
        %v372 = vunpack.c.h.b16 %v325
        %v373 = vpack.c.b16 %v361, %v357
        %v374 = vpack.c.b16 %v362, %v358
        %v375 = vpack.c.b16 %v363, %v359
        %v376 = vpack.c.b16 %v364, %v360
        %v377 = vpack.c.b16 %v369, %v365
        %v378 = vpack.c.b16 %v370, %v366
        %v379 = vpack.c.b16 %v371, %v367
        %v380 = vpack.c.b16 %v372, %v368
        %vm389 = vcmask 261120
        %v391 = vsel %vm389, %v342, 0
        %393 = vmatprep.subr.bf16.mxu0 %v374
        %394 = vmatpush1.bf16.msra.mxu0 %v373
        %395 = vmatprep.subr.bf16.mxu0 %v378
        %396 = vmatpush1.bf16.msra.mxu0 %v377
        %397 = vmatprep.subr.bf16.mxu0 0
        %398 = vmatpush1.bf16.msra.mxu0 0
        %399 = vmatprep.subr.bf16.mxu0 0
        %400 = vmatpush1.bf16.msra.mxu0 0
        %401 = vmatprep.subr.bf16.mxu0 0
        %402 = vmatpush1.bf16.msra.mxu0 0
        %403 = vmatprep.subr.bf16.mxu0 0
        %404 = vmatpush1.bf16.msra.mxu0 0
        %405 = vmatprep.subr.bf16.mxu0 0
        %406 = vmatpush1.bf16.msra.mxu0 0
        %407 = vmatprep.subr.bf16.mxu0 0
        %408 = vmatpush1.bf16.msra.mxu0 0
        %409 = vmatprep.subr.bf16.mxu0 0
        %410 = vmatpush1.bf16.msra.mxu0 0
        %411 = vmatprep.subr.bf16.mxu0 0
        %412 = vmatpush1.bf16.msra.mxu0 0
        %413 = vmatprep.subr.bf16.mxu0 0
        %414 = vmatpush1.bf16.msra.mxu0 0
        %415 = vmatprep.subr.bf16.mxu0 0
        %416 = vmatpush1.bf16.msra.mxu0 0
        %417 = vmatprep.subr.bf16.mxu0 0
        %418 = vmatpush1.bf16.msra.mxu0 0
        %419 = vmatprep.subr.bf16.mxu0 0
        %420 = vmatpush1.bf16.msra.mxu0 0
        %421 = vmatprep.subr.bf16.mxu0 0
        %422 = vmatpush1.bf16.msra.mxu0 0
        %423 = vmatprep.subr.bf16.mxu0 0
        %424 = vmatpush1.bf16.msra.mxu0 0
        %425 = vmatprep.mubr.bf16.mxu0 0
        %426 = vmatmul.mubr.bf16.gmra.mrb[0].mxu0 %v391
        %v427 = vpop.f32.mrb[0].mxu0
        %v428 = vadd.f32 %v347, %v427
        %v429 = vpop.f32.mrb[0].mxu0
        %v430 = vadd.f32 %v347, %v429
        %v431 = vpop.f32.mrb[0].mxu0
        %v432 = vpop.f32.mrb[0].mxu0
        %433 = vdwg.mxu0
        %434 = vmatprep.subr.bf16.mxu0 %v376
        %435 = vmatpush1.bf16.msra.mxu0 %v375
        %436 = vmatprep.subr.bf16.mxu0 %v380
        %437 = vmatpush1.bf16.msra.mxu0 %v379
        %438 = vmatprep.subr.bf16.mxu0 0
        %439 = vmatpush1.bf16.msra.mxu0 0
        %440 = vmatprep.subr.bf16.mxu0 0
        %441 = vmatpush1.bf16.msra.mxu0 0
        %442 = vmatprep.subr.bf16.mxu0 0
        %443 = vmatpush1.bf16.msra.mxu0 0
        %444 = vmatprep.subr.bf16.mxu0 0
        %445 = vmatpush1.bf16.msra.mxu0 0
        %446 = vmatprep.subr.bf16.mxu0 0
        %447 = vmatpush1.bf16.msra.mxu0 0
        %448 = vmatprep.subr.bf16.mxu0 0
        %449 = vmatpush1.bf16.msra.mxu0 0
        %450 = vmatprep.subr.bf16.mxu0 0
        %451 = vmatpush1.bf16.msra.mxu0 0
        %452 = vmatprep.subr.bf16.mxu0 0
        %453 = vmatpush1.bf16.msra.mxu0 0
        %454 = vmatprep.subr.bf16.mxu0 0
        %455 = vmatpush1.bf16.msra.mxu0 0
        %456 = vmatprep.subr.bf16.mxu0 0
        %457 = vmatpush1.bf16.msra.mxu0 0
        %458 = vmatprep.subr.bf16.mxu0 0
        %459 = vmatpush1.bf16.msra.mxu0 0
        %460 = vmatprep.subr.bf16.mxu0 0
        %461 = vmatpush1.bf16.msra.mxu0 0
        %462 = vmatprep.subr.bf16.mxu0 0
        %463 = vmatpush1.bf16.msra.mxu0 0
        %464 = vmatprep.subr.bf16.mxu0 0
        %465 = vmatpush1.bf16.msra.mxu0 0
        %466 = vmatprep.mubr.bf16.mxu0 0
        %467 = vmatmul.mubr.bf16.gmra.mrb[0].mxu0 %v391
        %v468 = vpop.f32.mrb[0].mxu0
        %v469 = vadd.f32 %v347, %v468
        %v470 = vpop.f32.mrb[0].mxu0
        %v471 = vadd.f32 %v347, %v470
        %v472 = vpop.f32.mrb[0].mxu0
        %v473 = vpop.f32.mrb[0].mxu0
        %474 = vdwg.mxu0
        %v475 = vmax.f32 %v428, 0.0
        %v476 = vmax.f32 %v430, 0.0
        %v477 = vmax.f32 %v469, 0.0
        %v478 = vmax.f32 %v471, 0.0
        %479 = vrot.lane.b32.xlu0 %v475, 73
        %v480 = vpop.permute.xlu0 %479
        %481 = vrot.lane.b32.xlu0 %v476, 73
        %v482 = vpop.permute.xlu0 %481
        %483 = vrot.lane.b32.xlu0 %v477, 73
        %v484 = vpop.permute.xlu0 %483
        %485 = vrot.lane.b32.xlu0 %v478, 73
        %v486 = vpop.permute.xlu0 %485
        %v487 = vlaneseq
        %v488 = vand.u32 %v487, 127
        %vm489 = vcmp.lt.s32.totalorder %v488, 73
        %v490 = vsel %vm489, %v484, %v486
        %v491 = vsel %vm489, %v482, %v484
        %v492 = vsel %vm489, %v480, %v482
        %v493 = vsel %vm489, %v486, %v480
        %v494 = vld [vmem:[%s7] sm:$0xf]
        %v496 = vlaneseq
        %v497 = vshrl.u32 %v496, 7
        %v498 = vsub.s32 0, %v497
        %v499 = vrot.slane %v494, %v498
        %v500 = vlaneseq
        %v501 = vshrl.u32 %v500, 7
        %v502 = vsub.s32 1, %v501
        %v503 = vrot.slane %v494, %v502
        %v504 = vlaneseq
        %v505 = vshrl.u32 %v504, 7
        %v506 = vsub.s32 2, %v505
        %v507 = vrot.slane %v494, %v506
        %v508 = vlaneseq
        %v509 = vshrl.u32 %v508, 7
        %v510 = vsub.s32 3, %v509
        %v511 = vrot.slane %v494, %v510
        %v516 = vmul.f32 %v493, %v499
        %v517 = vmul.f32 %v492, %v503
        %v518 = vmul.f32 %v491, %v507
        %v519 = vmul.f32 %v490, %v511
        %v520 = vpack.c.bf16 %v516, %v516
        %v521 = vpack.c.bf16 %v517, %v517
        %v522 = vpack.c.bf16 %v518, %v518
        %v523 = vpack.c.bf16 %v519, %v519
        %v524 = vld [vmem:[%s2] sm:$0xf]
        %525 = vrot.lane.b32.xlu0 %v475, 72
        %v526 = vpop.permute.xlu0 %525
        %527 = vrot.lane.b32.xlu0 %v476, 72
        %v528 = vpop.permute.xlu0 %527
        %529 = vrot.lane.b32.xlu0 %v477, 72
        %v530 = vpop.permute.xlu0 %529
        %531 = vrot.lane.b32.xlu0 %v478, 72
        %v532 = vpop.permute.xlu0 %531
        %vm533 = vcmp.lt.s32.totalorder %v488, 72
        %v534 = vsel %vm533, %v530, %v532
        %v535 = vsel %vm533, %v528, %v530
        %v536 = vsel %vm533, %v526, %v528
        %v537 = vsel %vm533, %v532, %v526
        %s538 = scalar_lea.vmem %s7, 4
        %v539 = vld [vmem:[%s538] sm:$0xf]
        %v541 = vlaneseq
        %v542 = vshrl.u32 %v541, 7
        %v543 = vsub.s32 0, %v542
        %v544 = vrot.slane %v539, %v543
        %v545 = vlaneseq
        %v546 = vshrl.u32 %v545, 7
        %v547 = vsub.s32 1, %v546
        %v548 = vrot.slane %v539, %v547
        %v549 = vlaneseq
        %v550 = vshrl.u32 %v549, 7
        %v551 = vsub.s32 2, %v550
        %v552 = vrot.slane %v539, %v551
        %v553 = vlaneseq
        %v554 = vshrl.u32 %v553, 7
        %v555 = vsub.s32 3, %v554
        %v556 = vrot.slane %v539, %v555
        %v561 = vmul.f32 %v537, %v544
        %v562 = vmul.f32 %v536, %v548
        %v563 = vmul.f32 %v535, %v552
        %v564 = vmul.f32 %v534, %v556
        %v565 = vpack.c.bf16 %v561, %v561
        %v566 = vpack.c.bf16 %v562, %v562
        %v567 = vpack.c.bf16 %v563, %v563
        %v568 = vpack.c.bf16 %v564, %v564
        %s569 = scalar_lea.vmem %s2, 4
        %v570 = vld [vmem:[%s569] sm:$0xf]
        %vm571 = vcmask 64512
        %v573 = vsel %vm571, %v570, 0
        %vm575 = vcmask 1043456
        %v577 = vsel %vm575, %v565, 0
        %v580 = vsel %vm575, %v566, 0
        %v583 = vsel %vm575, %v567, 0
        %v586 = vsel %vm575, %v568, 0
        %588 = vmatprep.subr.bf16.mxu0 %v580
        %589 = vmatpush1.bf16.msra.mxu0 %v577
        %590 = vmatprep.subr.bf16.mxu0 0
        %591 = vmatpush1.bf16.msra.mxu0 0
        %592 = vmatprep.subr.bf16.mxu0 0
        %593 = vmatpush1.bf16.msra.mxu0 0
        %594 = vmatprep.subr.bf16.mxu0 0
        %595 = vmatpush1.bf16.msra.mxu0 0
        %596 = vmatprep.subr.bf16.mxu0 0
        %597 = vmatpush1.bf16.msra.mxu0 0
        %598 = vmatprep.subr.bf16.mxu0 0
        %599 = vmatpush1.bf16.msra.mxu0 0
        %600 = vmatprep.subr.bf16.mxu0 0
        %601 = vmatpush1.bf16.msra.mxu0 0
        %602 = vmatprep.subr.bf16.mxu0 0
        %603 = vmatpush1.bf16.msra.mxu0 0
        %604 = vmatprep.subr.bf16.mxu0 0
        %605 = vmatpush1.bf16.msra.mxu0 0
        %606 = vmatprep.subr.bf16.mxu0 0
        %607 = vmatpush1.bf16.msra.mxu0 0
        %608 = vmatprep.subr.bf16.mxu0 0
        %609 = vmatpush1.bf16.msra.mxu0 0
        %610 = vmatprep.subr.bf16.mxu0 0
        %611 = vmatpush1.bf16.msra.mxu0 0
        %612 = vmatprep.subr.bf16.mxu0 0
        %613 = vmatpush1.bf16.msra.mxu0 0
        %614 = vmatprep.subr.bf16.mxu0 0
        %615 = vmatpush1.bf16.msra.mxu0 0
        %616 = vmatprep.subr.bf16.mxu0 0
        %617 = vmatpush1.bf16.msra.mxu0 0
        %618 = vmatprep.subr.bf16.mxu0 0
        %619 = vmatpush1.bf16.msra.mxu0 0
        %620 = vmatprep.mubr.bf16.mxu0 0
        %621 = vmatmul.mubr.bf16.gmra.mrb[0].mxu0 %v573
        %v622 = vpop.f32.mrb[0].mxu0
        %v623 = vadd.f32 0.0, %v622
        %v624 = vpop.f32.mrb[0].mxu0
        %v625 = vadd.f32 0.0, %v624
        %v626 = vpop.f32.mrb[0].mxu0
        %v627 = vpop.f32.mrb[0].mxu0
        %628 = vdwg.mxu0
        %629 = vmatprep.subr.bf16.mxu0 %v586
        %630 = vmatpush1.bf16.msra.mxu0 %v583
        %631 = vmatprep.subr.bf16.mxu0 0
        %632 = vmatpush1.bf16.msra.mxu0 0
        %633 = vmatprep.subr.bf16.mxu0 0
        %634 = vmatpush1.bf16.msra.mxu0 0
        %635 = vmatprep.subr.bf16.mxu0 0
        %636 = vmatpush1.bf16.msra.mxu0 0
        %637 = vmatprep.subr.bf16.mxu0 0
        %638 = vmatpush1.bf16.msra.mxu0 0
        %639 = vmatprep.subr.bf16.mxu0 0
        %640 = vmatpush1.bf16.msra.mxu0 0
        %641 = vmatprep.subr.bf16.mxu0 0
        %642 = vmatpush1.bf16.msra.mxu0 0
        %643 = vmatprep.subr.bf16.mxu0 0
        %644 = vmatpush1.bf16.msra.mxu0 0
        %645 = vmatprep.subr.bf16.mxu0 0
        %646 = vmatpush1.bf16.msra.mxu0 0
        %647 = vmatprep.subr.bf16.mxu0 0
        %648 = vmatpush1.bf16.msra.mxu0 0
        %649 = vmatprep.subr.bf16.mxu0 0
        %650 = vmatpush1.bf16.msra.mxu0 0
        %651 = vmatprep.subr.bf16.mxu0 0
        %652 = vmatpush1.bf16.msra.mxu0 0
        %653 = vmatprep.subr.bf16.mxu0 0
        %654 = vmatpush1.bf16.msra.mxu0 0
        %655 = vmatprep.subr.bf16.mxu0 0
        %656 = vmatpush1.bf16.msra.mxu0 0
        %657 = vmatprep.subr.bf16.mxu0 0
        %658 = vmatpush1.bf16.msra.mxu0 0
        %659 = vmatprep.subr.bf16.mxu0 0
        %660 = vmatpush1.bf16.msra.mxu0 0
        %661 = vmatprep.mubr.bf16.mxu0 0
        %662 = vmatmul.mubr.bf16.gmra.mrb[0].mxu0 %v573
        %v663 = vpop.f32.mrb[0].mxu0
        %v664 = vadd.f32 0.0, %v663
        %v665 = vpop.f32.mrb[0].mxu0
        %v666 = vadd.f32 0.0, %v665
        %v667 = vpop.f32.mrb[0].mxu0
        %v668 = vpop.f32.mrb[0].mxu0
        %669 = vdwg.mxu0
        %v671 = vsel %vm571, %v524, 0
        %v674 = vsel %vm575, %v520, 0
        %v677 = vsel %vm575, %v521, 0
        %v680 = vsel %vm575, %v522, 0
        %v683 = vsel %vm575, %v523, 0
        %685 = vmatprep.subr.bf16.mxu0 %v677
        %686 = vmatpush1.bf16.msra.mxu0 %v674
        %687 = vmatprep.subr.bf16.mxu0 0
        %688 = vmatpush1.bf16.msra.mxu0 0
        %689 = vmatprep.subr.bf16.mxu0 0
        %690 = vmatpush1.bf16.msra.mxu0 0
        %691 = vmatprep.subr.bf16.mxu0 0
        %692 = vmatpush1.bf16.msra.mxu0 0
        %693 = vmatprep.subr.bf16.mxu0 0
        %694 = vmatpush1.bf16.msra.mxu0 0
        %695 = vmatprep.subr.bf16.mxu0 0
        %696 = vmatpush1.bf16.msra.mxu0 0
        %697 = vmatprep.subr.bf16.mxu0 0
        %698 = vmatpush1.bf16.msra.mxu0 0
        %699 = vmatprep.subr.bf16.mxu0 0
        %700 = vmatpush1.bf16.msra.mxu0 0
        %701 = vmatprep.subr.bf16.mxu0 0
        %702 = vmatpush1.bf16.msra.mxu0 0
        %703 = vmatprep.subr.bf16.mxu0 0
        %704 = vmatpush1.bf16.msra.mxu0 0
        %705 = vmatprep.subr.bf16.mxu0 0
        %706 = vmatpush1.bf16.msra.mxu0 0
        %707 = vmatprep.subr.bf16.mxu0 0
        %708 = vmatpush1.bf16.msra.mxu0 0
        %709 = vmatprep.subr.bf16.mxu0 0
        %710 = vmatpush1.bf16.msra.mxu0 0
        %711 = vmatprep.subr.bf16.mxu0 0
        %712 = vmatpush1.bf16.msra.mxu0 0
        %713 = vmatprep.subr.bf16.mxu0 0
        %714 = vmatpush1.bf16.msra.mxu0 0
        %715 = vmatprep.subr.bf16.mxu0 0
        %716 = vmatpush1.bf16.msra.mxu0 0
        %717 = vmatprep.mubr.bf16.mxu0 0
        %718 = vmatmul.mubr.bf16.gmra.mrb[0].mxu0 %v671
        %v719 = vpop.f32.mrb[0].mxu0
        %v720 = vadd.f32 %v623, %v719
        %v721 = vpop.f32.mrb[0].mxu0
        %v722 = vadd.f32 %v625, %v721
        %v723 = vpop.f32.mrb[0].mxu0
        %v724 = vpop.f32.mrb[0].mxu0
        %725 = vdwg.mxu0
        %726 = vmatprep.subr.bf16.mxu0 %v683
        %727 = vmatpush1.bf16.msra.mxu0 %v680
        %728 = vmatprep.subr.bf16.mxu0 0
        %729 = vmatpush1.bf16.msra.mxu0 0
        %730 = vmatprep.subr.bf16.mxu0 0
        %731 = vmatpush1.bf16.msra.mxu0 0
        %732 = vmatprep.subr.bf16.mxu0 0
        %733 = vmatpush1.bf16.msra.mxu0 0
        %734 = vmatprep.subr.bf16.mxu0 0
        %735 = vmatpush1.bf16.msra.mxu0 0
        %736 = vmatprep.subr.bf16.mxu0 0
        %737 = vmatpush1.bf16.msra.mxu0 0
        %738 = vmatprep.subr.bf16.mxu0 0
        %739 = vmatpush1.bf16.msra.mxu0 0
        %740 = vmatprep.subr.bf16.mxu0 0
        %741 = vmatpush1.bf16.msra.mxu0 0
        %742 = vmatprep.subr.bf16.mxu0 0
        %743 = vmatpush1.bf16.msra.mxu0 0
        %744 = vmatprep.subr.bf16.mxu0 0
        %745 = vmatpush1.bf16.msra.mxu0 0
        %746 = vmatprep.subr.bf16.mxu0 0
        %747 = vmatpush1.bf16.msra.mxu0 0
        %748 = vmatprep.subr.bf16.mxu0 0
        %749 = vmatpush1.bf16.msra.mxu0 0
        %750 = vmatprep.subr.bf16.mxu0 0
        %751 = vmatpush1.bf16.msra.mxu0 0
        %752 = vmatprep.subr.bf16.mxu0 0
        %753 = vmatpush1.bf16.msra.mxu0 0
        %754 = vmatprep.subr.bf16.mxu0 0
        %755 = vmatpush1.bf16.msra.mxu0 0
        %756 = vmatprep.subr.bf16.mxu0 0
        %757 = vmatpush1.bf16.msra.mxu0 0
        %758 = vmatprep.mubr.bf16.mxu0 0
        %759 = vmatmul.mubr.bf16.gmra.mrb[0].mxu0 %v671
        %v760 = vpop.f32.mrb[0].mxu0
        %v761 = vadd.f32 %v664, %v760
        %v762 = vpop.f32.mrb[0].mxu0
        %v763 = vadd.f32 %v666, %v762
        %v764 = vpop.f32.mrb[0].mxu0
        %v765 = vpop.f32.mrb[0].mxu0
        %766 = vdwg.mxu0
        %767 = vrot.lane.b32.xlu0 %v475, 71
        %v768 = vpop.permute.xlu0 %767
        %769 = vrot.lane.b32.xlu0 %v476, 71
        %v770 = vpop.permute.xlu0 %769
        %771 = vrot.lane.b32.xlu0 %v477, 71
        %v772 = vpop.permute.xlu0 %771
        %773 = vrot.lane.b32.xlu0 %v478, 71
        %v774 = vpop.permute.xlu0 %773
        %vm775 = vcmp.lt.s32.totalorder %v488, 71
        %v776 = vsel %vm775, %v772, %v774
        %v777 = vsel %vm775, %v770, %v772
        %v778 = vsel %vm775, %v768, %v770
        %v779 = vsel %vm775, %v774, %v768
        %s780 = scalar_lea.vmem %s7, 8
        %v781 = vld [vmem:[%s780] sm:$0xf]
        %v783 = vlaneseq
        %v784 = vshrl.u32 %v783, 7
        %v785 = vsub.s32 0, %v784
        %v786 = vrot.slane %v781, %v785
        %v787 = vlaneseq
        %v788 = vshrl.u32 %v787, 7
        %v789 = vsub.s32 1, %v788
        %v790 = vrot.slane %v781, %v789
        %v791 = vlaneseq
        %v792 = vshrl.u32 %v791, 7
        %v793 = vsub.s32 2, %v792
        %v794 = vrot.slane %v781, %v793
        %v795 = vlaneseq
        %v796 = vshrl.u32 %v795, 7
        %v797 = vsub.s32 3, %v796
        %v798 = vrot.slane %v781, %v797
        %v803 = vmul.f32 %v779, %v786
        %v804 = vmul.f32 %v778, %v790
        %v805 = vmul.f32 %v777, %v794
        %v806 = vmul.f32 %v776, %v798
        %v807 = vpack.c.bf16 %v803, %v803
        %v808 = vpack.c.bf16 %v804, %v804
        %v809 = vpack.c.bf16 %v805, %v805
        %v810 = vpack.c.bf16 %v806, %v806
        %s811 = scalar_lea.vmem %s2, 8
        %v812 = vld [vmem:[%s811] sm:$0xf]
        %v814 = vsel %vm571, %v812, 0
        %v817 = vsel %vm575, %v807, 0
        %v820 = vsel %vm575, %v808, 0
        %v823 = vsel %vm575, %v809, 0
        %v826 = vsel %vm575, %v810, 0
        %828 = vmatprep.subr.bf16.mxu0 %v820
        %829 = vmatpush1.bf16.msra.mxu0 %v817
        %830 = vmatprep.subr.bf16.mxu0 0
        %831 = vmatpush1.bf16.msra.mxu0 0
        %832 = vmatprep.subr.bf16.mxu0 0
        %833 = vmatpush1.bf16.msra.mxu0 0
        %834 = vmatprep.subr.bf16.mxu0 0
        %835 = vmatpush1.bf16.msra.mxu0 0
        %836 = vmatprep.subr.bf16.mxu0 0
        %837 = vmatpush1.bf16.msra.mxu0 0
        %838 = vmatprep.subr.bf16.mxu0 0
        %839 = vmatpush1.bf16.msra.mxu0 0
        %840 = vmatprep.subr.bf16.mxu0 0
        %841 = vmatpush1.bf16.msra.mxu0 0
        %842 = vmatprep.subr.bf16.mxu0 0
        %843 = vmatpush1.bf16.msra.mxu0 0
        %844 = vmatprep.subr.bf16.mxu0 0
        %845 = vmatpush1.bf16.msra.mxu0 0
        %846 = vmatprep.subr.bf16.mxu0 0
        %847 = vmatpush1.bf16.msra.mxu0 0
        %848 = vmatprep.subr.bf16.mxu0 0
        %849 = vmatpush1.bf16.msra.mxu0 0
        %850 = vmatprep.subr.bf16.mxu0 0
        %851 = vmatpush1.bf16.msra.mxu0 0
        %852 = vmatprep.subr.bf16.mxu0 0
        %853 = vmatpush1.bf16.msra.mxu0 0
        %854 = vmatprep.subr.bf16.mxu0 0
        %855 = vmatpush1.bf16.msra.mxu0 0
        %856 = vmatprep.subr.bf16.mxu0 0
        %857 = vmatpush1.bf16.msra.mxu0 0
        %858 = vmatprep.subr.bf16.mxu0 0
        %859 = vmatpush1.bf16.msra.mxu0 0
        %860 = vmatprep.mubr.bf16.mxu0 0
        %861 = vmatmul.mubr.bf16.gmra.mrb[0].mxu0 %v814
        %v862 = vpop.f32.mrb[0].mxu0
        %v863 = vadd.f32 0.0, %v862
        %v864 = vpop.f32.mrb[0].mxu0
        %v865 = vadd.f32 0.0, %v864
        %v866 = vpop.f32.mrb[0].mxu0
        %v867 = vpop.f32.mrb[0].mxu0
        %868 = vdwg.mxu0
        %869 = vmatprep.subr.bf16.mxu0 %v826
        %870 = vmatpush1.bf16.msra.mxu0 %v823
        %871 = vmatprep.subr.bf16.mxu0 0
        %872 = vmatpush1.bf16.msra.mxu0 0
        %873 = vmatprep.subr.bf16.mxu0 0
        %874 = vmatpush1.bf16.msra.mxu0 0
        %875 = vmatprep.subr.bf16.mxu0 0
        %876 = vmatpush1.bf16.msra.mxu0 0
        %877 = vmatprep.subr.bf16.mxu0 0
        %878 = vmatpush1.bf16.msra.mxu0 0
        %879 = vmatprep.subr.bf16.mxu0 0
        %880 = vmatpush1.bf16.msra.mxu0 0
        %881 = vmatprep.subr.bf16.mxu0 0
        %882 = vmatpush1.bf16.msra.mxu0 0
        %883 = vmatprep.subr.bf16.mxu0 0
        %884 = vmatpush1.bf16.msra.mxu0 0
        %885 = vmatprep.subr.bf16.mxu0 0
        %886 = vmatpush1.bf16.msra.mxu0 0
        %887 = vmatprep.subr.bf16.mxu0 0
        %888 = vmatpush1.bf16.msra.mxu0 0
        %889 = vmatprep.subr.bf16.mxu0 0
        %890 = vmatpush1.bf16.msra.mxu0 0
        %891 = vmatprep.subr.bf16.mxu0 0
        %892 = vmatpush1.bf16.msra.mxu0 0
        %893 = vmatprep.subr.bf16.mxu0 0
        %894 = vmatpush1.bf16.msra.mxu0 0
        %895 = vmatprep.subr.bf16.mxu0 0
        %896 = vmatpush1.bf16.msra.mxu0 0
        %897 = vmatprep.subr.bf16.mxu0 0
        %898 = vmatpush1.bf16.msra.mxu0 0
        %899 = vmatprep.subr.bf16.mxu0 0
        %900 = vmatpush1.bf16.msra.mxu0 0
        %901 = vmatprep.mubr.bf16.mxu0 0
        %902 = vmatmul.mubr.bf16.gmra.mrb[0].mxu0 %v814
        %v903 = vpop.f32.mrb[0].mxu0
        %v904 = vadd.f32 0.0, %v903
        %v905 = vpop.f32.mrb[0].mxu0
        %v906 = vadd.f32 0.0, %v905
        %v907 = vpop.f32.mrb[0].mxu0
        %v908 = vpop.f32.mrb[0].mxu0
        %909 = vdwg.mxu0
        %v910 = vadd.f32 %v720, %v863
        %v911 = vadd.f32 %v722, %v865
        %v912 = vadd.f32 %v761, %v904
        %v913 = vadd.f32 %v763, %v906
        %914 = vrot.lane.b32.xlu0 %v475, 65
        %v915 = vpop.permute.xlu0 %914
        %916 = vrot.lane.b32.xlu0 %v476, 65
        %v917 = vpop.permute.xlu0 %916
        %918 = vrot.lane.b32.xlu0 %v477, 65
        %v919 = vpop.permute.xlu0 %918
        %920 = vrot.lane.b32.xlu0 %v478, 65
        %v921 = vpop.permute.xlu0 %920
        %vm922 = vcmp.lt.s32.totalorder %v488, 65
        %v923 = vsel %vm922, %v919, %v921
        %v924 = vsel %vm922, %v917, %v919
        %v925 = vsel %vm922, %v915, %v917
        %v926 = vsel %vm922, %v921, %v915
        %s927 = scalar_lea.vmem %s7, 12
        %v928 = vld [vmem:[%s927] sm:$0xf]
        %v930 = vlaneseq
        %v931 = vshrl.u32 %v930, 7
        %v932 = vsub.s32 0, %v931
        %v933 = vrot.slane %v928, %v932
        %v934 = vlaneseq
        %v935 = vshrl.u32 %v934, 7
        %v936 = vsub.s32 1, %v935
        %v937 = vrot.slane %v928, %v936
        %v938 = vlaneseq
        %v939 = vshrl.u32 %v938, 7
        %v940 = vsub.s32 2, %v939
        %v941 = vrot.slane %v928, %v940
        %v942 = vlaneseq
        %v943 = vshrl.u32 %v942, 7
        %v944 = vsub.s32 3, %v943
        %v945 = vrot.slane %v928, %v944
        %v950 = vmul.f32 %v926, %v933
        %v951 = vmul.f32 %v925, %v937
        %v952 = vmul.f32 %v924, %v941
        %v953 = vmul.f32 %v923, %v945
        %v954 = vpack.c.bf16 %v950, %v950
        %v955 = vpack.c.bf16 %v951, %v951
        %v956 = vpack.c.bf16 %v952, %v952
        %v957 = vpack.c.bf16 %v953, %v953
        %s958 = scalar_lea.vmem %s2, 12
        %v959 = vld [vmem:[%s958] sm:$0xf]
        %v961 = vsel %vm571, %v959, 0
        %v964 = vsel %vm575, %v954, 0
        %v967 = vsel %vm575, %v955, 0
        %v970 = vsel %vm575, %v956, 0
        %v973 = vsel %vm575, %v957, 0
        %975 = vmatprep.subr.bf16.mxu0 %v967
        %976 = vmatpush1.bf16.msra.mxu0 %v964
        %977 = vmatprep.subr.bf16.mxu0 0
        %978 = vmatpush1.bf16.msra.mxu0 0
        %979 = vmatprep.subr.bf16.mxu0 0
        %980 = vmatpush1.bf16.msra.mxu0 0
        %981 = vmatprep.subr.bf16.mxu0 0
        %982 = vmatpush1.bf16.msra.mxu0 0
        %983 = vmatprep.subr.bf16.mxu0 0
        %984 = vmatpush1.bf16.msra.mxu0 0
        %985 = vmatprep.subr.bf16.mxu0 0
        %986 = vmatpush1.bf16.msra.mxu0 0
        %987 = vmatprep.subr.bf16.mxu0 0
        %988 = vmatpush1.bf16.msra.mxu0 0
        %989 = vmatprep.subr.bf16.mxu0 0
        %990 = vmatpush1.bf16.msra.mxu0 0
        %991 = vmatprep.subr.bf16.mxu0 0
        %992 = vmatpush1.bf16.msra.mxu0 0
        %993 = vmatprep.subr.bf16.mxu0 0
        %994 = vmatpush1.bf16.msra.mxu0 0
        %995 = vmatprep.subr.bf16.mxu0 0
        %996 = vmatpush1.bf16.msra.mxu0 0
        %997 = vmatprep.subr.bf16.mxu0 0
        %998 = vmatpush1.bf16.msra.mxu0 0
        %999 = vmatprep.subr.bf16.mxu0 0
        %1000 = vmatpush1.bf16.msra.mxu0 0
        %1001 = vmatprep.subr.bf16.mxu0 0
        %1002 = vmatpush1.bf16.msra.mxu0 0
        %1003 = vmatprep.subr.bf16.mxu0 0
        %1004 = vmatpush1.bf16.msra.mxu0 0
        %1005 = vmatprep.subr.bf16.mxu0 0
        %1006 = vmatpush1.bf16.msra.mxu0 0
        %1007 = vmatprep.mubr.bf16.mxu0 0
        %1008 = vmatmul.mubr.bf16.gmra.mrb[0].mxu0 %v961
        %v1009 = vpop.f32.mrb[0].mxu0
        %v1010 = vadd.f32 0.0, %v1009
        %v1011 = vpop.f32.mrb[0].mxu0
        %v1012 = vadd.f32 0.0, %v1011
        %v1013 = vpop.f32.mrb[0].mxu0
        %v1014 = vpop.f32.mrb[0].mxu0
        %1015 = vdwg.mxu0
        %1016 = vmatprep.subr.bf16.mxu0 %v973
        %1017 = vmatpush1.bf16.msra.mxu0 %v970
        %1018 = vmatprep.subr.bf16.mxu0 0
        %1019 = vmatpush1.bf16.msra.mxu0 0
        %1020 = vmatprep.subr.bf16.mxu0 0
        %1021 = vmatpush1.bf16.msra.mxu0 0
        %1022 = vmatprep.subr.bf16.mxu0 0
        %1023 = vmatpush1.bf16.msra.mxu0 0
        %1024 = vmatprep.subr.bf16.mxu0 0
        %1025 = vmatpush1.bf16.msra.mxu0 0
        %1026 = vmatprep.subr.bf16.mxu0 0
        %1027 = vmatpush1.bf16.msra.mxu0 0
        %1028 = vmatprep.subr.bf16.mxu0 0
        %1029 = vmatpush1.bf16.msra.mxu0 0
        %1030 = vmatprep.subr.bf16.mxu0 0
        %1031 = vmatpush1.bf16.msra.mxu0 0
        %1032 = vmatprep.subr.bf16.mxu0 0
        %1033 = vmatpush1.bf16.msra.mxu0 0
        %1034 = vmatprep.subr.bf16.mxu0 0
        %1035 = vmatpush1.bf16.msra.mxu0 0
        %1036 = vmatprep.subr.bf16.mxu0 0
        %1037 = vmatpush1.bf16.msra.mxu0 0
        %1038 = vmatprep.subr.bf16.mxu0 0
        %1039 = vmatpush1.bf16.msra.mxu0 0
        %1040 = vmatprep.subr.bf16.mxu0 0
        %1041 = vmatpush1.bf16.msra.mxu0 0
        %1042 = vmatprep.subr.bf16.mxu0 0
        %1043 = vmatpush1.bf16.msra.mxu0 0
        %1044 = vmatprep.subr.bf16.mxu0 0
        %1045 = vmatpush1.bf16.msra.mxu0 0
        %1046 = vmatprep.subr.bf16.mxu0 0
        %1047 = vmatpush1.bf16.msra.mxu0 0
        %1048 = vmatprep.mubr.bf16.mxu0 0
        %1049 = vmatmul.mubr.bf16.gmra.mrb[0].mxu0 %v961
        %v1050 = vpop.f32.mrb[0].mxu0
        %v1051 = vadd.f32 0.0, %v1050
        %v1052 = vpop.f32.mrb[0].mxu0
        %v1053 = vadd.f32 0.0, %v1052
        %v1054 = vpop.f32.mrb[0].mxu0
        %v1055 = vpop.f32.mrb[0].mxu0
        %1056 = vdwg.mxu0
        %v1057 = vadd.f32 %v910, %v1010
        %v1058 = vadd.f32 %v911, %v1012
        %v1059 = vadd.f32 %v912, %v1051
        %v1060 = vadd.f32 %v913, %v1053
        %1061 = vrot.lane.b32.xlu0 %v475, 64
        %v1062 = vpop.permute.xlu0 %1061
        %1063 = vrot.lane.b32.xlu0 %v476, 64
        %v1064 = vpop.permute.xlu0 %1063
        %1065 = vrot.lane.b32.xlu0 %v477, 64
        %v1066 = vpop.permute.xlu0 %1065
        %1067 = vrot.lane.b32.xlu0 %v478, 64
        %v1068 = vpop.permute.xlu0 %1067
        %vm1069 = vcmp.lt.s32.totalorder %v488, 64
        %v1070 = vsel %vm1069, %v1066, %v1068
        %v1071 = vsel %vm1069, %v1064, %v1066
        %v1072 = vsel %vm1069, %v1062, %v1064
        %v1073 = vsel %vm1069, %v1068, %v1062
        %s1074 = scalar_lea.vmem %s7, 16
        %v1075 = vld [vmem:[%s1074] sm:$0xf]
        %v1077 = vlaneseq
        %v1078 = vshrl.u32 %v1077, 7
        %v1079 = vsub.s32 0, %v1078
        %v1080 = vrot.slane %v1075, %v1079
        %v1081 = vlaneseq
        %v1082 = vshrl.u32 %v1081, 7
        %v1083 = vsub.s32 1, %v1082
        %v1084 = vrot.slane %v1075, %v1083
        %v1085 = vlaneseq
        %v1086 = vshrl.u32 %v1085, 7
        %v1087 = vsub.s32 2, %v1086
        %v1088 = vrot.slane %v1075, %v1087
        %v1089 = vlaneseq
        %v1090 = vshrl.u32 %v1089, 7
        %v1091 = vsub.s32 3, %v1090
        %v1092 = vrot.slane %v1075, %v1091
        %v1097 = vmul.f32 %v1073, %v1080
        %v1098 = vmul.f32 %v1072, %v1084
        %v1099 = vmul.f32 %v1071, %v1088
        %v1100 = vmul.f32 %v1070, %v1092
        %v1101 = vpack.c.bf16 %v1097, %v1097
        %v1102 = vpack.c.bf16 %v1098, %v1098
        %v1103 = vpack.c.bf16 %v1099, %v1099
        %v1104 = vpack.c.bf16 %v1100, %v1100
        %s1105 = scalar_lea.vmem %s2, 16
        %v1106 = vld [vmem:[%s1105] sm:$0xf]
        %v1108 = vsel %vm571, %v1106, 0
        %v1111 = vsel %vm575, %v1101, 0
        %v1114 = vsel %vm575, %v1102, 0
        %v1117 = vsel %vm575, %v1103, 0
        %v1120 = vsel %vm575, %v1104, 0
        %1122 = vmatprep.subr.bf16.mxu0 %v1114
        %1123 = vmatpush1.bf16.msra.mxu0 %v1111
        %1124 = vmatprep.subr.bf16.mxu0 0
        %1125 = vmatpush1.bf16.msra.mxu0 0
        %1126 = vmatprep.subr.bf16.mxu0 0
        %1127 = vmatpush1.bf16.msra.mxu0 0
        %1128 = vmatprep.subr.bf16.mxu0 0
        %1129 = vmatpush1.bf16.msra.mxu0 0
        %1130 = vmatprep.subr.bf16.mxu0 0
        %1131 = vmatpush1.bf16.msra.mxu0 0
        %1132 = vmatprep.subr.bf16.mxu0 0
        %1133 = vmatpush1.bf16.msra.mxu0 0
        %1134 = vmatprep.subr.bf16.mxu0 0
        %1135 = vmatpush1.bf16.msra.mxu0 0
        %1136 = vmatprep.subr.bf16.mxu0 0
        %1137 = vmatpush1.bf16.msra.mxu0 0
        %1138 = vmatprep.subr.bf16.mxu0 0
        %1139 = vmatpush1.bf16.msra.mxu0 0
        %1140 = vmatprep.subr.bf16.mxu0 0
        %1141 = vmatpush1.bf16.msra.mxu0 0
        %1142 = vmatprep.subr.bf16.mxu0 0
        %1143 = vmatpush1.bf16.msra.mxu0 0
        %1144 = vmatprep.subr.bf16.mxu0 0
        %1145 = vmatpush1.bf16.msra.mxu0 0
        %1146 = vmatprep.subr.bf16.mxu0 0
        %1147 = vmatpush1.bf16.msra.mxu0 0
        %1148 = vmatprep.subr.bf16.mxu0 0
        %1149 = vmatpush1.bf16.msra.mxu0 0
        %1150 = vmatprep.subr.bf16.mxu0 0
        %1151 = vmatpush1.bf16.msra.mxu0 0
        %1152 = vmatprep.subr.bf16.mxu0 0
        %1153 = vmatpush1.bf16.msra.mxu0 0
        %1154 = vmatprep.mubr.bf16.mxu0 0
        %1155 = vmatmul.mubr.bf16.gmra.mrb[0].mxu0 %v1108
        %v1156 = vpop.f32.mrb[0].mxu0
        %v1157 = vadd.f32 0.0, %v1156
        %v1158 = vpop.f32.mrb[0].mxu0
        %v1159 = vadd.f32 0.0, %v1158
        %v1160 = vpop.f32.mrb[0].mxu0
        %v1161 = vpop.f32.mrb[0].mxu0
        %1162 = vdwg.mxu0
        %1163 = vmatprep.subr.bf16.mxu0 %v1120
        %1164 = vmatpush1.bf16.msra.mxu0 %v1117
        %1165 = vmatprep.subr.bf16.mxu0 0
        %1166 = vmatpush1.bf16.msra.mxu0 0
        %1167 = vmatprep.subr.bf16.mxu0 0
        %1168 = vmatpush1.bf16.msra.mxu0 0
        %1169 = vmatprep.subr.bf16.mxu0 0
        %1170 = vmatpush1.bf16.msra.mxu0 0
        %1171 = vmatprep.subr.bf16.mxu0 0
        %1172 = vmatpush1.bf16.msra.mxu0 0
        %1173 = vmatprep.subr.bf16.mxu0 0
        %1174 = vmatpush1.bf16.msra.mxu0 0
        %1175 = vmatprep.subr.bf16.mxu0 0
        %1176 = vmatpush1.bf16.msra.mxu0 0
        %1177 = vmatprep.subr.bf16.mxu0 0
        %1178 = vmatpush1.bf16.msra.mxu0 0
        %1179 = vmatprep.subr.bf16.mxu0 0
        %1180 = vmatpush1.bf16.msra.mxu0 0
        %1181 = vmatprep.subr.bf16.mxu0 0
        %1182 = vmatpush1.bf16.msra.mxu0 0
        %1183 = vmatprep.subr.bf16.mxu0 0
        %1184 = vmatpush1.bf16.msra.mxu0 0
        %1185 = vmatprep.subr.bf16.mxu0 0
        %1186 = vmatpush1.bf16.msra.mxu0 0
        %1187 = vmatprep.subr.bf16.mxu0 0
        %1188 = vmatpush1.bf16.msra.mxu0 0
        %1189 = vmatprep.subr.bf16.mxu0 0
        %1190 = vmatpush1.bf16.msra.mxu0 0
        %1191 = vmatprep.subr.bf16.mxu0 0
        %1192 = vmatpush1.bf16.msra.mxu0 0
        %1193 = vmatprep.subr.bf16.mxu0 0
        %1194 = vmatpush1.bf16.msra.mxu0 0
        %1195 = vmatprep.mubr.bf16.mxu0 0
        %1196 = vmatmul.mubr.bf16.gmra.mrb[0].mxu0 %v1108
        %v1197 = vpop.f32.mrb[0].mxu0
        %v1198 = vadd.f32 0.0, %v1197
        %v1199 = vpop.f32.mrb[0].mxu0
        %v1200 = vadd.f32 0.0, %v1199
        %v1201 = vpop.f32.mrb[0].mxu0
        %v1202 = vpop.f32.mrb[0].mxu0
        %1203 = vdwg.mxu0
        %v1204 = vadd.f32 %v1057, %v1157
        %v1205 = vadd.f32 %v1058, %v1159
        %v1206 = vadd.f32 %v1059, %v1198
        %v1207 = vadd.f32 %v1060, %v1200
        %1208 = vrot.lane.b32.xlu0 %v475, 63
        %v1209 = vpop.permute.xlu0 %1208
        %1210 = vrot.lane.b32.xlu0 %v476, 63
        %v1211 = vpop.permute.xlu0 %1210
        %1212 = vrot.lane.b32.xlu0 %v477, 63
        %v1213 = vpop.permute.xlu0 %1212
        %1214 = vrot.lane.b32.xlu0 %v478, 63
        %v1215 = vpop.permute.xlu0 %1214
        %vm1216 = vcmp.lt.s32.totalorder %v488, 63
        %v1217 = vsel %vm1216, %v1213, %v1215
        %v1218 = vsel %vm1216, %v1211, %v1213
        %v1219 = vsel %vm1216, %v1209, %v1211
        %v1220 = vsel %vm1216, %v1215, %v1209
        %s1221 = scalar_lea.vmem %s7, 20
        %v1222 = vld [vmem:[%s1221] sm:$0xf]
        %v1224 = vlaneseq
        %v1225 = vshrl.u32 %v1224, 7
        %v1226 = vsub.s32 0, %v1225
        %v1227 = vrot.slane %v1222, %v1226
        %v1228 = vlaneseq
        %v1229 = vshrl.u32 %v1228, 7
        %v1230 = vsub.s32 1, %v1229
        %v1231 = vrot.slane %v1222, %v1230
        %v1232 = vlaneseq
        %v1233 = vshrl.u32 %v1232, 7
        %v1234 = vsub.s32 2, %v1233
        %v1235 = vrot.slane %v1222, %v1234
        %v1236 = vlaneseq
        %v1237 = vshrl.u32 %v1236, 7
        %v1238 = vsub.s32 3, %v1237
        %v1239 = vrot.slane %v1222, %v1238
        %v1244 = vmul.f32 %v1220, %v1227
        %v1245 = vmul.f32 %v1219, %v1231
        %v1246 = vmul.f32 %v1218, %v1235
        %v1247 = vmul.f32 %v1217, %v1239
        %v1248 = vpack.c.bf16 %v1244, %v1244
        %v1249 = vpack.c.bf16 %v1245, %v1245
        %v1250 = vpack.c.bf16 %v1246, %v1246
        %v1251 = vpack.c.bf16 %v1247, %v1247
        %s1252 = scalar_lea.vmem %s2, 20
        %v1253 = vld [vmem:[%s1252] sm:$0xf]
        %v1255 = vsel %vm571, %v1253, 0
        %v1258 = vsel %vm575, %v1248, 0
        %v1261 = vsel %vm575, %v1249, 0
        %v1264 = vsel %vm575, %v1250, 0
        %v1267 = vsel %vm575, %v1251, 0
        %1269 = vmatprep.subr.bf16.mxu0 %v1261
        %1270 = vmatpush1.bf16.msra.mxu0 %v1258
        %1271 = vmatprep.subr.bf16.mxu0 0
        %1272 = vmatpush1.bf16.msra.mxu0 0
        %1273 = vmatprep.subr.bf16.mxu0 0
        %1274 = vmatpush1.bf16.msra.mxu0 0
        %1275 = vmatprep.subr.bf16.mxu0 0
        %1276 = vmatpush1.bf16.msra.mxu0 0
        %1277 = vmatprep.subr.bf16.mxu0 0
        %1278 = vmatpush1.bf16.msra.mxu0 0
        %1279 = vmatprep.subr.bf16.mxu0 0
        %1280 = vmatpush1.bf16.msra.mxu0 0
        %1281 = vmatprep.subr.bf16.mxu0 0
        %1282 = vmatpush1.bf16.msra.mxu0 0
        %1283 = vmatprep.subr.bf16.mxu0 0
        %1284 = vmatpush1.bf16.msra.mxu0 0
        %1285 = vmatprep.subr.bf16.mxu0 0
        %1286 = vmatpush1.bf16.msra.mxu0 0
        %1287 = vmatprep.subr.bf16.mxu0 0
        %1288 = vmatpush1.bf16.msra.mxu0 0
        %1289 = vmatprep.subr.bf16.mxu0 0
        %1290 = vmatpush1.bf16.msra.mxu0 0
        %1291 = vmatprep.subr.bf16.mxu0 0
        %1292 = vmatpush1.bf16.msra.mxu0 0
        %1293 = vmatprep.subr.bf16.mxu0 0
        %1294 = vmatpush1.bf16.msra.mxu0 0
        %1295 = vmatprep.subr.bf16.mxu0 0
        %1296 = vmatpush1.bf16.msra.mxu0 0
        %1297 = vmatprep.subr.bf16.mxu0 0
        %1298 = vmatpush1.bf16.msra.mxu0 0
        %1299 = vmatprep.subr.bf16.mxu0 0
        %1300 = vmatpush1.bf16.msra.mxu0 0
        %1301 = vmatprep.mubr.bf16.mxu0 0
        %1302 = vmatmul.mubr.bf16.gmra.mrb[0].mxu0 %v1255
        %v1303 = vpop.f32.mrb[0].mxu0
        %v1304 = vadd.f32 0.0, %v1303
        %v1305 = vpop.f32.mrb[0].mxu0
        %v1306 = vadd.f32 0.0, %v1305
        %v1307 = vpop.f32.mrb[0].mxu0
        %v1308 = vpop.f32.mrb[0].mxu0
        %1309 = vdwg.mxu0
        %1310 = vmatprep.subr.bf16.mxu0 %v1267
        %1311 = vmatpush1.bf16.msra.mxu0 %v1264
        %1312 = vmatprep.subr.bf16.mxu0 0
        %1313 = vmatpush1.bf16.msra.mxu0 0
        %1314 = vmatprep.subr.bf16.mxu0 0
        %1315 = vmatpush1.bf16.msra.mxu0 0
        %1316 = vmatprep.subr.bf16.mxu0 0
        %1317 = vmatpush1.bf16.msra.mxu0 0
        %1318 = vmatprep.subr.bf16.mxu0 0
        %1319 = vmatpush1.bf16.msra.mxu0 0
        %1320 = vmatprep.subr.bf16.mxu0 0
        %1321 = vmatpush1.bf16.msra.mxu0 0
        %1322 = vmatprep.subr.bf16.mxu0 0
        %1323 = vmatpush1.bf16.msra.mxu0 0
        %1324 = vmatprep.subr.bf16.mxu0 0
        %1325 = vmatpush1.bf16.msra.mxu0 0
        %1326 = vmatprep.subr.bf16.mxu0 0
        %1327 = vmatpush1.bf16.msra.mxu0 0
        %1328 = vmatprep.subr.bf16.mxu0 0
        %1329 = vmatpush1.bf16.msra.mxu0 0
        %1330 = vmatprep.subr.bf16.mxu0 0
        %1331 = vmatpush1.bf16.msra.mxu0 0
        %1332 = vmatprep.subr.bf16.mxu0 0
        %1333 = vmatpush1.bf16.msra.mxu0 0
        %1334 = vmatprep.subr.bf16.mxu0 0
        %1335 = vmatpush1.bf16.msra.mxu0 0
        %1336 = vmatprep.subr.bf16.mxu0 0
        %1337 = vmatpush1.bf16.msra.mxu0 0
        %1338 = vmatprep.subr.bf16.mxu0 0
        %1339 = vmatpush1.bf16.msra.mxu0 0
        %1340 = vmatprep.subr.bf16.mxu0 0
        %1341 = vmatpush1.bf16.msra.mxu0 0
        %1342 = vmatprep.mubr.bf16.mxu0 0
        %1343 = vmatmul.mubr.bf16.gmra.mrb[0].mxu0 %v1255
        %v1344 = vpop.f32.mrb[0].mxu0
        %v1345 = vadd.f32 0.0, %v1344
        %v1346 = vpop.f32.mrb[0].mxu0
        %v1347 = vadd.f32 0.0, %v1346
        %v1348 = vpop.f32.mrb[0].mxu0
        %v1349 = vpop.f32.mrb[0].mxu0
        %1350 = vdwg.mxu0
        %v1351 = vadd.f32 %v1204, %v1304
        %v1352 = vadd.f32 %v1205, %v1306
        %v1353 = vadd.f32 %v1206, %v1345
        %v1354 = vadd.f32 %v1207, %v1347
        %1355 = vrot.lane.b32.xlu0 %v475, 57
        %v1356 = vpop.permute.xlu0 %1355
        %1357 = vrot.lane.b32.xlu0 %v476, 57
        %v1358 = vpop.permute.xlu0 %1357
        %1359 = vrot.lane.b32.xlu0 %v477, 57
        %v1360 = vpop.permute.xlu0 %1359
        %1361 = vrot.lane.b32.xlu0 %v478, 57
        %v1362 = vpop.permute.xlu0 %1361
        %vm1363 = vcmp.lt.s32.totalorder %v488, 57
        %v1364 = vsel %vm1363, %v1360, %v1362
        %v1365 = vsel %vm1363, %v1358, %v1360
        %v1366 = vsel %vm1363, %v1356, %v1358
        %v1367 = vsel %vm1363, %v1362, %v1356
        %s1368 = scalar_lea.vmem %s7, 24
        %v1369 = vld [vmem:[%s1368] sm:$0xf]
        %v1371 = vlaneseq
        %v1372 = vshrl.u32 %v1371, 7
        %v1373 = vsub.s32 0, %v1372
        %v1374 = vrot.slane %v1369, %v1373
        %v1375 = vlaneseq
        %v1376 = vshrl.u32 %v1375, 7
        %v1377 = vsub.s32 1, %v1376
        %v1378 = vrot.slane %v1369, %v1377
        %v1379 = vlaneseq
        %v1380 = vshrl.u32 %v1379, 7
        %v1381 = vsub.s32 2, %v1380
        %v1382 = vrot.slane %v1369, %v1381
        %v1383 = vlaneseq
        %v1384 = vshrl.u32 %v1383, 7
        %v1385 = vsub.s32 3, %v1384
        %v1386 = vrot.slane %v1369, %v1385
        %v1391 = vmul.f32 %v1367, %v1374
        %v1392 = vmul.f32 %v1366, %v1378
        %v1393 = vmul.f32 %v1365, %v1382
        %v1394 = vmul.f32 %v1364, %v1386
        %v1395 = vpack.c.bf16 %v1391, %v1391
        %v1396 = vpack.c.bf16 %v1392, %v1392
        %v1397 = vpack.c.bf16 %v1393, %v1393
        %v1398 = vpack.c.bf16 %v1394, %v1394
        %s1399 = scalar_lea.vmem %s2, 24
        %v1400 = vld [vmem:[%s1399] sm:$0xf]
        %v1402 = vsel %vm571, %v1400, 0
        %v1405 = vsel %vm575, %v1395, 0
        %v1408 = vsel %vm575, %v1396, 0
        %v1411 = vsel %vm575, %v1397, 0
        %v1414 = vsel %vm575, %v1398, 0
        %1416 = vmatprep.subr.bf16.mxu0 %v1408
        %1417 = vmatpush1.bf16.msra.mxu0 %v1405
        %1418 = vmatprep.subr.bf16.mxu0 0
        %1419 = vmatpush1.bf16.msra.mxu0 0
        %1420 = vmatprep.subr.bf16.mxu0 0
        %1421 = vmatpush1.bf16.msra.mxu0 0
        %1422 = vmatprep.subr.bf16.mxu0 0
        %1423 = vmatpush1.bf16.msra.mxu0 0
        %1424 = vmatprep.subr.bf16.mxu0 0
        %1425 = vmatpush1.bf16.msra.mxu0 0
        %1426 = vmatprep.subr.bf16.mxu0 0
        %1427 = vmatpush1.bf16.msra.mxu0 0
        %1428 = vmatprep.subr.bf16.mxu0 0
        %1429 = vmatpush1.bf16.msra.mxu0 0
        %1430 = vmatprep.subr.bf16.mxu0 0
        %1431 = vmatpush1.bf16.msra.mxu0 0
        %1432 = vmatprep.subr.bf16.mxu0 0
        %1433 = vmatpush1.bf16.msra.mxu0 0
        %1434 = vmatprep.subr.bf16.mxu0 0
        %1435 = vmatpush1.bf16.msra.mxu0 0
        %1436 = vmatprep.subr.bf16.mxu0 0
        %1437 = vmatpush1.bf16.msra.mxu0 0
        %1438 = vmatprep.subr.bf16.mxu0 0
        %1439 = vmatpush1.bf16.msra.mxu0 0
        %1440 = vmatprep.subr.bf16.mxu0 0
        %1441 = vmatpush1.bf16.msra.mxu0 0
        %1442 = vmatprep.subr.bf16.mxu0 0
        %1443 = vmatpush1.bf16.msra.mxu0 0
        %1444 = vmatprep.subr.bf16.mxu0 0
        %1445 = vmatpush1.bf16.msra.mxu0 0
        %1446 = vmatprep.subr.bf16.mxu0 0
        %1447 = vmatpush1.bf16.msra.mxu0 0
        %1448 = vmatprep.mubr.bf16.mxu0 0
        %1449 = vmatmul.mubr.bf16.gmra.mrb[0].mxu0 %v1402
        %v1450 = vpop.f32.mrb[0].mxu0
        %v1451 = vadd.f32 0.0, %v1450
        %v1452 = vpop.f32.mrb[0].mxu0
        %v1453 = vadd.f32 0.0, %v1452
        %v1454 = vpop.f32.mrb[0].mxu0
        %v1455 = vpop.f32.mrb[0].mxu0
        %1456 = vdwg.mxu0
        %1457 = vmatprep.subr.bf16.mxu0 %v1414
        %1458 = vmatpush1.bf16.msra.mxu0 %v1411
        %1459 = vmatprep.subr.bf16.mxu0 0
        %1460 = vmatpush1.bf16.msra.mxu0 0
        %1461 = vmatprep.subr.bf16.mxu0 0
        %1462 = vmatpush1.bf16.msra.mxu0 0
        %1463 = vmatprep.subr.bf16.mxu0 0
        %1464 = vmatpush1.bf16.msra.mxu0 0
        %1465 = vmatprep.subr.bf16.mxu0 0
        %1466 = vmatpush1.bf16.msra.mxu0 0
        %1467 = vmatprep.subr.bf16.mxu0 0
        %1468 = vmatpush1.bf16.msra.mxu0 0
        %1469 = vmatprep.subr.bf16.mxu0 0
        %1470 = vmatpush1.bf16.msra.mxu0 0
        %1471 = vmatprep.subr.bf16.mxu0 0
        %1472 = vmatpush1.bf16.msra.mxu0 0
        %1473 = vmatprep.subr.bf16.mxu0 0
        %1474 = vmatpush1.bf16.msra.mxu0 0
        %1475 = vmatprep.subr.bf16.mxu0 0
        %1476 = vmatpush1.bf16.msra.mxu0 0
        %1477 = vmatprep.subr.bf16.mxu0 0
        %1478 = vmatpush1.bf16.msra.mxu0 0
        %1479 = vmatprep.subr.bf16.mxu0 0
        %1480 = vmatpush1.bf16.msra.mxu0 0
        %1481 = vmatprep.subr.bf16.mxu0 0
        %1482 = vmatpush1.bf16.msra.mxu0 0
        %1483 = vmatprep.subr.bf16.mxu0 0
        %1484 = vmatpush1.bf16.msra.mxu0 0
        %1485 = vmatprep.subr.bf16.mxu0 0
        %1486 = vmatpush1.bf16.msra.mxu0 0
        %1487 = vmatprep.subr.bf16.mxu0 0
        %1488 = vmatpush1.bf16.msra.mxu0 0
        %1489 = vmatprep.mubr.bf16.mxu0 0
        %1490 = vmatmul.mubr.bf16.gmra.mrb[0].mxu0 %v1402
        %v1491 = vpop.f32.mrb[0].mxu0
        %v1492 = vadd.f32 0.0, %v1491
        %v1493 = vpop.f32.mrb[0].mxu0
        %v1494 = vadd.f32 0.0, %v1493
        %v1495 = vpop.f32.mrb[0].mxu0
        %v1496 = vpop.f32.mrb[0].mxu0
        %1497 = vdwg.mxu0
        %v1498 = vadd.f32 %v1351, %v1451
        %v1499 = vadd.f32 %v1352, %v1453
        %v1500 = vadd.f32 %v1353, %v1492
        %v1501 = vadd.f32 %v1354, %v1494
        %1502 = vrot.lane.b32.xlu0 %v475, 56
        %v1503 = vpop.permute.xlu0 %1502
        %1504 = vrot.lane.b32.xlu0 %v476, 56
        %v1505 = vpop.permute.xlu0 %1504
        %1506 = vrot.lane.b32.xlu0 %v477, 56
        %v1507 = vpop.permute.xlu0 %1506
        %1508 = vrot.lane.b32.xlu0 %v478, 56
        %v1509 = vpop.permute.xlu0 %1508
        %vm1510 = vcmp.lt.s32.totalorder %v488, 56
        %v1511 = vsel %vm1510, %v1507, %v1509
        %v1512 = vsel %vm1510, %v1505, %v1507
        %v1513 = vsel %vm1510, %v1503, %v1505
        %v1514 = vsel %vm1510, %v1509, %v1503
        %s1515 = scalar_lea.vmem %s7, 28
        %v1516 = vld [vmem:[%s1515] sm:$0xf]
        %v1518 = vlaneseq
        %v1519 = vshrl.u32 %v1518, 7
        %v1520 = vsub.s32 0, %v1519
        %v1521 = vrot.slane %v1516, %v1520
        %v1522 = vlaneseq
        %v1523 = vshrl.u32 %v1522, 7
        %v1524 = vsub.s32 1, %v1523
        %v1525 = vrot.slane %v1516, %v1524
        %v1526 = vlaneseq
        %v1527 = vshrl.u32 %v1526, 7
        %v1528 = vsub.s32 2, %v1527
        %v1529 = vrot.slane %v1516, %v1528
        %v1530 = vlaneseq
        %v1531 = vshrl.u32 %v1530, 7
        %v1532 = vsub.s32 3, %v1531
        %v1533 = vrot.slane %v1516, %v1532
        %v1538 = vmul.f32 %v1514, %v1521
        %v1539 = vmul.f32 %v1513, %v1525
        %v1540 = vmul.f32 %v1512, %v1529
        %v1541 = vmul.f32 %v1511, %v1533
        %v1542 = vpack.c.bf16 %v1538, %v1538
        %v1543 = vpack.c.bf16 %v1539, %v1539
        %v1544 = vpack.c.bf16 %v1540, %v1540
        %v1545 = vpack.c.bf16 %v1541, %v1541
        %s1546 = scalar_lea.vmem %s2, 28
        %v1547 = vld [vmem:[%s1546] sm:$0xf]
        %v1549 = vsel %vm571, %v1547, 0
        %v1552 = vsel %vm575, %v1542, 0
        %v1555 = vsel %vm575, %v1543, 0
        %v1558 = vsel %vm575, %v1544, 0
        %v1561 = vsel %vm575, %v1545, 0
        %1563 = vmatprep.subr.bf16.mxu0 %v1555
        %1564 = vmatpush1.bf16.msra.mxu0 %v1552
        %1565 = vmatprep.subr.bf16.mxu0 0
        %1566 = vmatpush1.bf16.msra.mxu0 0
        %1567 = vmatprep.subr.bf16.mxu0 0
        %1568 = vmatpush1.bf16.msra.mxu0 0
        %1569 = vmatprep.subr.bf16.mxu0 0
        %1570 = vmatpush1.bf16.msra.mxu0 0
        %1571 = vmatprep.subr.bf16.mxu0 0
        %1572 = vmatpush1.bf16.msra.mxu0 0
        %1573 = vmatprep.subr.bf16.mxu0 0
        %1574 = vmatpush1.bf16.msra.mxu0 0
        %1575 = vmatprep.subr.bf16.mxu0 0
        %1576 = vmatpush1.bf16.msra.mxu0 0
        %1577 = vmatprep.subr.bf16.mxu0 0
        %1578 = vmatpush1.bf16.msra.mxu0 0
        %1579 = vmatprep.subr.bf16.mxu0 0
        %1580 = vmatpush1.bf16.msra.mxu0 0
        %1581 = vmatprep.subr.bf16.mxu0 0
        %1582 = vmatpush1.bf16.msra.mxu0 0
        %1583 = vmatprep.subr.bf16.mxu0 0
        %1584 = vmatpush1.bf16.msra.mxu0 0
        %1585 = vmatprep.subr.bf16.mxu0 0
        %1586 = vmatpush1.bf16.msra.mxu0 0
        %1587 = vmatprep.subr.bf16.mxu0 0
        %1588 = vmatpush1.bf16.msra.mxu0 0
        %1589 = vmatprep.subr.bf16.mxu0 0
        %1590 = vmatpush1.bf16.msra.mxu0 0
        %1591 = vmatprep.subr.bf16.mxu0 0
        %1592 = vmatpush1.bf16.msra.mxu0 0
        %1593 = vmatprep.subr.bf16.mxu0 0
        %1594 = vmatpush1.bf16.msra.mxu0 0
        %1595 = vmatprep.mubr.bf16.mxu0 0
        %1596 = vmatmul.mubr.bf16.gmra.mrb[0].mxu0 %v1549
        %v1597 = vpop.f32.mrb[0].mxu0
        %v1598 = vadd.f32 0.0, %v1597
        %v1599 = vpop.f32.mrb[0].mxu0
        %v1600 = vadd.f32 0.0, %v1599
        %v1601 = vpop.f32.mrb[0].mxu0
        %v1602 = vpop.f32.mrb[0].mxu0
        %1603 = vdwg.mxu0
        %1604 = vmatprep.subr.bf16.mxu0 %v1561
        %1605 = vmatpush1.bf16.msra.mxu0 %v1558
        %1606 = vmatprep.subr.bf16.mxu0 0
        %1607 = vmatpush1.bf16.msra.mxu0 0
        %1608 = vmatprep.subr.bf16.mxu0 0
        %1609 = vmatpush1.bf16.msra.mxu0 0
        %1610 = vmatprep.subr.bf16.mxu0 0
        %1611 = vmatpush1.bf16.msra.mxu0 0
        %1612 = vmatprep.subr.bf16.mxu0 0
        %1613 = vmatpush1.bf16.msra.mxu0 0
        %1614 = vmatprep.subr.bf16.mxu0 0
        %1615 = vmatpush1.bf16.msra.mxu0 0
        %1616 = vmatprep.subr.bf16.mxu0 0
        %1617 = vmatpush1.bf16.msra.mxu0 0
        %1618 = vmatprep.subr.bf16.mxu0 0
        %1619 = vmatpush1.bf16.msra.mxu0 0
        %1620 = vmatprep.subr.bf16.mxu0 0
        %1621 = vmatpush1.bf16.msra.mxu0 0
        %1622 = vmatprep.subr.bf16.mxu0 0
        %1623 = vmatpush1.bf16.msra.mxu0 0
        %1624 = vmatprep.subr.bf16.mxu0 0
        %1625 = vmatpush1.bf16.msra.mxu0 0
        %1626 = vmatprep.subr.bf16.mxu0 0
        %1627 = vmatpush1.bf16.msra.mxu0 0
        %1628 = vmatprep.subr.bf16.mxu0 0
        %1629 = vmatpush1.bf16.msra.mxu0 0
        %1630 = vmatprep.subr.bf16.mxu0 0
        %1631 = vmatpush1.bf16.msra.mxu0 0
        %1632 = vmatprep.subr.bf16.mxu0 0
        %1633 = vmatpush1.bf16.msra.mxu0 0
        %1634 = vmatprep.subr.bf16.mxu0 0
        %1635 = vmatpush1.bf16.msra.mxu0 0
        %1636 = vmatprep.mubr.bf16.mxu0 0
        %1637 = vmatmul.mubr.bf16.gmra.mrb[0].mxu0 %v1549
        %v1638 = vpop.f32.mrb[0].mxu0
        %v1639 = vadd.f32 0.0, %v1638
        %v1640 = vpop.f32.mrb[0].mxu0
        %v1641 = vadd.f32 0.0, %v1640
        %v1642 = vpop.f32.mrb[0].mxu0
        %v1643 = vpop.f32.mrb[0].mxu0
        %1644 = vdwg.mxu0
        %v1645 = vadd.f32 %v1498, %v1598
        %v1646 = vadd.f32 %v1499, %v1600
        %v1647 = vadd.f32 %v1500, %v1639
        %v1648 = vadd.f32 %v1501, %v1641
        %1649 = vrot.lane.b32.xlu0 %v475, 55
        %v1650 = vpop.permute.xlu0 %1649
        %1651 = vrot.lane.b32.xlu0 %v476, 55
        %v1652 = vpop.permute.xlu0 %1651
        %1653 = vrot.lane.b32.xlu0 %v477, 55
        %v1654 = vpop.permute.xlu0 %1653
        %1655 = vrot.lane.b32.xlu0 %v478, 55
        %v1656 = vpop.permute.xlu0 %1655
        %vm1657 = vcmp.lt.s32.totalorder %v488, 55
        %v1658 = vsel %vm1657, %v1654, %v1656
        %v1659 = vsel %vm1657, %v1652, %v1654
        %v1660 = vsel %vm1657, %v1650, %v1652
        %v1661 = vsel %vm1657, %v1656, %v1650
        %s1662 = scalar_lea.vmem %s7, 32
        %v1663 = vld [vmem:[%s1662] sm:$0xf]
        %v1665 = vlaneseq
        %v1666 = vshrl.u32 %v1665, 7
        %v1667 = vsub.s32 0, %v1666
        %v1668 = vrot.slane %v1663, %v1667
        %v1669 = vlaneseq
        %v1670 = vshrl.u32 %v1669, 7
        %v1671 = vsub.s32 1, %v1670
        %v1672 = vrot.slane %v1663, %v1671
        %v1673 = vlaneseq
        %v1674 = vshrl.u32 %v1673, 7
        %v1675 = vsub.s32 2, %v1674
        %v1676 = vrot.slane %v1663, %v1675
        %v1677 = vlaneseq
        %v1678 = vshrl.u32 %v1677, 7
        %v1679 = vsub.s32 3, %v1678
        %v1680 = vrot.slane %v1663, %v1679
        %v1685 = vmul.f32 %v1661, %v1668
        %v1686 = vmul.f32 %v1660, %v1672
        %v1687 = vmul.f32 %v1659, %v1676
        %v1688 = vmul.f32 %v1658, %v1680
        %v1689 = vpack.c.bf16 %v1685, %v1685
        %v1690 = vpack.c.bf16 %v1686, %v1686
        %v1691 = vpack.c.bf16 %v1687, %v1687
        %v1692 = vpack.c.bf16 %v1688, %v1688
        %s1693 = scalar_lea.vmem %s2, 32
        %v1694 = vld [vmem:[%s1693] sm:$0xf]
        %v1696 = vsel %vm571, %v1694, 0
        %v1699 = vsel %vm575, %v1689, 0
        %v1702 = vsel %vm575, %v1690, 0
        %v1705 = vsel %vm575, %v1691, 0
        %v1708 = vsel %vm575, %v1692, 0
        %1710 = vmatprep.subr.bf16.mxu0 %v1702
        %1711 = vmatpush1.bf16.msra.mxu0 %v1699
        %1712 = vmatprep.subr.bf16.mxu0 0
        %1713 = vmatpush1.bf16.msra.mxu0 0
        %1714 = vmatprep.subr.bf16.mxu0 0
        %1715 = vmatpush1.bf16.msra.mxu0 0
        %1716 = vmatprep.subr.bf16.mxu0 0
        %1717 = vmatpush1.bf16.msra.mxu0 0
        %1718 = vmatprep.subr.bf16.mxu0 0
        %1719 = vmatpush1.bf16.msra.mxu0 0
        %1720 = vmatprep.subr.bf16.mxu0 0
        %1721 = vmatpush1.bf16.msra.mxu0 0
        %1722 = vmatprep.subr.bf16.mxu0 0
        %1723 = vmatpush1.bf16.msra.mxu0 0
        %1724 = vmatprep.subr.bf16.mxu0 0
        %1725 = vmatpush1.bf16.msra.mxu0 0
        %1726 = vmatprep.subr.bf16.mxu0 0
        %1727 = vmatpush1.bf16.msra.mxu0 0
        %1728 = vmatprep.subr.bf16.mxu0 0
        %1729 = vmatpush1.bf16.msra.mxu0 0
        %1730 = vmatprep.subr.bf16.mxu0 0
        %1731 = vmatpush1.bf16.msra.mxu0 0
        %1732 = vmatprep.subr.bf16.mxu0 0
        %1733 = vmatpush1.bf16.msra.mxu0 0
        %1734 = vmatprep.subr.bf16.mxu0 0
        %1735 = vmatpush1.bf16.msra.mxu0 0
        %1736 = vmatprep.subr.bf16.mxu0 0
        %1737 = vmatpush1.bf16.msra.mxu0 0
        %1738 = vmatprep.subr.bf16.mxu0 0
        %1739 = vmatpush1.bf16.msra.mxu0 0
        %1740 = vmatprep.subr.bf16.mxu0 0
        %1741 = vmatpush1.bf16.msra.mxu0 0
        %1742 = vmatprep.mubr.bf16.mxu0 0
        %1743 = vmatmul.mubr.bf16.gmra.mrb[0].mxu0 %v1696
        %v1744 = vpop.f32.mrb[0].mxu0
        %v1745 = vadd.f32 0.0, %v1744
        %v1746 = vpop.f32.mrb[0].mxu0
        %v1747 = vadd.f32 0.0, %v1746
        %v1748 = vpop.f32.mrb[0].mxu0
        %v1749 = vpop.f32.mrb[0].mxu0
        %1750 = vdwg.mxu0
        %1751 = vmatprep.subr.bf16.mxu0 %v1708
        %1752 = vmatpush1.bf16.msra.mxu0 %v1705
        %1753 = vmatprep.subr.bf16.mxu0 0
        %1754 = vmatpush1.bf16.msra.mxu0 0
        %1755 = vmatprep.subr.bf16.mxu0 0
        %1756 = vmatpush1.bf16.msra.mxu0 0
        %1757 = vmatprep.subr.bf16.mxu0 0
        %1758 = vmatpush1.bf16.msra.mxu0 0
        %1759 = vmatprep.subr.bf16.mxu0 0
        %1760 = vmatpush1.bf16.msra.mxu0 0
        %1761 = vmatprep.subr.bf16.mxu0 0
        %1762 = vmatpush1.bf16.msra.mxu0 0
        %1763 = vmatprep.subr.bf16.mxu0 0
        %1764 = vmatpush1.bf16.msra.mxu0 0
        %1765 = vmatprep.subr.bf16.mxu0 0
        %1766 = vmatpush1.bf16.msra.mxu0 0
        %1767 = vmatprep.subr.bf16.mxu0 0
        %1768 = vmatpush1.bf16.msra.mxu0 0
        %1769 = vmatprep.subr.bf16.mxu0 0
        %1770 = vmatpush1.bf16.msra.mxu0 0
        %1771 = vmatprep.subr.bf16.mxu0 0
        %1772 = vmatpush1.bf16.msra.mxu0 0
        %1773 = vmatprep.subr.bf16.mxu0 0
        %1774 = vmatpush1.bf16.msra.mxu0 0
        %1775 = vmatprep.subr.bf16.mxu0 0
        %1776 = vmatpush1.bf16.msra.mxu0 0
        %1777 = vmatprep.subr.bf16.mxu0 0
        %1778 = vmatpush1.bf16.msra.mxu0 0
        %1779 = vmatprep.subr.bf16.mxu0 0
        %1780 = vmatpush1.bf16.msra.mxu0 0
        %1781 = vmatprep.subr.bf16.mxu0 0
        %1782 = vmatpush1.bf16.msra.mxu0 0
        %1783 = vmatprep.mubr.bf16.mxu0 0
        %1784 = vmatmul.mubr.bf16.gmra.mrb[0].mxu0 %v1696
        %v1785 = vpop.f32.mrb[0].mxu0
        %v1786 = vadd.f32 0.0, %v1785
        %v1787 = vpop.f32.mrb[0].mxu0
        %v1788 = vadd.f32 0.0, %v1787
        %v1789 = vpop.f32.mrb[0].mxu0
        %v1790 = vpop.f32.mrb[0].mxu0
        %1791 = vdwg.mxu0
        %v1792 = vadd.f32 %v1645, %v1745
        %v1793 = vadd.f32 %v1646, %v1747
        %v1794 = vadd.f32 %v1647, %v1786
        %v1795 = vadd.f32 %v1648, %v1788
        %1796 = vrot.lane.b32.xlu0 %v475, 9
        %v1797 = vpop.permute.xlu0 %1796
        %1798 = vrot.lane.b32.xlu0 %v476, 9
        %v1799 = vpop.permute.xlu0 %1798
        %1800 = vrot.lane.b32.xlu0 %v477, 9
        %v1801 = vpop.permute.xlu0 %1800
        %1802 = vrot.lane.b32.xlu0 %v478, 9
        %v1803 = vpop.permute.xlu0 %1802
        %vm1804 = vcmp.lt.s32.totalorder %v488, 9
        %v1805 = vsel %vm1804, %v1801, %v1803
        %v1806 = vsel %vm1804, %v1799, %v1801
        %v1807 = vsel %vm1804, %v1797, %v1799
        %v1808 = vsel %vm1804, %v1803, %v1797
        %s1809 = scalar_lea.vmem %s7, 36
        %v1810 = vld [vmem:[%s1809] sm:$0xf]
        %v1812 = vlaneseq
        %v1813 = vshrl.u32 %v1812, 7
        %v1814 = vsub.s32 0, %v1813
        %v1815 = vrot.slane %v1810, %v1814
        %v1816 = vlaneseq
        %v1817 = vshrl.u32 %v1816, 7
        %v1818 = vsub.s32 1, %v1817
        %v1819 = vrot.slane %v1810, %v1818
        %v1820 = vlaneseq
        %v1821 = vshrl.u32 %v1820, 7
        %v1822 = vsub.s32 2, %v1821
        %v1823 = vrot.slane %v1810, %v1822
        %v1824 = vlaneseq
        %v1825 = vshrl.u32 %v1824, 7
        %v1826 = vsub.s32 3, %v1825
        %v1827 = vrot.slane %v1810, %v1826
        %v1832 = vmul.f32 %v1808, %v1815
        %v1833 = vmul.f32 %v1807, %v1819
        %v1834 = vmul.f32 %v1806, %v1823
        %v1835 = vmul.f32 %v1805, %v1827
        %v1836 = vpack.c.bf16 %v1832, %v1832
        %v1837 = vpack.c.bf16 %v1833, %v1833
        %v1838 = vpack.c.bf16 %v1834, %v1834
        %v1839 = vpack.c.bf16 %v1835, %v1835
        %s1840 = scalar_lea.vmem %s2, 36
        %v1841 = vld [vmem:[%s1840] sm:$0xf]
        %v1843 = vsel %vm571, %v1841, 0
        %v1846 = vsel %vm575, %v1836, 0
        %v1849 = vsel %vm575, %v1837, 0
        %v1852 = vsel %vm575, %v1838, 0
        %v1855 = vsel %vm575, %v1839, 0
        %1857 = vmatprep.subr.bf16.mxu0 %v1849
        %1858 = vmatpush1.bf16.msra.mxu0 %v1846
        %1859 = vmatprep.subr.bf16.mxu0 0
        %1860 = vmatpush1.bf16.msra.mxu0 0
        %1861 = vmatprep.subr.bf16.mxu0 0
        %1862 = vmatpush1.bf16.msra.mxu0 0
        %1863 = vmatprep.subr.bf16.mxu0 0
        %1864 = vmatpush1.bf16.msra.mxu0 0
        %1865 = vmatprep.subr.bf16.mxu0 0
        %1866 = vmatpush1.bf16.msra.mxu0 0
        %1867 = vmatprep.subr.bf16.mxu0 0
        %1868 = vmatpush1.bf16.msra.mxu0 0
        %1869 = vmatprep.subr.bf16.mxu0 0
        %1870 = vmatpush1.bf16.msra.mxu0 0
        %1871 = vmatprep.subr.bf16.mxu0 0
        %1872 = vmatpush1.bf16.msra.mxu0 0
        %1873 = vmatprep.subr.bf16.mxu0 0
        %1874 = vmatpush1.bf16.msra.mxu0 0
        %1875 = vmatprep.subr.bf16.mxu0 0
        %1876 = vmatpush1.bf16.msra.mxu0 0
        %1877 = vmatprep.subr.bf16.mxu0 0
        %1878 = vmatpush1.bf16.msra.mxu0 0
        %1879 = vmatprep.subr.bf16.mxu0 0
        %1880 = vmatpush1.bf16.msra.mxu0 0
        %1881 = vmatprep.subr.bf16.mxu0 0
        %1882 = vmatpush1.bf16.msra.mxu0 0
        %1883 = vmatprep.subr.bf16.mxu0 0
        %1884 = vmatpush1.bf16.msra.mxu0 0
        %1885 = vmatprep.subr.bf16.mxu0 0
        %1886 = vmatpush1.bf16.msra.mxu0 0
        %1887 = vmatprep.subr.bf16.mxu0 0
        %1888 = vmatpush1.bf16.msra.mxu0 0
        %1889 = vmatprep.mubr.bf16.mxu0 0
        %1890 = vmatmul.mubr.bf16.gmra.mrb[0].mxu0 %v1843
        %v1891 = vpop.f32.mrb[0].mxu0
        %v1892 = vadd.f32 0.0, %v1891
        %v1893 = vpop.f32.mrb[0].mxu0
        %v1894 = vadd.f32 0.0, %v1893
        %v1895 = vpop.f32.mrb[0].mxu0
        %v1896 = vpop.f32.mrb[0].mxu0
        %1897 = vdwg.mxu0
        %1898 = vmatprep.subr.bf16.mxu0 %v1855
        %1899 = vmatpush1.bf16.msra.mxu0 %v1852
        %1900 = vmatprep.subr.bf16.mxu0 0
        %1901 = vmatpush1.bf16.msra.mxu0 0
        %1902 = vmatprep.subr.bf16.mxu0 0
        %1903 = vmatpush1.bf16.msra.mxu0 0
        %1904 = vmatprep.subr.bf16.mxu0 0
        %1905 = vmatpush1.bf16.msra.mxu0 0
        %1906 = vmatprep.subr.bf16.mxu0 0
        %1907 = vmatpush1.bf16.msra.mxu0 0
        %1908 = vmatprep.subr.bf16.mxu0 0
        %1909 = vmatpush1.bf16.msra.mxu0 0
        %1910 = vmatprep.subr.bf16.mxu0 0
        %1911 = vmatpush1.bf16.msra.mxu0 0
        %1912 = vmatprep.subr.bf16.mxu0 0
        %1913 = vmatpush1.bf16.msra.mxu0 0
        %1914 = vmatprep.subr.bf16.mxu0 0
        %1915 = vmatpush1.bf16.msra.mxu0 0
        %1916 = vmatprep.subr.bf16.mxu0 0
        %1917 = vmatpush1.bf16.msra.mxu0 0
        %1918 = vmatprep.subr.bf16.mxu0 0
        %1919 = vmatpush1.bf16.msra.mxu0 0
        %1920 = vmatprep.subr.bf16.mxu0 0
        %1921 = vmatpush1.bf16.msra.mxu0 0
        %1922 = vmatprep.subr.bf16.mxu0 0
        %1923 = vmatpush1.bf16.msra.mxu0 0
        %1924 = vmatprep.subr.bf16.mxu0 0
        %1925 = vmatpush1.bf16.msra.mxu0 0
        %1926 = vmatprep.subr.bf16.mxu0 0
        %1927 = vmatpush1.bf16.msra.mxu0 0
        %1928 = vmatprep.subr.bf16.mxu0 0
        %1929 = vmatpush1.bf16.msra.mxu0 0
        %1930 = vmatprep.mubr.bf16.mxu0 0
        %1931 = vmatmul.mubr.bf16.gmra.mrb[0].mxu0 %v1843
        %v1932 = vpop.f32.mrb[0].mxu0
        %v1933 = vadd.f32 0.0, %v1932
        %v1934 = vpop.f32.mrb[0].mxu0
        %v1935 = vadd.f32 0.0, %v1934
        %v1936 = vpop.f32.mrb[0].mxu0
        %v1937 = vpop.f32.mrb[0].mxu0
        %1938 = vdwg.mxu0
        %v1939 = vadd.f32 %v1792, %v1892
        %v1940 = vadd.f32 %v1793, %v1894
        %v1941 = vadd.f32 %v1794, %v1933
        %v1942 = vadd.f32 %v1795, %v1935
        %1943 = vrot.lane.b32.xlu0 %v475, 8
        %v1944 = vpop.permute.xlu0 %1943
        %1945 = vrot.lane.b32.xlu0 %v476, 8
        %v1946 = vpop.permute.xlu0 %1945
        %1947 = vrot.lane.b32.xlu0 %v477, 8
        %v1948 = vpop.permute.xlu0 %1947
        %1949 = vrot.lane.b32.xlu0 %v478, 8
        %v1950 = vpop.permute.xlu0 %1949
        %vm1951 = vcmp.lt.s32.totalorder %v488, 8
        %v1952 = vsel %vm1951, %v1948, %v1950
        %v1953 = vsel %vm1951, %v1946, %v1948
        %v1954 = vsel %vm1951, %v1944, %v1946
        %v1955 = vsel %vm1951, %v1950, %v1944
        %s1956 = scalar_lea.vmem %s7, 40
        %v1957 = vld [vmem:[%s1956] sm:$0xf]
        %v1959 = vlaneseq
        %v1960 = vshrl.u32 %v1959, 7
        %v1961 = vsub.s32 0, %v1960
        %v1962 = vrot.slane %v1957, %v1961
        %v1963 = vlaneseq
        %v1964 = vshrl.u32 %v1963, 7
        %v1965 = vsub.s32 1, %v1964
        %v1966 = vrot.slane %v1957, %v1965
        %v1967 = vlaneseq
        %v1968 = vshrl.u32 %v1967, 7
        %v1969 = vsub.s32 2, %v1968
        %v1970 = vrot.slane %v1957, %v1969
        %v1971 = vlaneseq
        %v1972 = vshrl.u32 %v1971, 7
        %v1973 = vsub.s32 3, %v1972
        %v1974 = vrot.slane %v1957, %v1973
        %v1979 = vmul.f32 %v1955, %v1962
        %v1980 = vmul.f32 %v1954, %v1966
        %v1981 = vmul.f32 %v1953, %v1970
        %v1982 = vmul.f32 %v1952, %v1974
        %v1983 = vpack.c.bf16 %v1979, %v1979
        %v1984 = vpack.c.bf16 %v1980, %v1980
        %v1985 = vpack.c.bf16 %v1981, %v1981
        %v1986 = vpack.c.bf16 %v1982, %v1982
        %s1987 = scalar_lea.vmem %s2, 40
        %v1988 = vld [vmem:[%s1987] sm:$0xf]
        %v1990 = vsel %vm571, %v1988, 0
        %v1993 = vsel %vm575, %v1983, 0
        %v1996 = vsel %vm575, %v1984, 0
        %v1999 = vsel %vm575, %v1985, 0
        %v2002 = vsel %vm575, %v1986, 0
        %2004 = vmatprep.subr.bf16.mxu0 %v1996
        %2005 = vmatpush1.bf16.msra.mxu0 %v1993
        %2006 = vmatprep.subr.bf16.mxu0 0
        %2007 = vmatpush1.bf16.msra.mxu0 0
        %2008 = vmatprep.subr.bf16.mxu0 0
        %2009 = vmatpush1.bf16.msra.mxu0 0
        %2010 = vmatprep.subr.bf16.mxu0 0
        %2011 = vmatpush1.bf16.msra.mxu0 0
        %2012 = vmatprep.subr.bf16.mxu0 0
        %2013 = vmatpush1.bf16.msra.mxu0 0
        %2014 = vmatprep.subr.bf16.mxu0 0
        %2015 = vmatpush1.bf16.msra.mxu0 0
        %2016 = vmatprep.subr.bf16.mxu0 0
        %2017 = vmatpush1.bf16.msra.mxu0 0
        %2018 = vmatprep.subr.bf16.mxu0 0
        %2019 = vmatpush1.bf16.msra.mxu0 0
        %2020 = vmatprep.subr.bf16.mxu0 0
        %2021 = vmatpush1.bf16.msra.mxu0 0
        %2022 = vmatprep.subr.bf16.mxu0 0
        %2023 = vmatpush1.bf16.msra.mxu0 0
        %2024 = vmatprep.subr.bf16.mxu0 0
        %2025 = vmatpush1.bf16.msra.mxu0 0
        %2026 = vmatprep.subr.bf16.mxu0 0
        %2027 = vmatpush1.bf16.msra.mxu0 0
        %2028 = vmatprep.subr.bf16.mxu0 0
        %2029 = vmatpush1.bf16.msra.mxu0 0
        %2030 = vmatprep.subr.bf16.mxu0 0
        %2031 = vmatpush1.bf16.msra.mxu0 0
        %2032 = vmatprep.subr.bf16.mxu0 0
        %2033 = vmatpush1.bf16.msra.mxu0 0
        %2034 = vmatprep.subr.bf16.mxu0 0
        %2035 = vmatpush1.bf16.msra.mxu0 0
        %2036 = vmatprep.mubr.bf16.mxu0 0
        %2037 = vmatmul.mubr.bf16.gmra.mrb[0].mxu0 %v1990
        %v2038 = vpop.f32.mrb[0].mxu0
        %v2039 = vadd.f32 0.0, %v2038
        %v2040 = vpop.f32.mrb[0].mxu0
        %v2041 = vadd.f32 0.0, %v2040
        %v2042 = vpop.f32.mrb[0].mxu0
        %v2043 = vpop.f32.mrb[0].mxu0
        %2044 = vdwg.mxu0
        %2045 = vmatprep.subr.bf16.mxu0 %v2002
        %2046 = vmatpush1.bf16.msra.mxu0 %v1999
        %2047 = vmatprep.subr.bf16.mxu0 0
        %2048 = vmatpush1.bf16.msra.mxu0 0
        %2049 = vmatprep.subr.bf16.mxu0 0
        %2050 = vmatpush1.bf16.msra.mxu0 0
        %2051 = vmatprep.subr.bf16.mxu0 0
        %2052 = vmatpush1.bf16.msra.mxu0 0
        %2053 = vmatprep.subr.bf16.mxu0 0
        %2054 = vmatpush1.bf16.msra.mxu0 0
        %2055 = vmatprep.subr.bf16.mxu0 0
        %2056 = vmatpush1.bf16.msra.mxu0 0
        %2057 = vmatprep.subr.bf16.mxu0 0
        %2058 = vmatpush1.bf16.msra.mxu0 0
        %2059 = vmatprep.subr.bf16.mxu0 0
        %2060 = vmatpush1.bf16.msra.mxu0 0
        %2061 = vmatprep.subr.bf16.mxu0 0
        %2062 = vmatpush1.bf16.msra.mxu0 0
        %2063 = vmatprep.subr.bf16.mxu0 0
        %2064 = vmatpush1.bf16.msra.mxu0 0
        %2065 = vmatprep.subr.bf16.mxu0 0
        %2066 = vmatpush1.bf16.msra.mxu0 0
        %2067 = vmatprep.subr.bf16.mxu0 0
        %2068 = vmatpush1.bf16.msra.mxu0 0
        %2069 = vmatprep.subr.bf16.mxu0 0
        %2070 = vmatpush1.bf16.msra.mxu0 0
        %2071 = vmatprep.subr.bf16.mxu0 0
        %2072 = vmatpush1.bf16.msra.mxu0 0
        %2073 = vmatprep.subr.bf16.mxu0 0
        %2074 = vmatpush1.bf16.msra.mxu0 0
        %2075 = vmatprep.subr.bf16.mxu0 0
        %2076 = vmatpush1.bf16.msra.mxu0 0
        %2077 = vmatprep.mubr.bf16.mxu0 0
        %2078 = vmatmul.mubr.bf16.gmra.mrb[0].mxu0 %v1990
        %v2079 = vpop.f32.mrb[0].mxu0
        %v2080 = vadd.f32 0.0, %v2079
        %v2081 = vpop.f32.mrb[0].mxu0
        %v2082 = vadd.f32 0.0, %v2081
        %v2083 = vpop.f32.mrb[0].mxu0
        %v2084 = vpop.f32.mrb[0].mxu0
        %2085 = vdwg.mxu0
        %v2086 = vadd.f32 %v1939, %v2039
        %v2087 = vadd.f32 %v1940, %v2041
        %v2088 = vadd.f32 %v1941, %v2080
        %v2089 = vadd.f32 %v1942, %v2082
        %2090 = vrot.lane.b32.xlu0 %v475, 7
        %v2091 = vpop.permute.xlu0 %2090
        %2092 = vrot.lane.b32.xlu0 %v476, 7
        %v2093 = vpop.permute.xlu0 %2092
        %2094 = vrot.lane.b32.xlu0 %v477, 7
        %v2095 = vpop.permute.xlu0 %2094
        %2096 = vrot.lane.b32.xlu0 %v478, 7
        %v2097 = vpop.permute.xlu0 %2096
        %vm2098 = vcmp.lt.s32.totalorder %v488, 7
        %v2099 = vsel %vm2098, %v2095, %v2097
        %v2100 = vsel %vm2098, %v2093, %v2095
        %v2101 = vsel %vm2098, %v2091, %v2093
        %v2102 = vsel %vm2098, %v2097, %v2091
        %s2103 = scalar_lea.vmem %s7, 44
        %v2104 = vld [vmem:[%s2103] sm:$0xf]
        %v2106 = vlaneseq
        %v2107 = vshrl.u32 %v2106, 7
        %v2108 = vsub.s32 0, %v2107
        %v2109 = vrot.slane %v2104, %v2108
        %v2110 = vlaneseq
        %v2111 = vshrl.u32 %v2110, 7
        %v2112 = vsub.s32 1, %v2111
        %v2113 = vrot.slane %v2104, %v2112
        %v2114 = vlaneseq
        %v2115 = vshrl.u32 %v2114, 7
        %v2116 = vsub.s32 2, %v2115
        %v2117 = vrot.slane %v2104, %v2116
        %v2118 = vlaneseq
        %v2119 = vshrl.u32 %v2118, 7
        %v2120 = vsub.s32 3, %v2119
        %v2121 = vrot.slane %v2104, %v2120
        %v2126 = vmul.f32 %v2102, %v2109
        %v2127 = vmul.f32 %v2101, %v2113
        %v2128 = vmul.f32 %v2100, %v2117
        %v2129 = vmul.f32 %v2099, %v2121
        %v2130 = vpack.c.bf16 %v2126, %v2126
        %v2131 = vpack.c.bf16 %v2127, %v2127
        %v2132 = vpack.c.bf16 %v2128, %v2128
        %v2133 = vpack.c.bf16 %v2129, %v2129
        %s2134 = scalar_lea.vmem %s2, 44
        %v2135 = vld [vmem:[%s2134] sm:$0xf]
        %v2137 = vsel %vm571, %v2135, 0
        %v2140 = vsel %vm575, %v2130, 0
        %v2143 = vsel %vm575, %v2131, 0
        %v2146 = vsel %vm575, %v2132, 0
        %v2149 = vsel %vm575, %v2133, 0
        %2151 = vmatprep.subr.bf16.mxu0 %v2143
        %2152 = vmatpush1.bf16.msra.mxu0 %v2140
        %2153 = vmatprep.subr.bf16.mxu0 0
        %2154 = vmatpush1.bf16.msra.mxu0 0
        %2155 = vmatprep.subr.bf16.mxu0 0
        %2156 = vmatpush1.bf16.msra.mxu0 0
        %2157 = vmatprep.subr.bf16.mxu0 0
        %2158 = vmatpush1.bf16.msra.mxu0 0
        %2159 = vmatprep.subr.bf16.mxu0 0
        %2160 = vmatpush1.bf16.msra.mxu0 0
        %2161 = vmatprep.subr.bf16.mxu0 0
        %2162 = vmatpush1.bf16.msra.mxu0 0
        %2163 = vmatprep.subr.bf16.mxu0 0
        %2164 = vmatpush1.bf16.msra.mxu0 0
        %2165 = vmatprep.subr.bf16.mxu0 0
        %2166 = vmatpush1.bf16.msra.mxu0 0
        %2167 = vmatprep.subr.bf16.mxu0 0
        %2168 = vmatpush1.bf16.msra.mxu0 0
        %2169 = vmatprep.subr.bf16.mxu0 0
        %2170 = vmatpush1.bf16.msra.mxu0 0
        %2171 = vmatprep.subr.bf16.mxu0 0
        %2172 = vmatpush1.bf16.msra.mxu0 0
        %2173 = vmatprep.subr.bf16.mxu0 0
        %2174 = vmatpush1.bf16.msra.mxu0 0
        %2175 = vmatprep.subr.bf16.mxu0 0
        %2176 = vmatpush1.bf16.msra.mxu0 0
        %2177 = vmatprep.subr.bf16.mxu0 0
        %2178 = vmatpush1.bf16.msra.mxu0 0
        %2179 = vmatprep.subr.bf16.mxu0 0
        %2180 = vmatpush1.bf16.msra.mxu0 0
        %2181 = vmatprep.subr.bf16.mxu0 0
        %2182 = vmatpush1.bf16.msra.mxu0 0
        %2183 = vmatprep.mubr.bf16.mxu0 0
        %2184 = vmatmul.mubr.bf16.gmra.mrb[0].mxu0 %v2137
        %v2185 = vpop.f32.mrb[0].mxu0
        %v2186 = vadd.f32 0.0, %v2185
        %v2187 = vpop.f32.mrb[0].mxu0
        %v2188 = vadd.f32 0.0, %v2187
        %v2189 = vpop.f32.mrb[0].mxu0
        %v2190 = vpop.f32.mrb[0].mxu0
        %2191 = vdwg.mxu0
        %2192 = vmatprep.subr.bf16.mxu0 %v2149
        %2193 = vmatpush1.bf16.msra.mxu0 %v2146
        %2194 = vmatprep.subr.bf16.mxu0 0
        %2195 = vmatpush1.bf16.msra.mxu0 0
        %2196 = vmatprep.subr.bf16.mxu0 0
        %2197 = vmatpush1.bf16.msra.mxu0 0
        %2198 = vmatprep.subr.bf16.mxu0 0
        %2199 = vmatpush1.bf16.msra.mxu0 0
        %2200 = vmatprep.subr.bf16.mxu0 0
        %2201 = vmatpush1.bf16.msra.mxu0 0
        %2202 = vmatprep.subr.bf16.mxu0 0
        %2203 = vmatpush1.bf16.msra.mxu0 0
        %2204 = vmatprep.subr.bf16.mxu0 0
        %2205 = vmatpush1.bf16.msra.mxu0 0
        %2206 = vmatprep.subr.bf16.mxu0 0
        %2207 = vmatpush1.bf16.msra.mxu0 0
        %2208 = vmatprep.subr.bf16.mxu0 0
        %2209 = vmatpush1.bf16.msra.mxu0 0
        %2210 = vmatprep.subr.bf16.mxu0 0
        %2211 = vmatpush1.bf16.msra.mxu0 0
        %2212 = vmatprep.subr.bf16.mxu0 0
        %2213 = vmatpush1.bf16.msra.mxu0 0
        %2214 = vmatprep.subr.bf16.mxu0 0
        %2215 = vmatpush1.bf16.msra.mxu0 0
        %2216 = vmatprep.subr.bf16.mxu0 0
        %2217 = vmatpush1.bf16.msra.mxu0 0
        %2218 = vmatprep.subr.bf16.mxu0 0
        %2219 = vmatpush1.bf16.msra.mxu0 0
        %2220 = vmatprep.subr.bf16.mxu0 0
        %2221 = vmatpush1.bf16.msra.mxu0 0
        %2222 = vmatprep.subr.bf16.mxu0 0
        %2223 = vmatpush1.bf16.msra.mxu0 0
        %2224 = vmatprep.mubr.bf16.mxu0 0
        %2225 = vmatmul.mubr.bf16.gmra.mrb[0].mxu0 %v2137
        %v2226 = vpop.f32.mrb[0].mxu0
        %v2227 = vadd.f32 0.0, %v2226
        %v2228 = vpop.f32.mrb[0].mxu0
        %v2229 = vadd.f32 0.0, %v2228
        %v2230 = vpop.f32.mrb[0].mxu0
        %v2231 = vpop.f32.mrb[0].mxu0
        %2232 = vdwg.mxu0
        %v2233 = vadd.f32 %v2086, %v2186
        %v2234 = vadd.f32 %v2087, %v2188
        %v2235 = vadd.f32 %v2088, %v2227
        %v2236 = vadd.f32 %v2089, %v2229
        %2237 = vrot.lane.b32.xlu0 %v475, 1
        %v2238 = vpop.permute.xlu0 %2237
        %2239 = vrot.lane.b32.xlu0 %v476, 1
        %v2240 = vpop.permute.xlu0 %2239
        %2241 = vrot.lane.b32.xlu0 %v477, 1
        %v2242 = vpop.permute.xlu0 %2241
        %2243 = vrot.lane.b32.xlu0 %v478, 1
        %v2244 = vpop.permute.xlu0 %2243
        %vm2245 = vcmp.lt.s32.totalorder %v488, 1
        %v2246 = vsel %vm2245, %v2242, %v2244
        %v2247 = vsel %vm2245, %v2240, %v2242
        %v2248 = vsel %vm2245, %v2238, %v2240
        %v2249 = vsel %vm2245, %v2244, %v2238
        %s2250 = scalar_lea.vmem %s7, 48
        %v2251 = vld [vmem:[%s2250] sm:$0xf]
        %v2253 = vlaneseq
        %v2254 = vshrl.u32 %v2253, 7
        %v2255 = vsub.s32 0, %v2254
        %v2256 = vrot.slane %v2251, %v2255
        %v2257 = vlaneseq
        %v2258 = vshrl.u32 %v2257, 7
        %v2259 = vsub.s32 1, %v2258
        %v2260 = vrot.slane %v2251, %v2259
        %v2261 = vlaneseq
        %v2262 = vshrl.u32 %v2261, 7
        %v2263 = vsub.s32 2, %v2262
        %v2264 = vrot.slane %v2251, %v2263
        %v2265 = vlaneseq
        %v2266 = vshrl.u32 %v2265, 7
        %v2267 = vsub.s32 3, %v2266
        %v2268 = vrot.slane %v2251, %v2267
        %v2273 = vmul.f32 %v2249, %v2256
        %v2274 = vmul.f32 %v2248, %v2260
        %v2275 = vmul.f32 %v2247, %v2264
        %v2276 = vmul.f32 %v2246, %v2268
        %v2277 = vpack.c.bf16 %v2273, %v2273
        %v2278 = vpack.c.bf16 %v2274, %v2274
        %v2279 = vpack.c.bf16 %v2275, %v2275
        %v2280 = vpack.c.bf16 %v2276, %v2276
        %s2281 = scalar_lea.vmem %s2, 48
        %v2282 = vld [vmem:[%s2281] sm:$0xf]
        %v2284 = vsel %vm571, %v2282, 0
        %v2287 = vsel %vm575, %v2277, 0
        %v2290 = vsel %vm575, %v2278, 0
        %v2293 = vsel %vm575, %v2279, 0
        %v2296 = vsel %vm575, %v2280, 0
        %2298 = vmatprep.subr.bf16.mxu0 %v2290
        %2299 = vmatpush1.bf16.msra.mxu0 %v2287
        %2300 = vmatprep.subr.bf16.mxu0 0
        %2301 = vmatpush1.bf16.msra.mxu0 0
        %2302 = vmatprep.subr.bf16.mxu0 0
        %2303 = vmatpush1.bf16.msra.mxu0 0
        %2304 = vmatprep.subr.bf16.mxu0 0
        %2305 = vmatpush1.bf16.msra.mxu0 0
        %2306 = vmatprep.subr.bf16.mxu0 0
        %2307 = vmatpush1.bf16.msra.mxu0 0
        %2308 = vmatprep.subr.bf16.mxu0 0
        %2309 = vmatpush1.bf16.msra.mxu0 0
        %2310 = vmatprep.subr.bf16.mxu0 0
        %2311 = vmatpush1.bf16.msra.mxu0 0
        %2312 = vmatprep.subr.bf16.mxu0 0
        %2313 = vmatpush1.bf16.msra.mxu0 0
        %2314 = vmatprep.subr.bf16.mxu0 0
        %2315 = vmatpush1.bf16.msra.mxu0 0
        %2316 = vmatprep.subr.bf16.mxu0 0
        %2317 = vmatpush1.bf16.msra.mxu0 0
        %2318 = vmatprep.subr.bf16.mxu0 0
        %2319 = vmatpush1.bf16.msra.mxu0 0
        %2320 = vmatprep.subr.bf16.mxu0 0
        %2321 = vmatpush1.bf16.msra.mxu0 0
        %2322 = vmatprep.subr.bf16.mxu0 0
        %2323 = vmatpush1.bf16.msra.mxu0 0
        %2324 = vmatprep.subr.bf16.mxu0 0
        %2325 = vmatpush1.bf16.msra.mxu0 0
        %2326 = vmatprep.subr.bf16.mxu0 0
        %2327 = vmatpush1.bf16.msra.mxu0 0
        %2328 = vmatprep.subr.bf16.mxu0 0
        %2329 = vmatpush1.bf16.msra.mxu0 0
        %2330 = vmatprep.mubr.bf16.mxu0 0
        %2331 = vmatmul.mubr.bf16.gmra.mrb[0].mxu0 %v2284
        %v2332 = vpop.f32.mrb[0].mxu0
        %v2333 = vadd.f32 0.0, %v2332
        %v2334 = vpop.f32.mrb[0].mxu0
        %v2335 = vadd.f32 0.0, %v2334
        %v2336 = vpop.f32.mrb[0].mxu0
        %v2337 = vpop.f32.mrb[0].mxu0
        %2338 = vdwg.mxu0
        %2339 = vmatprep.subr.bf16.mxu0 %v2296
        %2340 = vmatpush1.bf16.msra.mxu0 %v2293
        %2341 = vmatprep.subr.bf16.mxu0 0
        %2342 = vmatpush1.bf16.msra.mxu0 0
        %2343 = vmatprep.subr.bf16.mxu0 0
        %2344 = vmatpush1.bf16.msra.mxu0 0
        %2345 = vmatprep.subr.bf16.mxu0 0
        %2346 = vmatpush1.bf16.msra.mxu0 0
        %2347 = vmatprep.subr.bf16.mxu0 0
        %2348 = vmatpush1.bf16.msra.mxu0 0
        %2349 = vmatprep.subr.bf16.mxu0 0
        %2350 = vmatpush1.bf16.msra.mxu0 0
        %2351 = vmatprep.subr.bf16.mxu0 0
        %2352 = vmatpush1.bf16.msra.mxu0 0
        %2353 = vmatprep.subr.bf16.mxu0 0
        %2354 = vmatpush1.bf16.msra.mxu0 0
        %2355 = vmatprep.subr.bf16.mxu0 0
        %2356 = vmatpush1.bf16.msra.mxu0 0
        %2357 = vmatprep.subr.bf16.mxu0 0
        %2358 = vmatpush1.bf16.msra.mxu0 0
        %2359 = vmatprep.subr.bf16.mxu0 0
        %2360 = vmatpush1.bf16.msra.mxu0 0
        %2361 = vmatprep.subr.bf16.mxu0 0
        %2362 = vmatpush1.bf16.msra.mxu0 0
        %2363 = vmatprep.subr.bf16.mxu0 0
        %2364 = vmatpush1.bf16.msra.mxu0 0
        %2365 = vmatprep.subr.bf16.mxu0 0
        %2366 = vmatpush1.bf16.msra.mxu0 0
        %2367 = vmatprep.subr.bf16.mxu0 0
        %2368 = vmatpush1.bf16.msra.mxu0 0
        %2369 = vmatprep.subr.bf16.mxu0 0
        %2370 = vmatpush1.bf16.msra.mxu0 0
        %2371 = vmatprep.mubr.bf16.mxu0 0
        %2372 = vmatmul.mubr.bf16.gmra.mrb[0].mxu0 %v2284
        %v2373 = vpop.f32.mrb[0].mxu0
        %v2374 = vadd.f32 0.0, %v2373
        %v2375 = vpop.f32.mrb[0].mxu0
        %v2376 = vadd.f32 0.0, %v2375
        %v2377 = vpop.f32.mrb[0].mxu0
        %v2378 = vpop.f32.mrb[0].mxu0
        %2379 = vdwg.mxu0
        %v2380 = vadd.f32 %v2233, %v2333
        %v2381 = vadd.f32 %v2234, %v2335
        %v2382 = vadd.f32 %v2235, %v2374
        %v2383 = vadd.f32 %v2236, %v2376
        %s2384 = scalar_lea.vmem %s7, 52
        %v2385 = vld [vmem:[%s2384] sm:$0xf]
        %v2387 = vlaneseq
        %v2388 = vshrl.u32 %v2387, 7
        %v2389 = vsub.s32 0, %v2388
        %v2390 = vrot.slane %v2385, %v2389
        %v2391 = vlaneseq
        %v2392 = vshrl.u32 %v2391, 7
        %v2393 = vsub.s32 1, %v2392
        %v2394 = vrot.slane %v2385, %v2393
        %v2395 = vlaneseq
        %v2396 = vshrl.u32 %v2395, 7
        %v2397 = vsub.s32 2, %v2396
        %v2398 = vrot.slane %v2385, %v2397
        %v2399 = vlaneseq
        %v2400 = vshrl.u32 %v2399, 7
        %v2401 = vsub.s32 3, %v2400
        %v2402 = vrot.slane %v2385, %v2401
        %v2407 = vmul.f32 %v475, %v2390
        %v2408 = vmul.f32 %v476, %v2394
        %v2409 = vmul.f32 %v477, %v2398
        %v2410 = vmul.f32 %v478, %v2402
        %v2411 = vpack.c.bf16 %v2407, %v2407
        %v2412 = vpack.c.bf16 %v2408, %v2408
        %v2413 = vpack.c.bf16 %v2409, %v2409
        %v2414 = vpack.c.bf16 %v2410, %v2410
        %s2415 = scalar_lea.vmem %s2, 52
        %v2416 = vld [vmem:[%s2415] sm:$0xf]
        %v2418 = vsel %vm571, %v2416, 0
        %v2421 = vsel %vm575, %v2411, 0
        %v2424 = vsel %vm575, %v2412, 0
        %v2427 = vsel %vm575, %v2413, 0
        %v2430 = vsel %vm575, %v2414, 0
        %2432 = vmatprep.subr.bf16.mxu0 %v2424
        %2433 = vmatpush1.bf16.msra.mxu0 %v2421
        %2434 = vmatprep.subr.bf16.mxu0 0
        %2435 = vmatpush1.bf16.msra.mxu0 0
        %2436 = vmatprep.subr.bf16.mxu0 0
        %2437 = vmatpush1.bf16.msra.mxu0 0
        %2438 = vmatprep.subr.bf16.mxu0 0
        %2439 = vmatpush1.bf16.msra.mxu0 0
        %2440 = vmatprep.subr.bf16.mxu0 0
        %2441 = vmatpush1.bf16.msra.mxu0 0
        %2442 = vmatprep.subr.bf16.mxu0 0
        %2443 = vmatpush1.bf16.msra.mxu0 0
        %2444 = vmatprep.subr.bf16.mxu0 0
        %2445 = vmatpush1.bf16.msra.mxu0 0
        %2446 = vmatprep.subr.bf16.mxu0 0
        %2447 = vmatpush1.bf16.msra.mxu0 0
        %2448 = vmatprep.subr.bf16.mxu0 0
        %2449 = vmatpush1.bf16.msra.mxu0 0
        %2450 = vmatprep.subr.bf16.mxu0 0
        %2451 = vmatpush1.bf16.msra.mxu0 0
        %2452 = vmatprep.subr.bf16.mxu0 0
        %2453 = vmatpush1.bf16.msra.mxu0 0
        %2454 = vmatprep.subr.bf16.mxu0 0
        %2455 = vmatpush1.bf16.msra.mxu0 0
        %2456 = vmatprep.subr.bf16.mxu0 0
        %2457 = vmatpush1.bf16.msra.mxu0 0
        %2458 = vmatprep.subr.bf16.mxu0 0
        %2459 = vmatpush1.bf16.msra.mxu0 0
        %2460 = vmatprep.subr.bf16.mxu0 0
        %2461 = vmatpush1.bf16.msra.mxu0 0
        %2462 = vmatprep.subr.bf16.mxu0 0
        %2463 = vmatpush1.bf16.msra.mxu0 0
        %2464 = vmatprep.mubr.bf16.mxu0 0
        %2465 = vmatmul.mubr.bf16.gmra.mrb[0].mxu0 %v2418
        %v2466 = vpop.f32.mrb[0].mxu0
        %v2467 = vadd.f32 0.0, %v2466
        %v2468 = vpop.f32.mrb[0].mxu0
        %v2469 = vadd.f32 0.0, %v2468
        %v2470 = vpop.f32.mrb[0].mxu0
        %v2471 = vpop.f32.mrb[0].mxu0
        %2472 = vdwg.mxu0
        %2473 = vmatprep.subr.bf16.mxu0 %v2430
        %2474 = vmatpush1.bf16.msra.mxu0 %v2427
        %2475 = vmatprep.subr.bf16.mxu0 0
        %2476 = vmatpush1.bf16.msra.mxu0 0
        %2477 = vmatprep.subr.bf16.mxu0 0
        %2478 = vmatpush1.bf16.msra.mxu0 0
        %2479 = vmatprep.subr.bf16.mxu0 0
        %2480 = vmatpush1.bf16.msra.mxu0 0
        %2481 = vmatprep.subr.bf16.mxu0 0
        %2482 = vmatpush1.bf16.msra.mxu0 0
        %2483 = vmatprep.subr.bf16.mxu0 0
        %2484 = vmatpush1.bf16.msra.mxu0 0
        %2485 = vmatprep.subr.bf16.mxu0 0
        %2486 = vmatpush1.bf16.msra.mxu0 0
        %2487 = vmatprep.subr.bf16.mxu0 0
        %2488 = vmatpush1.bf16.msra.mxu0 0
        %2489 = vmatprep.subr.bf16.mxu0 0
        %2490 = vmatpush1.bf16.msra.mxu0 0
        %2491 = vmatprep.subr.bf16.mxu0 0
        %2492 = vmatpush1.bf16.msra.mxu0 0
        %2493 = vmatprep.subr.bf16.mxu0 0
        %2494 = vmatpush1.bf16.msra.mxu0 0
        %2495 = vmatprep.subr.bf16.mxu0 0
        %2496 = vmatpush1.bf16.msra.mxu0 0
        %2497 = vmatprep.subr.bf16.mxu0 0
        %2498 = vmatpush1.bf16.msra.mxu0 0
        %2499 = vmatprep.subr.bf16.mxu0 0
        %2500 = vmatpush1.bf16.msra.mxu0 0
        %2501 = vmatprep.subr.bf16.mxu0 0
        %2502 = vmatpush1.bf16.msra.mxu0 0
        %2503 = vmatprep.subr.bf16.mxu0 0
        %2504 = vmatpush1.bf16.msra.mxu0 0
        %2505 = vmatprep.mubr.bf16.mxu0 0
        %2506 = vmatmul.mubr.bf16.gmra.mrb[0].mxu0 %v2418
        %v2507 = vpop.f32.mrb[0].mxu0
        %v2508 = vadd.f32 0.0, %v2507
        %v2509 = vpop.f32.mrb[0].mxu0
        %v2510 = vadd.f32 0.0, %v2509
        %v2511 = vpop.f32.mrb[0].mxu0
        %v2512 = vpop.f32.mrb[0].mxu0
        %2513 = vdwg.mxu0
        %v2514 = vadd.f32 %v2380, %v2467
        %v2515 = vadd.f32 %v2381, %v2469
        %v2516 = vadd.f32 %v2382, %v2508
        %v2517 = vadd.f32 %v2383, %v2510
        %2518 = vrot.lane.b32.xlu0 %v475, 127
        %v2519 = vpop.permute.xlu0 %2518
        %2520 = vrot.lane.b32.xlu0 %v476, 127
        %v2521 = vpop.permute.xlu0 %2520
        %2522 = vrot.lane.b32.xlu0 %v477, 127
        %v2523 = vpop.permute.xlu0 %2522
        %2524 = vrot.lane.b32.xlu0 %v478, 127
        %v2525 = vpop.permute.xlu0 %2524
        %vm2526 = vcmp.lt.s32.totalorder %v488, 127
        %v2527 = vsel %vm2526, %v2523, %v2525
        %v2528 = vsel %vm2526, %v2521, %v2523
        %v2529 = vsel %vm2526, %v2519, %v2521
        %v2530 = vsel %vm2526, %v2525, %v2519
        %s2531 = scalar_lea.vmem %s7, 56
        %v2532 = vld [vmem:[%s2531] sm:$0xf]
        %v2534 = vlaneseq
        %v2535 = vshrl.u32 %v2534, 7
        %v2536 = vsub.s32 0, %v2535
        %v2537 = vrot.slane %v2532, %v2536
        %v2538 = vlaneseq
        %v2539 = vshrl.u32 %v2538, 7
        %v2540 = vsub.s32 1, %v2539
        %v2541 = vrot.slane %v2532, %v2540
        %v2542 = vlaneseq
        %v2543 = vshrl.u32 %v2542, 7
        %v2544 = vsub.s32 2, %v2543
        %v2545 = vrot.slane %v2532, %v2544
        %v2546 = vlaneseq
        %v2547 = vshrl.u32 %v2546, 7
        %v2548 = vsub.s32 3, %v2547
        %v2549 = vrot.slane %v2532, %v2548
        %v2554 = vmul.f32 %v2529, %v2537
        %v2555 = vmul.f32 %v2528, %v2541
        %v2556 = vmul.f32 %v2527, %v2545
        %v2557 = vmul.f32 %v2530, %v2549
        %v2558 = vpack.c.bf16 %v2554, %v2554
        %v2559 = vpack.c.bf16 %v2555, %v2555
        %v2560 = vpack.c.bf16 %v2556, %v2556
        %v2561 = vpack.c.bf16 %v2557, %v2557
        %s2562 = scalar_lea.vmem %s2, 56
        %v2563 = vld [vmem:[%s2562] sm:$0xf]
        %v2565 = vsel %vm571, %v2563, 0
        %v2568 = vsel %vm575, %v2558, 0
        %v2571 = vsel %vm575, %v2559, 0
        %v2574 = vsel %vm575, %v2560, 0
        %v2577 = vsel %vm575, %v2561, 0
        %2579 = vmatprep.subr.bf16.mxu0 %v2571
        %2580 = vmatpush1.bf16.msra.mxu0 %v2568
        %2581 = vmatprep.subr.bf16.mxu0 0
        %2582 = vmatpush1.bf16.msra.mxu0 0
        %2583 = vmatprep.subr.bf16.mxu0 0
        %2584 = vmatpush1.bf16.msra.mxu0 0
        %2585 = vmatprep.subr.bf16.mxu0 0
        %2586 = vmatpush1.bf16.msra.mxu0 0
        %2587 = vmatprep.subr.bf16.mxu0 0
        %2588 = vmatpush1.bf16.msra.mxu0 0
        %2589 = vmatprep.subr.bf16.mxu0 0
        %2590 = vmatpush1.bf16.msra.mxu0 0
        %2591 = vmatprep.subr.bf16.mxu0 0
        %2592 = vmatpush1.bf16.msra.mxu0 0
        %2593 = vmatprep.subr.bf16.mxu0 0
        %2594 = vmatpush1.bf16.msra.mxu0 0
        %2595 = vmatprep.subr.bf16.mxu0 0
        %2596 = vmatpush1.bf16.msra.mxu0 0
        %2597 = vmatprep.subr.bf16.mxu0 0
        %2598 = vmatpush1.bf16.msra.mxu0 0
        %2599 = vmatprep.subr.bf16.mxu0 0
        %2600 = vmatpush1.bf16.msra.mxu0 0
        %2601 = vmatprep.subr.bf16.mxu0 0
        %2602 = vmatpush1.bf16.msra.mxu0 0
        %2603 = vmatprep.subr.bf16.mxu0 0
        %2604 = vmatpush1.bf16.msra.mxu0 0
        %2605 = vmatprep.subr.bf16.mxu0 0
        %2606 = vmatpush1.bf16.msra.mxu0 0
        %2607 = vmatprep.subr.bf16.mxu0 0
        %2608 = vmatpush1.bf16.msra.mxu0 0
        %2609 = vmatprep.subr.bf16.mxu0 0
        %2610 = vmatpush1.bf16.msra.mxu0 0
        %2611 = vmatprep.mubr.bf16.mxu0 0
        %2612 = vmatmul.mubr.bf16.gmra.mrb[0].mxu0 %v2565
        %v2613 = vpop.f32.mrb[0].mxu0
        %v2614 = vadd.f32 0.0, %v2613
        %v2615 = vpop.f32.mrb[0].mxu0
        %v2616 = vadd.f32 0.0, %v2615
        %v2617 = vpop.f32.mrb[0].mxu0
        %v2618 = vpop.f32.mrb[0].mxu0
        %2619 = vdwg.mxu0
        %2620 = vmatprep.subr.bf16.mxu0 %v2577
        %2621 = vmatpush1.bf16.msra.mxu0 %v2574
        %2622 = vmatprep.subr.bf16.mxu0 0
        %2623 = vmatpush1.bf16.msra.mxu0 0
        %2624 = vmatprep.subr.bf16.mxu0 0
        %2625 = vmatpush1.bf16.msra.mxu0 0
        %2626 = vmatprep.subr.bf16.mxu0 0
        %2627 = vmatpush1.bf16.msra.mxu0 0
        %2628 = vmatprep.subr.bf16.mxu0 0
        %2629 = vmatpush1.bf16.msra.mxu0 0
        %2630 = vmatprep.subr.bf16.mxu0 0
        %2631 = vmatpush1.bf16.msra.mxu0 0
        %2632 = vmatprep.subr.bf16.mxu0 0
        %2633 = vmatpush1.bf16.msra.mxu0 0
        %2634 = vmatprep.subr.bf16.mxu0 0
        %2635 = vmatpush1.bf16.msra.mxu0 0
        %2636 = vmatprep.subr.bf16.mxu0 0
        %2637 = vmatpush1.bf16.msra.mxu0 0
        %2638 = vmatprep.subr.bf16.mxu0 0
        %2639 = vmatpush1.bf16.msra.mxu0 0
        %2640 = vmatprep.subr.bf16.mxu0 0
        %2641 = vmatpush1.bf16.msra.mxu0 0
        %2642 = vmatprep.subr.bf16.mxu0 0
        %2643 = vmatpush1.bf16.msra.mxu0 0
        %2644 = vmatprep.subr.bf16.mxu0 0
        %2645 = vmatpush1.bf16.msra.mxu0 0
        %2646 = vmatprep.subr.bf16.mxu0 0
        %2647 = vmatpush1.bf16.msra.mxu0 0
        %2648 = vmatprep.subr.bf16.mxu0 0
        %2649 = vmatpush1.bf16.msra.mxu0 0
        %2650 = vmatprep.subr.bf16.mxu0 0
        %2651 = vmatpush1.bf16.msra.mxu0 0
        %2652 = vmatprep.mubr.bf16.mxu0 0
        %2653 = vmatmul.mubr.bf16.gmra.mrb[0].mxu0 %v2565
        %v2654 = vpop.f32.mrb[0].mxu0
        %v2655 = vadd.f32 0.0, %v2654
        %v2656 = vpop.f32.mrb[0].mxu0
        %v2657 = vadd.f32 0.0, %v2656
        %v2658 = vpop.f32.mrb[0].mxu0
        %v2659 = vpop.f32.mrb[0].mxu0
        %2660 = vdwg.mxu0
        %v2661 = vadd.f32 %v2514, %v2614
        %v2662 = vadd.f32 %v2515, %v2616
        %v2663 = vadd.f32 %v2516, %v2655
        %v2664 = vadd.f32 %v2517, %v2657
        %2665 = vrot.lane.b32.xlu0 %v475, 121
        %v2666 = vpop.permute.xlu0 %2665
        %2667 = vrot.lane.b32.xlu0 %v476, 121
        %v2668 = vpop.permute.xlu0 %2667
        %2669 = vrot.lane.b32.xlu0 %v477, 121
        %v2670 = vpop.permute.xlu0 %2669
        %2671 = vrot.lane.b32.xlu0 %v478, 121
        %v2672 = vpop.permute.xlu0 %2671
        %vm2673 = vcmp.lt.s32.totalorder %v488, 121
        %v2674 = vsel %vm2673, %v2670, %v2672
        %v2675 = vsel %vm2673, %v2668, %v2670
        %v2676 = vsel %vm2673, %v2666, %v2668
        %v2677 = vsel %vm2673, %v2672, %v2666
        %s2678 = scalar_lea.vmem %s7, 60
        %v2679 = vld [vmem:[%s2678] sm:$0xf]
        %v2681 = vlaneseq
        %v2682 = vshrl.u32 %v2681, 7
        %v2683 = vsub.s32 0, %v2682
        %v2684 = vrot.slane %v2679, %v2683
        %v2685 = vlaneseq
        %v2686 = vshrl.u32 %v2685, 7
        %v2687 = vsub.s32 1, %v2686
        %v2688 = vrot.slane %v2679, %v2687
        %v2689 = vlaneseq
        %v2690 = vshrl.u32 %v2689, 7
        %v2691 = vsub.s32 2, %v2690
        %v2692 = vrot.slane %v2679, %v2691
        %v2693 = vlaneseq
        %v2694 = vshrl.u32 %v2693, 7
        %v2695 = vsub.s32 3, %v2694
        %v2696 = vrot.slane %v2679, %v2695
        %v2701 = vmul.f32 %v2676, %v2684
        %v2702 = vmul.f32 %v2675, %v2688
        %v2703 = vmul.f32 %v2674, %v2692
        %v2704 = vmul.f32 %v2677, %v2696
        %v2705 = vpack.c.bf16 %v2701, %v2701
        %v2706 = vpack.c.bf16 %v2702, %v2702
        %v2707 = vpack.c.bf16 %v2703, %v2703
        %v2708 = vpack.c.bf16 %v2704, %v2704
        %s2709 = scalar_lea.vmem %s2, 60
        %v2710 = vld [vmem:[%s2709] sm:$0xf]
        %v2712 = vsel %vm571, %v2710, 0
        %v2715 = vsel %vm575, %v2705, 0
        %v2718 = vsel %vm575, %v2706, 0
        %v2721 = vsel %vm575, %v2707, 0
        %v2724 = vsel %vm575, %v2708, 0
        %2726 = vmatprep.subr.bf16.mxu0 %v2718
        %2727 = vmatpush1.bf16.msra.mxu0 %v2715
        %2728 = vmatprep.subr.bf16.mxu0 0
        %2729 = vmatpush1.bf16.msra.mxu0 0
        %2730 = vmatprep.subr.bf16.mxu0 0
        %2731 = vmatpush1.bf16.msra.mxu0 0
        %2732 = vmatprep.subr.bf16.mxu0 0
        %2733 = vmatpush1.bf16.msra.mxu0 0
        %2734 = vmatprep.subr.bf16.mxu0 0
        %2735 = vmatpush1.bf16.msra.mxu0 0
        %2736 = vmatprep.subr.bf16.mxu0 0
        %2737 = vmatpush1.bf16.msra.mxu0 0
        %2738 = vmatprep.subr.bf16.mxu0 0
        %2739 = vmatpush1.bf16.msra.mxu0 0
        %2740 = vmatprep.subr.bf16.mxu0 0
        %2741 = vmatpush1.bf16.msra.mxu0 0
        %2742 = vmatprep.subr.bf16.mxu0 0
        %2743 = vmatpush1.bf16.msra.mxu0 0
        %2744 = vmatprep.subr.bf16.mxu0 0
        %2745 = vmatpush1.bf16.msra.mxu0 0
        %2746 = vmatprep.subr.bf16.mxu0 0
        %2747 = vmatpush1.bf16.msra.mxu0 0
        %2748 = vmatprep.subr.bf16.mxu0 0
        %2749 = vmatpush1.bf16.msra.mxu0 0
        %2750 = vmatprep.subr.bf16.mxu0 0
        %2751 = vmatpush1.bf16.msra.mxu0 0
        %2752 = vmatprep.subr.bf16.mxu0 0
        %2753 = vmatpush1.bf16.msra.mxu0 0
        %2754 = vmatprep.subr.bf16.mxu0 0
        %2755 = vmatpush1.bf16.msra.mxu0 0
        %2756 = vmatprep.subr.bf16.mxu0 0
        %2757 = vmatpush1.bf16.msra.mxu0 0
        %2758 = vmatprep.mubr.bf16.mxu0 0
        %2759 = vmatmul.mubr.bf16.gmra.mrb[0].mxu0 %v2712
        %v2760 = vpop.f32.mrb[0].mxu0
        %v2761 = vadd.f32 0.0, %v2760
        %v2762 = vpop.f32.mrb[0].mxu0
        %v2763 = vadd.f32 0.0, %v2762
        %v2764 = vpop.f32.mrb[0].mxu0
        %v2765 = vpop.f32.mrb[0].mxu0
        %2766 = vdwg.mxu0
        %2767 = vmatprep.subr.bf16.mxu0 %v2724
        %2768 = vmatpush1.bf16.msra.mxu0 %v2721
        %2769 = vmatprep.subr.bf16.mxu0 0
        %2770 = vmatpush1.bf16.msra.mxu0 0
        %2771 = vmatprep.subr.bf16.mxu0 0
        %2772 = vmatpush1.bf16.msra.mxu0 0
        %2773 = vmatprep.subr.bf16.mxu0 0
        %2774 = vmatpush1.bf16.msra.mxu0 0
        %2775 = vmatprep.subr.bf16.mxu0 0
        %2776 = vmatpush1.bf16.msra.mxu0 0
        %2777 = vmatprep.subr.bf16.mxu0 0
        %2778 = vmatpush1.bf16.msra.mxu0 0
        %2779 = vmatprep.subr.bf16.mxu0 0
        %2780 = vmatpush1.bf16.msra.mxu0 0
        %2781 = vmatprep.subr.bf16.mxu0 0
        %2782 = vmatpush1.bf16.msra.mxu0 0
        %2783 = vmatprep.subr.bf16.mxu0 0
        %2784 = vmatpush1.bf16.msra.mxu0 0
        %2785 = vmatprep.subr.bf16.mxu0 0
        %2786 = vmatpush1.bf16.msra.mxu0 0
        %2787 = vmatprep.subr.bf16.mxu0 0
        %2788 = vmatpush1.bf16.msra.mxu0 0
        %2789 = vmatprep.subr.bf16.mxu0 0
        %2790 = vmatpush1.bf16.msra.mxu0 0
        %2791 = vmatprep.subr.bf16.mxu0 0
        %2792 = vmatpush1.bf16.msra.mxu0 0
        %2793 = vmatprep.subr.bf16.mxu0 0
        %2794 = vmatpush1.bf16.msra.mxu0 0
        %2795 = vmatprep.subr.bf16.mxu0 0
        %2796 = vmatpush1.bf16.msra.mxu0 0
        %2797 = vmatprep.subr.bf16.mxu0 0
        %2798 = vmatpush1.bf16.msra.mxu0 0
        %2799 = vmatprep.mubr.bf16.mxu0 0
        %2800 = vmatmul.mubr.bf16.gmra.mrb[0].mxu0 %v2712
        %v2801 = vpop.f32.mrb[0].mxu0
        %v2802 = vadd.f32 0.0, %v2801
        %v2803 = vpop.f32.mrb[0].mxu0
        %v2804 = vadd.f32 0.0, %v2803
        %v2805 = vpop.f32.mrb[0].mxu0
        %v2806 = vpop.f32.mrb[0].mxu0
        %2807 = vdwg.mxu0
        %v2808 = vadd.f32 %v2661, %v2761
        %v2809 = vadd.f32 %v2662, %v2763
        %v2810 = vadd.f32 %v2663, %v2802
        %v2811 = vadd.f32 %v2664, %v2804
        %2812 = vrot.lane.b32.xlu0 %v475, 120
        %v2813 = vpop.permute.xlu0 %2812
        %2814 = vrot.lane.b32.xlu0 %v476, 120
        %v2815 = vpop.permute.xlu0 %2814
        %2816 = vrot.lane.b32.xlu0 %v477, 120
        %v2817 = vpop.permute.xlu0 %2816
        %2818 = vrot.lane.b32.xlu0 %v478, 120
        %v2819 = vpop.permute.xlu0 %2818
        %vm2820 = vcmp.lt.s32.totalorder %v488, 120
        %v2821 = vsel %vm2820, %v2817, %v2819
        %v2822 = vsel %vm2820, %v2815, %v2817
        %v2823 = vsel %vm2820, %v2813, %v2815
        %v2824 = vsel %vm2820, %v2819, %v2813
        %s2825 = scalar_lea.vmem %s7, 64
        %v2826 = vld [vmem:[%s2825] sm:$0xf]
        %v2828 = vlaneseq
        %v2829 = vshrl.u32 %v2828, 7
        %v2830 = vsub.s32 0, %v2829
        %v2831 = vrot.slane %v2826, %v2830
        %v2832 = vlaneseq
        %v2833 = vshrl.u32 %v2832, 7
        %v2834 = vsub.s32 1, %v2833
        %v2835 = vrot.slane %v2826, %v2834
        %v2836 = vlaneseq
        %v2837 = vshrl.u32 %v2836, 7
        %v2838 = vsub.s32 2, %v2837
        %v2839 = vrot.slane %v2826, %v2838
        %v2840 = vlaneseq
        %v2841 = vshrl.u32 %v2840, 7
        %v2842 = vsub.s32 3, %v2841
        %v2843 = vrot.slane %v2826, %v2842
        %v2848 = vmul.f32 %v2823, %v2831
        %v2849 = vmul.f32 %v2822, %v2835
        %v2850 = vmul.f32 %v2821, %v2839
        %v2851 = vmul.f32 %v2824, %v2843
        %v2852 = vpack.c.bf16 %v2848, %v2848
        %v2853 = vpack.c.bf16 %v2849, %v2849
        %v2854 = vpack.c.bf16 %v2850, %v2850
        %v2855 = vpack.c.bf16 %v2851, %v2851
        %s2856 = scalar_lea.vmem %s2, 64
        %v2857 = vld [vmem:[%s2856] sm:$0xf]
        %v2859 = vsel %vm571, %v2857, 0
        %v2862 = vsel %vm575, %v2852, 0
        %v2865 = vsel %vm575, %v2853, 0
        %v2868 = vsel %vm575, %v2854, 0
        %v2871 = vsel %vm575, %v2855, 0
        %2873 = vmatprep.subr.bf16.mxu0 %v2865
        %2874 = vmatpush1.bf16.msra.mxu0 %v2862
        %2875 = vmatprep.subr.bf16.mxu0 0
        %2876 = vmatpush1.bf16.msra.mxu0 0
        %2877 = vmatprep.subr.bf16.mxu0 0
        %2878 = vmatpush1.bf16.msra.mxu0 0
        %2879 = vmatprep.subr.bf16.mxu0 0
        %2880 = vmatpush1.bf16.msra.mxu0 0
        %2881 = vmatprep.subr.bf16.mxu0 0
        %2882 = vmatpush1.bf16.msra.mxu0 0
        %2883 = vmatprep.subr.bf16.mxu0 0
        %2884 = vmatpush1.bf16.msra.mxu0 0
        %2885 = vmatprep.subr.bf16.mxu0 0
        %2886 = vmatpush1.bf16.msra.mxu0 0
        %2887 = vmatprep.subr.bf16.mxu0 0
        %2888 = vmatpush1.bf16.msra.mxu0 0
        %2889 = vmatprep.subr.bf16.mxu0 0
        %2890 = vmatpush1.bf16.msra.mxu0 0
        %2891 = vmatprep.subr.bf16.mxu0 0
        %2892 = vmatpush1.bf16.msra.mxu0 0
        %2893 = vmatprep.subr.bf16.mxu0 0
        %2894 = vmatpush1.bf16.msra.mxu0 0
        %2895 = vmatprep.subr.bf16.mxu0 0
        %2896 = vmatpush1.bf16.msra.mxu0 0
        %2897 = vmatprep.subr.bf16.mxu0 0
        %2898 = vmatpush1.bf16.msra.mxu0 0
        %2899 = vmatprep.subr.bf16.mxu0 0
        %2900 = vmatpush1.bf16.msra.mxu0 0
        %2901 = vmatprep.subr.bf16.mxu0 0
        %2902 = vmatpush1.bf16.msra.mxu0 0
        %2903 = vmatprep.subr.bf16.mxu0 0
        %2904 = vmatpush1.bf16.msra.mxu0 0
        %2905 = vmatprep.mubr.bf16.mxu0 0
        %2906 = vmatmul.mubr.bf16.gmra.mrb[0].mxu0 %v2859
        %v2907 = vpop.f32.mrb[0].mxu0
        %v2908 = vadd.f32 0.0, %v2907
        %v2909 = vpop.f32.mrb[0].mxu0
        %v2910 = vadd.f32 0.0, %v2909
        %v2911 = vpop.f32.mrb[0].mxu0
        %v2912 = vpop.f32.mrb[0].mxu0
        %2913 = vdwg.mxu0
        %2914 = vmatprep.subr.bf16.mxu0 %v2871
        %2915 = vmatpush1.bf16.msra.mxu0 %v2868
        %2916 = vmatprep.subr.bf16.mxu0 0
        %2917 = vmatpush1.bf16.msra.mxu0 0
        %2918 = vmatprep.subr.bf16.mxu0 0
        %2919 = vmatpush1.bf16.msra.mxu0 0
        %2920 = vmatprep.subr.bf16.mxu0 0
        %2921 = vmatpush1.bf16.msra.mxu0 0
        %2922 = vmatprep.subr.bf16.mxu0 0
        %2923 = vmatpush1.bf16.msra.mxu0 0
        %2924 = vmatprep.subr.bf16.mxu0 0
        %2925 = vmatpush1.bf16.msra.mxu0 0
        %2926 = vmatprep.subr.bf16.mxu0 0
        %2927 = vmatpush1.bf16.msra.mxu0 0
        %2928 = vmatprep.subr.bf16.mxu0 0
        %2929 = vmatpush1.bf16.msra.mxu0 0
        %2930 = vmatprep.subr.bf16.mxu0 0
        %2931 = vmatpush1.bf16.msra.mxu0 0
        %2932 = vmatprep.subr.bf16.mxu0 0
        %2933 = vmatpush1.bf16.msra.mxu0 0
        %2934 = vmatprep.subr.bf16.mxu0 0
        %2935 = vmatpush1.bf16.msra.mxu0 0
        %2936 = vmatprep.subr.bf16.mxu0 0
        %2937 = vmatpush1.bf16.msra.mxu0 0
        %2938 = vmatprep.subr.bf16.mxu0 0
        %2939 = vmatpush1.bf16.msra.mxu0 0
        %2940 = vmatprep.subr.bf16.mxu0 0
        %2941 = vmatpush1.bf16.msra.mxu0 0
        %2942 = vmatprep.subr.bf16.mxu0 0
        %2943 = vmatpush1.bf16.msra.mxu0 0
        %2944 = vmatprep.subr.bf16.mxu0 0
        %2945 = vmatpush1.bf16.msra.mxu0 0
        %2946 = vmatprep.mubr.bf16.mxu0 0
        %2947 = vmatmul.mubr.bf16.gmra.mrb[0].mxu0 %v2859
        %v2948 = vpop.f32.mrb[0].mxu0
        %v2949 = vadd.f32 0.0, %v2948
        %v2950 = vpop.f32.mrb[0].mxu0
        %v2951 = vadd.f32 0.0, %v2950
        %v2952 = vpop.f32.mrb[0].mxu0
        %v2953 = vpop.f32.mrb[0].mxu0
        %2954 = vdwg.mxu0
        %v2955 = vadd.f32 %v2808, %v2908
        %v2956 = vadd.f32 %v2809, %v2910
        %v2957 = vadd.f32 %v2810, %v2949
        %v2958 = vadd.f32 %v2811, %v2951
        %2959 = vrot.lane.b32.xlu0 %v475, 119
        %v2960 = vpop.permute.xlu0 %2959
        %2961 = vrot.lane.b32.xlu0 %v476, 119
        %v2962 = vpop.permute.xlu0 %2961
        %2963 = vrot.lane.b32.xlu0 %v477, 119
        %v2964 = vpop.permute.xlu0 %2963
        %2965 = vrot.lane.b32.xlu0 %v478, 119
        %v2966 = vpop.permute.xlu0 %2965
        %vm2967 = vcmp.lt.s32.totalorder %v488, 119
        %v2968 = vsel %vm2967, %v2964, %v2966
        %v2969 = vsel %vm2967, %v2962, %v2964
        %v2970 = vsel %vm2967, %v2960, %v2962
        %v2971 = vsel %vm2967, %v2966, %v2960
        %s2972 = scalar_lea.vmem %s7, 68
        %v2973 = vld [vmem:[%s2972] sm:$0xf]
        %v2975 = vlaneseq
        %v2976 = vshrl.u32 %v2975, 7
        %v2977 = vsub.s32 0, %v2976
        %v2978 = vrot.slane %v2973, %v2977
        %v2979 = vlaneseq
        %v2980 = vshrl.u32 %v2979, 7
        %v2981 = vsub.s32 1, %v2980
        %v2982 = vrot.slane %v2973, %v2981
        %v2983 = vlaneseq
        %v2984 = vshrl.u32 %v2983, 7
        %v2985 = vsub.s32 2, %v2984
        %v2986 = vrot.slane %v2973, %v2985
        %v2987 = vlaneseq
        %v2988 = vshrl.u32 %v2987, 7
        %v2989 = vsub.s32 3, %v2988
        %v2990 = vrot.slane %v2973, %v2989
        %v2995 = vmul.f32 %v2970, %v2978
        %v2996 = vmul.f32 %v2969, %v2982
        %v2997 = vmul.f32 %v2968, %v2986
        %v2998 = vmul.f32 %v2971, %v2990
        %v2999 = vpack.c.bf16 %v2995, %v2995
        %v3000 = vpack.c.bf16 %v2996, %v2996
        %v3001 = vpack.c.bf16 %v2997, %v2997
        %v3002 = vpack.c.bf16 %v2998, %v2998
        %s3003 = scalar_lea.vmem %s2, 68
        %v3004 = vld [vmem:[%s3003] sm:$0xf]
        %v3006 = vsel %vm571, %v3004, 0
        %v3009 = vsel %vm575, %v2999, 0
        %v3012 = vsel %vm575, %v3000, 0
        %v3015 = vsel %vm575, %v3001, 0
        %v3018 = vsel %vm575, %v3002, 0
        %3020 = vmatprep.subr.bf16.mxu0 %v3012
        %3021 = vmatpush1.bf16.msra.mxu0 %v3009
        %3022 = vmatprep.subr.bf16.mxu0 0
        %3023 = vmatpush1.bf16.msra.mxu0 0
        %3024 = vmatprep.subr.bf16.mxu0 0
        %3025 = vmatpush1.bf16.msra.mxu0 0
        %3026 = vmatprep.subr.bf16.mxu0 0
        %3027 = vmatpush1.bf16.msra.mxu0 0
        %3028 = vmatprep.subr.bf16.mxu0 0
        %3029 = vmatpush1.bf16.msra.mxu0 0
        %3030 = vmatprep.subr.bf16.mxu0 0
        %3031 = vmatpush1.bf16.msra.mxu0 0
        %3032 = vmatprep.subr.bf16.mxu0 0
        %3033 = vmatpush1.bf16.msra.mxu0 0
        %3034 = vmatprep.subr.bf16.mxu0 0
        %3035 = vmatpush1.bf16.msra.mxu0 0
        %3036 = vmatprep.subr.bf16.mxu0 0
        %3037 = vmatpush1.bf16.msra.mxu0 0
        %3038 = vmatprep.subr.bf16.mxu0 0
        %3039 = vmatpush1.bf16.msra.mxu0 0
        %3040 = vmatprep.subr.bf16.mxu0 0
        %3041 = vmatpush1.bf16.msra.mxu0 0
        %3042 = vmatprep.subr.bf16.mxu0 0
        %3043 = vmatpush1.bf16.msra.mxu0 0
        %3044 = vmatprep.subr.bf16.mxu0 0
        %3045 = vmatpush1.bf16.msra.mxu0 0
        %3046 = vmatprep.subr.bf16.mxu0 0
        %3047 = vmatpush1.bf16.msra.mxu0 0
        %3048 = vmatprep.subr.bf16.mxu0 0
        %3049 = vmatpush1.bf16.msra.mxu0 0
        %3050 = vmatprep.subr.bf16.mxu0 0
        %3051 = vmatpush1.bf16.msra.mxu0 0
        %3052 = vmatprep.mubr.bf16.mxu0 0
        %3053 = vmatmul.mubr.bf16.gmra.mrb[0].mxu0 %v3006
        %v3054 = vpop.f32.mrb[0].mxu0
        %v3055 = vadd.f32 0.0, %v3054
        %v3056 = vpop.f32.mrb[0].mxu0
        %v3057 = vadd.f32 0.0, %v3056
        %v3058 = vpop.f32.mrb[0].mxu0
        %v3059 = vpop.f32.mrb[0].mxu0
        %3060 = vdwg.mxu0
        %3061 = vmatprep.subr.bf16.mxu0 %v3018
        %3062 = vmatpush1.bf16.msra.mxu0 %v3015
        %3063 = vmatprep.subr.bf16.mxu0 0
        %3064 = vmatpush1.bf16.msra.mxu0 0
        %3065 = vmatprep.subr.bf16.mxu0 0
        %3066 = vmatpush1.bf16.msra.mxu0 0
        %3067 = vmatprep.subr.bf16.mxu0 0
        %3068 = vmatpush1.bf16.msra.mxu0 0
        %3069 = vmatprep.subr.bf16.mxu0 0
        %3070 = vmatpush1.bf16.msra.mxu0 0
        %3071 = vmatprep.subr.bf16.mxu0 0
        %3072 = vmatpush1.bf16.msra.mxu0 0
        %3073 = vmatprep.subr.bf16.mxu0 0
        %3074 = vmatpush1.bf16.msra.mxu0 0
        %3075 = vmatprep.subr.bf16.mxu0 0
        %3076 = vmatpush1.bf16.msra.mxu0 0
        %3077 = vmatprep.subr.bf16.mxu0 0
        %3078 = vmatpush1.bf16.msra.mxu0 0
        %3079 = vmatprep.subr.bf16.mxu0 0
        %3080 = vmatpush1.bf16.msra.mxu0 0
        %3081 = vmatprep.subr.bf16.mxu0 0
        %3082 = vmatpush1.bf16.msra.mxu0 0
        %3083 = vmatprep.subr.bf16.mxu0 0
        %3084 = vmatpush1.bf16.msra.mxu0 0
        %3085 = vmatprep.subr.bf16.mxu0 0
        %3086 = vmatpush1.bf16.msra.mxu0 0
        %3087 = vmatprep.subr.bf16.mxu0 0
        %3088 = vmatpush1.bf16.msra.mxu0 0
        %3089 = vmatprep.subr.bf16.mxu0 0
        %3090 = vmatpush1.bf16.msra.mxu0 0
        %3091 = vmatprep.subr.bf16.mxu0 0
        %3092 = vmatpush1.bf16.msra.mxu0 0
        %3093 = vmatprep.mubr.bf16.mxu0 0
        %3094 = vmatmul.mubr.bf16.gmra.mrb[0].mxu0 %v3006
        %v3095 = vpop.f32.mrb[0].mxu0
        %v3096 = vadd.f32 0.0, %v3095
        %v3097 = vpop.f32.mrb[0].mxu0
        %v3098 = vadd.f32 0.0, %v3097
        %v3099 = vpop.f32.mrb[0].mxu0
        %v3100 = vpop.f32.mrb[0].mxu0
        %3101 = vdwg.mxu0
        %v3102 = vadd.f32 %v2955, %v3055
        %v3103 = vadd.f32 %v2956, %v3057
        %v3104 = vadd.f32 %v2957, %v3096
        %v3105 = vadd.f32 %v2958, %v3098
        %s3106 = scalar_lea.vmem %s7, 72
        %v3107 = vld [vmem:[%s3106] sm:$0xf]
        %v3109 = vlaneseq
        %v3110 = vshrl.u32 %v3109, 7
        %v3111 = vsub.s32 0, %v3110
        %v3112 = vrot.slane %v3107, %v3111
        %v3113 = vlaneseq
        %v3114 = vshrl.u32 %v3113, 7
        %v3115 = vsub.s32 1, %v3114
        %v3116 = vrot.slane %v3107, %v3115
        %v3117 = vlaneseq
        %v3118 = vshrl.u32 %v3117, 7
        %v3119 = vsub.s32 2, %v3118
        %v3120 = vrot.slane %v3107, %v3119
        %v3121 = vlaneseq
        %v3122 = vshrl.u32 %v3121, 7
        %v3123 = vsub.s32 3, %v3122
        %v3124 = vrot.slane %v3107, %v3123
        %v3129 = vmul.f32 %v492, %v3112
        %v3130 = vmul.f32 %v491, %v3116
        %v3131 = vmul.f32 %v490, %v3120
        %v3132 = vmul.f32 %v493, %v3124
        %v3133 = vpack.c.bf16 %v3129, %v3129
        %v3134 = vpack.c.bf16 %v3130, %v3130
        %v3135 = vpack.c.bf16 %v3131, %v3131
        %v3136 = vpack.c.bf16 %v3132, %v3132
        %s3137 = scalar_lea.vmem %s2, 72
        %v3138 = vld [vmem:[%s3137] sm:$0xf]
        %v3140 = vsel %vm571, %v3138, 0
        %v3143 = vsel %vm575, %v3133, 0
        %v3146 = vsel %vm575, %v3134, 0
        %v3149 = vsel %vm575, %v3135, 0
        %v3152 = vsel %vm575, %v3136, 0
        %3154 = vmatprep.subr.bf16.mxu0 %v3146
        %3155 = vmatpush1.bf16.msra.mxu0 %v3143
        %3156 = vmatprep.subr.bf16.mxu0 0
        %3157 = vmatpush1.bf16.msra.mxu0 0
        %3158 = vmatprep.subr.bf16.mxu0 0
        %3159 = vmatpush1.bf16.msra.mxu0 0
        %3160 = vmatprep.subr.bf16.mxu0 0
        %3161 = vmatpush1.bf16.msra.mxu0 0
        %3162 = vmatprep.subr.bf16.mxu0 0
        %3163 = vmatpush1.bf16.msra.mxu0 0
        %3164 = vmatprep.subr.bf16.mxu0 0
        %3165 = vmatpush1.bf16.msra.mxu0 0
        %3166 = vmatprep.subr.bf16.mxu0 0
        %3167 = vmatpush1.bf16.msra.mxu0 0
        %3168 = vmatprep.subr.bf16.mxu0 0
        %3169 = vmatpush1.bf16.msra.mxu0 0
        %3170 = vmatprep.subr.bf16.mxu0 0
        %3171 = vmatpush1.bf16.msra.mxu0 0
        %3172 = vmatprep.subr.bf16.mxu0 0
        %3173 = vmatpush1.bf16.msra.mxu0 0
        %3174 = vmatprep.subr.bf16.mxu0 0
        %3175 = vmatpush1.bf16.msra.mxu0 0
        %3176 = vmatprep.subr.bf16.mxu0 0
        %3177 = vmatpush1.bf16.msra.mxu0 0
        %3178 = vmatprep.subr.bf16.mxu0 0
        %3179 = vmatpush1.bf16.msra.mxu0 0
        %3180 = vmatprep.subr.bf16.mxu0 0
        %3181 = vmatpush1.bf16.msra.mxu0 0
        %3182 = vmatprep.subr.bf16.mxu0 0
        %3183 = vmatpush1.bf16.msra.mxu0 0
        %3184 = vmatprep.subr.bf16.mxu0 0
        %3185 = vmatpush1.bf16.msra.mxu0 0
        %3186 = vmatprep.mubr.bf16.mxu0 0
        %3187 = vmatmul.mubr.bf16.gmra.mrb[0].mxu0 %v3140
        %v3188 = vpop.f32.mrb[0].mxu0
        %v3189 = vadd.f32 0.0, %v3188
        %v3190 = vpop.f32.mrb[0].mxu0
        %v3191 = vadd.f32 0.0, %v3190
        %v3192 = vpop.f32.mrb[0].mxu0
        %v3193 = vpop.f32.mrb[0].mxu0
        %3194 = vdwg.mxu0
        %3195 = vmatprep.subr.bf16.mxu0 %v3152
        %3196 = vmatpush1.bf16.msra.mxu0 %v3149
        %3197 = vmatprep.subr.bf16.mxu0 0
        %3198 = vmatpush1.bf16.msra.mxu0 0
        %3199 = vmatprep.subr.bf16.mxu0 0
        %3200 = vmatpush1.bf16.msra.mxu0 0
        %3201 = vmatprep.subr.bf16.mxu0 0
        %3202 = vmatpush1.bf16.msra.mxu0 0
        %3203 = vmatprep.subr.bf16.mxu0 0
        %3204 = vmatpush1.bf16.msra.mxu0 0
        %3205 = vmatprep.subr.bf16.mxu0 0
        %3206 = vmatpush1.bf16.msra.mxu0 0
        %3207 = vmatprep.subr.bf16.mxu0 0
        %3208 = vmatpush1.bf16.msra.mxu0 0
        %3209 = vmatprep.subr.bf16.mxu0 0
        %3210 = vmatpush1.bf16.msra.mxu0 0
        %3211 = vmatprep.subr.bf16.mxu0 0
        %3212 = vmatpush1.bf16.msra.mxu0 0
        %3213 = vmatprep.subr.bf16.mxu0 0
        %3214 = vmatpush1.bf16.msra.mxu0 0
        %3215 = vmatprep.subr.bf16.mxu0 0
        %3216 = vmatpush1.bf16.msra.mxu0 0
        %3217 = vmatprep.subr.bf16.mxu0 0
        %3218 = vmatpush1.bf16.msra.mxu0 0
        %3219 = vmatprep.subr.bf16.mxu0 0
        %3220 = vmatpush1.bf16.msra.mxu0 0
        %3221 = vmatprep.subr.bf16.mxu0 0
        %3222 = vmatpush1.bf16.msra.mxu0 0
        %3223 = vmatprep.subr.bf16.mxu0 0
        %3224 = vmatpush1.bf16.msra.mxu0 0
        %3225 = vmatprep.subr.bf16.mxu0 0
        %3226 = vmatpush1.bf16.msra.mxu0 0
        %3227 = vmatprep.mubr.bf16.mxu0 0
        %3228 = vmatmul.mubr.bf16.gmra.mrb[0].mxu0 %v3140
        %v3229 = vpop.f32.mrb[0].mxu0
        %v3230 = vadd.f32 0.0, %v3229
        %v3231 = vpop.f32.mrb[0].mxu0
        %v3232 = vadd.f32 0.0, %v3231
        %v3233 = vpop.f32.mrb[0].mxu0
        %v3234 = vpop.f32.mrb[0].mxu0
        %3235 = vdwg.mxu0
        %v3236 = vadd.f32 %v3102, %v3189
        %v3237 = vadd.f32 %v3103, %v3191
        %v3238 = vadd.f32 %v3104, %v3230
        %v3239 = vadd.f32 %v3105, %v3232
        %s3240 = scalar_lea.vmem %s7, 76
        %v3241 = vld [vmem:[%s3240] sm:$0xf]
        %v3243 = vlaneseq
        %v3244 = vshrl.u32 %v3243, 7
        %v3245 = vsub.s32 0, %v3244
        %v3246 = vrot.slane %v3241, %v3245
        %v3247 = vlaneseq
        %v3248 = vshrl.u32 %v3247, 7
        %v3249 = vsub.s32 1, %v3248
        %v3250 = vrot.slane %v3241, %v3249
        %v3251 = vlaneseq
        %v3252 = vshrl.u32 %v3251, 7
        %v3253 = vsub.s32 2, %v3252
        %v3254 = vrot.slane %v3241, %v3253
        %v3255 = vlaneseq
        %v3256 = vshrl.u32 %v3255, 7
        %v3257 = vsub.s32 3, %v3256
        %v3258 = vrot.slane %v3241, %v3257
        %v3263 = vmul.f32 %v536, %v3246
        %v3264 = vmul.f32 %v535, %v3250
        %v3265 = vmul.f32 %v534, %v3254
        %v3266 = vmul.f32 %v537, %v3258
        %v3267 = vpack.c.bf16 %v3263, %v3263
        %v3268 = vpack.c.bf16 %v3264, %v3264
        %v3269 = vpack.c.bf16 %v3265, %v3265
        %v3270 = vpack.c.bf16 %v3266, %v3266
        %s3271 = scalar_lea.vmem %s2, 76
        %v3272 = vld [vmem:[%s3271] sm:$0xf]
        %v3274 = vsel %vm571, %v3272, 0
        %v3277 = vsel %vm575, %v3267, 0
        %v3280 = vsel %vm575, %v3268, 0
        %v3283 = vsel %vm575, %v3269, 0
        %v3286 = vsel %vm575, %v3270, 0
        %3288 = vmatprep.subr.bf16.mxu0 %v3280
        %3289 = vmatpush1.bf16.msra.mxu0 %v3277
        %3290 = vmatprep.subr.bf16.mxu0 0
        %3291 = vmatpush1.bf16.msra.mxu0 0
        %3292 = vmatprep.subr.bf16.mxu0 0
        %3293 = vmatpush1.bf16.msra.mxu0 0
        %3294 = vmatprep.subr.bf16.mxu0 0
        %3295 = vmatpush1.bf16.msra.mxu0 0
        %3296 = vmatprep.subr.bf16.mxu0 0
        %3297 = vmatpush1.bf16.msra.mxu0 0
        %3298 = vmatprep.subr.bf16.mxu0 0
        %3299 = vmatpush1.bf16.msra.mxu0 0
        %3300 = vmatprep.subr.bf16.mxu0 0
        %3301 = vmatpush1.bf16.msra.mxu0 0
        %3302 = vmatprep.subr.bf16.mxu0 0
        %3303 = vmatpush1.bf16.msra.mxu0 0
        %3304 = vmatprep.subr.bf16.mxu0 0
        %3305 = vmatpush1.bf16.msra.mxu0 0
        %3306 = vmatprep.subr.bf16.mxu0 0
        %3307 = vmatpush1.bf16.msra.mxu0 0
        %3308 = vmatprep.subr.bf16.mxu0 0
        %3309 = vmatpush1.bf16.msra.mxu0 0
        %3310 = vmatprep.subr.bf16.mxu0 0
        %3311 = vmatpush1.bf16.msra.mxu0 0
        %3312 = vmatprep.subr.bf16.mxu0 0
        %3313 = vmatpush1.bf16.msra.mxu0 0
        %3314 = vmatprep.subr.bf16.mxu0 0
        %3315 = vmatpush1.bf16.msra.mxu0 0
        %3316 = vmatprep.subr.bf16.mxu0 0
        %3317 = vmatpush1.bf16.msra.mxu0 0
        %3318 = vmatprep.subr.bf16.mxu0 0
        %3319 = vmatpush1.bf16.msra.mxu0 0
        %3320 = vmatprep.mubr.bf16.mxu0 0
        %3321 = vmatmul.mubr.bf16.gmra.mrb[0].mxu0 %v3274
        %v3322 = vpop.f32.mrb[0].mxu0
        %v3323 = vadd.f32 0.0, %v3322
        %v3324 = vpop.f32.mrb[0].mxu0
        %v3325 = vadd.f32 0.0, %v3324
        %v3326 = vpop.f32.mrb[0].mxu0
        %v3327 = vpop.f32.mrb[0].mxu0
        %3328 = vdwg.mxu0
        %3329 = vmatprep.subr.bf16.mxu0 %v3286
        %3330 = vmatpush1.bf16.msra.mxu0 %v3283
        %3331 = vmatprep.subr.bf16.mxu0 0
        %3332 = vmatpush1.bf16.msra.mxu0 0
        %3333 = vmatprep.subr.bf16.mxu0 0
        %3334 = vmatpush1.bf16.msra.mxu0 0
        %3335 = vmatprep.subr.bf16.mxu0 0
        %3336 = vmatpush1.bf16.msra.mxu0 0
        %3337 = vmatprep.subr.bf16.mxu0 0
        %3338 = vmatpush1.bf16.msra.mxu0 0
        %3339 = vmatprep.subr.bf16.mxu0 0
        %3340 = vmatpush1.bf16.msra.mxu0 0
        %3341 = vmatprep.subr.bf16.mxu0 0
        %3342 = vmatpush1.bf16.msra.mxu0 0
        %3343 = vmatprep.subr.bf16.mxu0 0
        %3344 = vmatpush1.bf16.msra.mxu0 0
        %3345 = vmatprep.subr.bf16.mxu0 0
        %3346 = vmatpush1.bf16.msra.mxu0 0
        %3347 = vmatprep.subr.bf16.mxu0 0
        %3348 = vmatpush1.bf16.msra.mxu0 0
        %3349 = vmatprep.subr.bf16.mxu0 0
        %3350 = vmatpush1.bf16.msra.mxu0 0
        %3351 = vmatprep.subr.bf16.mxu0 0
        %3352 = vmatpush1.bf16.msra.mxu0 0
        %3353 = vmatprep.subr.bf16.mxu0 0
        %3354 = vmatpush1.bf16.msra.mxu0 0
        %3355 = vmatprep.subr.bf16.mxu0 0
        %3356 = vmatpush1.bf16.msra.mxu0 0
        %3357 = vmatprep.subr.bf16.mxu0 0
        %3358 = vmatpush1.bf16.msra.mxu0 0
        %3359 = vmatprep.subr.bf16.mxu0 0
        %3360 = vmatpush1.bf16.msra.mxu0 0
        %3361 = vmatprep.mubr.bf16.mxu0 0
        %3362 = vmatmul.mubr.bf16.gmra.mrb[0].mxu0 %v3274
        %v3363 = vpop.f32.mrb[0].mxu0
        %v3364 = vadd.f32 0.0, %v3363
        %v3365 = vpop.f32.mrb[0].mxu0
        %v3366 = vadd.f32 0.0, %v3365
        %v3367 = vpop.f32.mrb[0].mxu0
        %v3368 = vpop.f32.mrb[0].mxu0
        %3369 = vdwg.mxu0
        %v3370 = vadd.f32 %v3236, %v3323
        %v3371 = vadd.f32 %v3237, %v3325
        %v3372 = vadd.f32 %v3238, %v3364
        %v3373 = vadd.f32 %v3239, %v3366
        %s3374 = scalar_lea.vmem %s7, 80
        %v3375 = vld [vmem:[%s3374] sm:$0xf]
        %v3377 = vlaneseq
        %v3378 = vshrl.u32 %v3377, 7
        %v3379 = vsub.s32 0, %v3378
        %v3380 = vrot.slane %v3375, %v3379
        %v3381 = vlaneseq
        %v3382 = vshrl.u32 %v3381, 7
        %v3383 = vsub.s32 1, %v3382
        %v3384 = vrot.slane %v3375, %v3383
        %v3385 = vlaneseq
        %v3386 = vshrl.u32 %v3385, 7
        %v3387 = vsub.s32 2, %v3386
        %v3388 = vrot.slane %v3375, %v3387
        %v3389 = vlaneseq
        %v3390 = vshrl.u32 %v3389, 7
        %v3391 = vsub.s32 3, %v3390
        %v3392 = vrot.slane %v3375, %v3391
        %v3397 = vmul.f32 %v778, %v3380
        %v3398 = vmul.f32 %v777, %v3384
        %v3399 = vmul.f32 %v776, %v3388
        %v3400 = vmul.f32 %v779, %v3392
        %v3401 = vpack.c.bf16 %v3397, %v3397
        %v3402 = vpack.c.bf16 %v3398, %v3398
        %v3403 = vpack.c.bf16 %v3399, %v3399
        %v3404 = vpack.c.bf16 %v3400, %v3400
        %s3405 = scalar_lea.vmem %s2, 80
        %v3406 = vld [vmem:[%s3405] sm:$0xf]
        %v3408 = vsel %vm571, %v3406, 0
        %v3411 = vsel %vm575, %v3401, 0
        %v3414 = vsel %vm575, %v3402, 0
        %v3417 = vsel %vm575, %v3403, 0
        %v3420 = vsel %vm575, %v3404, 0
        %3422 = vmatprep.subr.bf16.mxu0 %v3414
        %3423 = vmatpush1.bf16.msra.mxu0 %v3411
        %3424 = vmatprep.subr.bf16.mxu0 0
        %3425 = vmatpush1.bf16.msra.mxu0 0
        %3426 = vmatprep.subr.bf16.mxu0 0
        %3427 = vmatpush1.bf16.msra.mxu0 0
        %3428 = vmatprep.subr.bf16.mxu0 0
        %3429 = vmatpush1.bf16.msra.mxu0 0
        %3430 = vmatprep.subr.bf16.mxu0 0
        %3431 = vmatpush1.bf16.msra.mxu0 0
        %3432 = vmatprep.subr.bf16.mxu0 0
        %3433 = vmatpush1.bf16.msra.mxu0 0
        %3434 = vmatprep.subr.bf16.mxu0 0
        %3435 = vmatpush1.bf16.msra.mxu0 0
        %3436 = vmatprep.subr.bf16.mxu0 0
        %3437 = vmatpush1.bf16.msra.mxu0 0
        %3438 = vmatprep.subr.bf16.mxu0 0
        %3439 = vmatpush1.bf16.msra.mxu0 0
        %3440 = vmatprep.subr.bf16.mxu0 0
        %3441 = vmatpush1.bf16.msra.mxu0 0
        %3442 = vmatprep.subr.bf16.mxu0 0
        %3443 = vmatpush1.bf16.msra.mxu0 0
        %3444 = vmatprep.subr.bf16.mxu0 0
        %3445 = vmatpush1.bf16.msra.mxu0 0
        %3446 = vmatprep.subr.bf16.mxu0 0
        %3447 = vmatpush1.bf16.msra.mxu0 0
        %3448 = vmatprep.subr.bf16.mxu0 0
        %3449 = vmatpush1.bf16.msra.mxu0 0
        %3450 = vmatprep.subr.bf16.mxu0 0
        %3451 = vmatpush1.bf16.msra.mxu0 0
        %3452 = vmatprep.subr.bf16.mxu0 0
        %3453 = vmatpush1.bf16.msra.mxu0 0
        %3454 = vmatprep.mubr.bf16.mxu0 0
        %3455 = vmatmul.mubr.bf16.gmra.mrb[0].mxu0 %v3408
        %v3456 = vpop.f32.mrb[0].mxu0
        %v3457 = vadd.f32 0.0, %v3456
        %v3458 = vpop.f32.mrb[0].mxu0
        %v3459 = vadd.f32 0.0, %v3458
        %v3460 = vpop.f32.mrb[0].mxu0
        %v3461 = vpop.f32.mrb[0].mxu0
        %3462 = vdwg.mxu0
        %3463 = vmatprep.subr.bf16.mxu0 %v3420
        %3464 = vmatpush1.bf16.msra.mxu0 %v3417
        %3465 = vmatprep.subr.bf16.mxu0 0
        %3466 = vmatpush1.bf16.msra.mxu0 0
        %3467 = vmatprep.subr.bf16.mxu0 0
        %3468 = vmatpush1.bf16.msra.mxu0 0
        %3469 = vmatprep.subr.bf16.mxu0 0
        %3470 = vmatpush1.bf16.msra.mxu0 0
        %3471 = vmatprep.subr.bf16.mxu0 0
        %3472 = vmatpush1.bf16.msra.mxu0 0
        %3473 = vmatprep.subr.bf16.mxu0 0
        %3474 = vmatpush1.bf16.msra.mxu0 0
        %3475 = vmatprep.subr.bf16.mxu0 0
        %3476 = vmatpush1.bf16.msra.mxu0 0
        %3477 = vmatprep.subr.bf16.mxu0 0
        %3478 = vmatpush1.bf16.msra.mxu0 0
        %3479 = vmatprep.subr.bf16.mxu0 0
        %3480 = vmatpush1.bf16.msra.mxu0 0
        %3481 = vmatprep.subr.bf16.mxu0 0
        %3482 = vmatpush1.bf16.msra.mxu0 0
        %3483 = vmatprep.subr.bf16.mxu0 0
        %3484 = vmatpush1.bf16.msra.mxu0 0
        %3485 = vmatprep.subr.bf16.mxu0 0
        %3486 = vmatpush1.bf16.msra.mxu0 0
        %3487 = vmatprep.subr.bf16.mxu0 0
        %3488 = vmatpush1.bf16.msra.mxu0 0
        %3489 = vmatprep.subr.bf16.mxu0 0
        %3490 = vmatpush1.bf16.msra.mxu0 0
        %3491 = vmatprep.subr.bf16.mxu0 0
        %3492 = vmatpush1.bf16.msra.mxu0 0
        %3493 = vmatprep.subr.bf16.mxu0 0
        %3494 = vmatpush1.bf16.msra.mxu0 0
        %3495 = vmatprep.mubr.bf16.mxu0 0
        %3496 = vmatmul.mubr.bf16.gmra.mrb[0].mxu0 %v3408
        %v3497 = vpop.f32.mrb[0].mxu0
        %v3498 = vadd.f32 0.0, %v3497
        %v3499 = vpop.f32.mrb[0].mxu0
        %v3500 = vadd.f32 0.0, %v3499
        %v3501 = vpop.f32.mrb[0].mxu0
        %v3502 = vpop.f32.mrb[0].mxu0
        %3503 = vdwg.mxu0
        %v3504 = vadd.f32 %v3370, %v3457
        %v3505 = vadd.f32 %v3371, %v3459
        %v3506 = vadd.f32 %v3372, %v3498
        %v3507 = vadd.f32 %v3373, %v3500
        %s3508 = scalar_lea.vmem %s7, 84
        %v3509 = vld [vmem:[%s3508] sm:$0xf]
        %v3511 = vlaneseq
        %v3512 = vshrl.u32 %v3511, 7
        %v3513 = vsub.s32 0, %v3512
        %v3514 = vrot.slane %v3509, %v3513
        %v3515 = vlaneseq
        %v3516 = vshrl.u32 %v3515, 7
        %v3517 = vsub.s32 1, %v3516
        %v3518 = vrot.slane %v3509, %v3517
        %v3519 = vlaneseq
        %v3520 = vshrl.u32 %v3519, 7
        %v3521 = vsub.s32 2, %v3520
        %v3522 = vrot.slane %v3509, %v3521
        %v3523 = vlaneseq
        %v3524 = vshrl.u32 %v3523, 7
        %v3525 = vsub.s32 3, %v3524
        %v3526 = vrot.slane %v3509, %v3525
        %v3531 = vmul.f32 %v925, %v3514
        %v3532 = vmul.f32 %v924, %v3518
        %v3533 = vmul.f32 %v923, %v3522
        %v3534 = vmul.f32 %v926, %v3526
        %v3535 = vpack.c.bf16 %v3531, %v3531
        %v3536 = vpack.c.bf16 %v3532, %v3532
        %v3537 = vpack.c.bf16 %v3533, %v3533
        %v3538 = vpack.c.bf16 %v3534, %v3534
        %s3539 = scalar_lea.vmem %s2, 84
        %v3540 = vld [vmem:[%s3539] sm:$0xf]
        %v3542 = vsel %vm571, %v3540, 0
        %v3545 = vsel %vm575, %v3535, 0
        %v3548 = vsel %vm575, %v3536, 0
        %v3551 = vsel %vm575, %v3537, 0
        %v3554 = vsel %vm575, %v3538, 0
        %3556 = vmatprep.subr.bf16.mxu0 %v3548
        %3557 = vmatpush1.bf16.msra.mxu0 %v3545
        %3558 = vmatprep.subr.bf16.mxu0 0
        %3559 = vmatpush1.bf16.msra.mxu0 0
        %3560 = vmatprep.subr.bf16.mxu0 0
        %3561 = vmatpush1.bf16.msra.mxu0 0
        %3562 = vmatprep.subr.bf16.mxu0 0
        %3563 = vmatpush1.bf16.msra.mxu0 0
        %3564 = vmatprep.subr.bf16.mxu0 0
        %3565 = vmatpush1.bf16.msra.mxu0 0
        %3566 = vmatprep.subr.bf16.mxu0 0
        %3567 = vmatpush1.bf16.msra.mxu0 0
        %3568 = vmatprep.subr.bf16.mxu0 0
        %3569 = vmatpush1.bf16.msra.mxu0 0
        %3570 = vmatprep.subr.bf16.mxu0 0
        %3571 = vmatpush1.bf16.msra.mxu0 0
        %3572 = vmatprep.subr.bf16.mxu0 0
        %3573 = vmatpush1.bf16.msra.mxu0 0
        %3574 = vmatprep.subr.bf16.mxu0 0
        %3575 = vmatpush1.bf16.msra.mxu0 0
        %3576 = vmatprep.subr.bf16.mxu0 0
        %3577 = vmatpush1.bf16.msra.mxu0 0
        %3578 = vmatprep.subr.bf16.mxu0 0
        %3579 = vmatpush1.bf16.msra.mxu0 0
        %3580 = vmatprep.subr.bf16.mxu0 0
        %3581 = vmatpush1.bf16.msra.mxu0 0
        %3582 = vmatprep.subr.bf16.mxu0 0
        %3583 = vmatpush1.bf16.msra.mxu0 0
        %3584 = vmatprep.subr.bf16.mxu0 0
        %3585 = vmatpush1.bf16.msra.mxu0 0
        %3586 = vmatprep.subr.bf16.mxu0 0
        %3587 = vmatpush1.bf16.msra.mxu0 0
        %3588 = vmatprep.mubr.bf16.mxu0 0
        %3589 = vmatmul.mubr.bf16.gmra.mrb[0].mxu0 %v3542
        %v3590 = vpop.f32.mrb[0].mxu0
        %v3591 = vadd.f32 0.0, %v3590
        %v3592 = vpop.f32.mrb[0].mxu0
        %v3593 = vadd.f32 0.0, %v3592
        %v3594 = vpop.f32.mrb[0].mxu0
        %v3595 = vpop.f32.mrb[0].mxu0
        %3596 = vdwg.mxu0
        %3597 = vmatprep.subr.bf16.mxu0 %v3554
        %3598 = vmatpush1.bf16.msra.mxu0 %v3551
        %3599 = vmatprep.subr.bf16.mxu0 0
        %3600 = vmatpush1.bf16.msra.mxu0 0
        %3601 = vmatprep.subr.bf16.mxu0 0
        %3602 = vmatpush1.bf16.msra.mxu0 0
        %3603 = vmatprep.subr.bf16.mxu0 0
        %3604 = vmatpush1.bf16.msra.mxu0 0
        %3605 = vmatprep.subr.bf16.mxu0 0
        %3606 = vmatpush1.bf16.msra.mxu0 0
        %3607 = vmatprep.subr.bf16.mxu0 0
        %3608 = vmatpush1.bf16.msra.mxu0 0
        %3609 = vmatprep.subr.bf16.mxu0 0
        %3610 = vmatpush1.bf16.msra.mxu0 0
        %3611 = vmatprep.subr.bf16.mxu0 0
        %3612 = vmatpush1.bf16.msra.mxu0 0
        %3613 = vmatprep.subr.bf16.mxu0 0
        %3614 = vmatpush1.bf16.msra.mxu0 0
        %3615 = vmatprep.subr.bf16.mxu0 0
        %3616 = vmatpush1.bf16.msra.mxu0 0
        %3617 = vmatprep.subr.bf16.mxu0 0
        %3618 = vmatpush1.bf16.msra.mxu0 0
        %3619 = vmatprep.subr.bf16.mxu0 0
        %3620 = vmatpush1.bf16.msra.mxu0 0
        %3621 = vmatprep.subr.bf16.mxu0 0
        %3622 = vmatpush1.bf16.msra.mxu0 0
        %3623 = vmatprep.subr.bf16.mxu0 0
        %3624 = vmatpush1.bf16.msra.mxu0 0
        %3625 = vmatprep.subr.bf16.mxu0 0
        %3626 = vmatpush1.bf16.msra.mxu0 0
        %3627 = vmatprep.subr.bf16.mxu0 0
        %3628 = vmatpush1.bf16.msra.mxu0 0
        %3629 = vmatprep.mubr.bf16.mxu0 0
        %3630 = vmatmul.mubr.bf16.gmra.mrb[0].mxu0 %v3542
        %v3631 = vpop.f32.mrb[0].mxu0
        %v3632 = vadd.f32 0.0, %v3631
        %v3633 = vpop.f32.mrb[0].mxu0
        %v3634 = vadd.f32 0.0, %v3633
        %v3635 = vpop.f32.mrb[0].mxu0
        %v3636 = vpop.f32.mrb[0].mxu0
        %3637 = vdwg.mxu0
        %v3638 = vadd.f32 %v3504, %v3591
        %v3639 = vadd.f32 %v3505, %v3593
        %v3640 = vadd.f32 %v3506, %v3632
        %v3641 = vadd.f32 %v3507, %v3634
        %s3642 = scalar_lea.vmem %s7, 88
        %v3643 = vld [vmem:[%s3642] sm:$0xf]
        %v3645 = vlaneseq
        %v3646 = vshrl.u32 %v3645, 7
        %v3647 = vsub.s32 0, %v3646
        %v3648 = vrot.slane %v3643, %v3647
        %v3649 = vlaneseq
        %v3650 = vshrl.u32 %v3649, 7
        %v3651 = vsub.s32 1, %v3650
        %v3652 = vrot.slane %v3643, %v3651
        %v3653 = vlaneseq
        %v3654 = vshrl.u32 %v3653, 7
        %v3655 = vsub.s32 2, %v3654
        %v3656 = vrot.slane %v3643, %v3655
        %v3657 = vlaneseq
        %v3658 = vshrl.u32 %v3657, 7
        %v3659 = vsub.s32 3, %v3658
        %v3660 = vrot.slane %v3643, %v3659
        %v3665 = vmul.f32 %v1072, %v3648
        %v3666 = vmul.f32 %v1071, %v3652
        %v3667 = vmul.f32 %v1070, %v3656
        %v3668 = vmul.f32 %v1073, %v3660
        %v3669 = vpack.c.bf16 %v3665, %v3665
        %v3670 = vpack.c.bf16 %v3666, %v3666
        %v3671 = vpack.c.bf16 %v3667, %v3667
        %v3672 = vpack.c.bf16 %v3668, %v3668
        %s3673 = scalar_lea.vmem %s2, 88
        %v3674 = vld [vmem:[%s3673] sm:$0xf]
        %v3676 = vsel %vm571, %v3674, 0
        %v3679 = vsel %vm575, %v3669, 0
        %v3682 = vsel %vm575, %v3670, 0
        %v3685 = vsel %vm575, %v3671, 0
        %v3688 = vsel %vm575, %v3672, 0
        %3690 = vmatprep.subr.bf16.mxu0 %v3682
        %3691 = vmatpush1.bf16.msra.mxu0 %v3679
        %3692 = vmatprep.subr.bf16.mxu0 0
        %3693 = vmatpush1.bf16.msra.mxu0 0
        %3694 = vmatprep.subr.bf16.mxu0 0
        %3695 = vmatpush1.bf16.msra.mxu0 0
        %3696 = vmatprep.subr.bf16.mxu0 0
        %3697 = vmatpush1.bf16.msra.mxu0 0
        %3698 = vmatprep.subr.bf16.mxu0 0
        %3699 = vmatpush1.bf16.msra.mxu0 0
        %3700 = vmatprep.subr.bf16.mxu0 0
        %3701 = vmatpush1.bf16.msra.mxu0 0
        %3702 = vmatprep.subr.bf16.mxu0 0
        %3703 = vmatpush1.bf16.msra.mxu0 0
        %3704 = vmatprep.subr.bf16.mxu0 0
        %3705 = vmatpush1.bf16.msra.mxu0 0
        %3706 = vmatprep.subr.bf16.mxu0 0
        %3707 = vmatpush1.bf16.msra.mxu0 0
        %3708 = vmatprep.subr.bf16.mxu0 0
        %3709 = vmatpush1.bf16.msra.mxu0 0
        %3710 = vmatprep.subr.bf16.mxu0 0
        %3711 = vmatpush1.bf16.msra.mxu0 0
        %3712 = vmatprep.subr.bf16.mxu0 0
        %3713 = vmatpush1.bf16.msra.mxu0 0
        %3714 = vmatprep.subr.bf16.mxu0 0
        %3715 = vmatpush1.bf16.msra.mxu0 0
        %3716 = vmatprep.subr.bf16.mxu0 0
        %3717 = vmatpush1.bf16.msra.mxu0 0
        %3718 = vmatprep.subr.bf16.mxu0 0
        %3719 = vmatpush1.bf16.msra.mxu0 0
        %3720 = vmatprep.subr.bf16.mxu0 0
        %3721 = vmatpush1.bf16.msra.mxu0 0
        %3722 = vmatprep.mubr.bf16.mxu0 0
        %3723 = vmatmul.mubr.bf16.gmra.mrb[0].mxu0 %v3676
        %v3724 = vpop.f32.mrb[0].mxu0
        %v3725 = vadd.f32 0.0, %v3724
        %v3726 = vpop.f32.mrb[0].mxu0
        %v3727 = vadd.f32 0.0, %v3726
        %v3728 = vpop.f32.mrb[0].mxu0
        %v3729 = vpop.f32.mrb[0].mxu0
        %3730 = vdwg.mxu0
        %3731 = vmatprep.subr.bf16.mxu0 %v3688
        %3732 = vmatpush1.bf16.msra.mxu0 %v3685
        %3733 = vmatprep.subr.bf16.mxu0 0
        %3734 = vmatpush1.bf16.msra.mxu0 0
        %3735 = vmatprep.subr.bf16.mxu0 0
        %3736 = vmatpush1.bf16.msra.mxu0 0
        %3737 = vmatprep.subr.bf16.mxu0 0
        %3738 = vmatpush1.bf16.msra.mxu0 0
        %3739 = vmatprep.subr.bf16.mxu0 0
        %3740 = vmatpush1.bf16.msra.mxu0 0
        %3741 = vmatprep.subr.bf16.mxu0 0
        %3742 = vmatpush1.bf16.msra.mxu0 0
        %3743 = vmatprep.subr.bf16.mxu0 0
        %3744 = vmatpush1.bf16.msra.mxu0 0
        %3745 = vmatprep.subr.bf16.mxu0 0
        %3746 = vmatpush1.bf16.msra.mxu0 0
        %3747 = vmatprep.subr.bf16.mxu0 0
        %3748 = vmatpush1.bf16.msra.mxu0 0
        %3749 = vmatprep.subr.bf16.mxu0 0
        %3750 = vmatpush1.bf16.msra.mxu0 0
        %3751 = vmatprep.subr.bf16.mxu0 0
        %3752 = vmatpush1.bf16.msra.mxu0 0
        %3753 = vmatprep.subr.bf16.mxu0 0
        %3754 = vmatpush1.bf16.msra.mxu0 0
        %3755 = vmatprep.subr.bf16.mxu0 0
        %3756 = vmatpush1.bf16.msra.mxu0 0
        %3757 = vmatprep.subr.bf16.mxu0 0
        %3758 = vmatpush1.bf16.msra.mxu0 0
        %3759 = vmatprep.subr.bf16.mxu0 0
        %3760 = vmatpush1.bf16.msra.mxu0 0
        %3761 = vmatprep.subr.bf16.mxu0 0
        %3762 = vmatpush1.bf16.msra.mxu0 0
        %3763 = vmatprep.mubr.bf16.mxu0 0
        %3764 = vmatmul.mubr.bf16.gmra.mrb[0].mxu0 %v3676
        %v3765 = vpop.f32.mrb[0].mxu0
        %v3766 = vadd.f32 0.0, %v3765
        %v3767 = vpop.f32.mrb[0].mxu0
        %v3768 = vadd.f32 0.0, %v3767
        %v3769 = vpop.f32.mrb[0].mxu0
        %v3770 = vpop.f32.mrb[0].mxu0
        %3771 = vdwg.mxu0
        %v3772 = vadd.f32 %v3638, %v3725
        %v3773 = vadd.f32 %v3639, %v3727
        %v3774 = vadd.f32 %v3640, %v3766
        %v3775 = vadd.f32 %v3641, %v3768
        %s3776 = scalar_lea.vmem %s7, 92
        %v3777 = vld [vmem:[%s3776] sm:$0xf]
        %v3779 = vlaneseq
        %v3780 = vshrl.u32 %v3779, 7
        %v3781 = vsub.s32 0, %v3780
        %v3782 = vrot.slane %v3777, %v3781
        %v3783 = vlaneseq
        %v3784 = vshrl.u32 %v3783, 7
        %v3785 = vsub.s32 1, %v3784
        %v3786 = vrot.slane %v3777, %v3785
        %v3787 = vlaneseq
        %v3788 = vshrl.u32 %v3787, 7
        %v3789 = vsub.s32 2, %v3788
        %v3790 = vrot.slane %v3777, %v3789
        %v3791 = vlaneseq
        %v3792 = vshrl.u32 %v3791, 7
        %v3793 = vsub.s32 3, %v3792
        %v3794 = vrot.slane %v3777, %v3793
        %v3799 = vmul.f32 %v1219, %v3782
        %v3800 = vmul.f32 %v1218, %v3786
        %v3801 = vmul.f32 %v1217, %v3790
        %v3802 = vmul.f32 %v1220, %v3794
        %v3803 = vpack.c.bf16 %v3799, %v3799
        %v3804 = vpack.c.bf16 %v3800, %v3800
        %v3805 = vpack.c.bf16 %v3801, %v3801
        %v3806 = vpack.c.bf16 %v3802, %v3802
        %s3807 = scalar_lea.vmem %s2, 92
        %v3808 = vld [vmem:[%s3807] sm:$0xf]
        %v3810 = vsel %vm571, %v3808, 0
        %v3813 = vsel %vm575, %v3803, 0
        %v3816 = vsel %vm575, %v3804, 0
        %v3819 = vsel %vm575, %v3805, 0
        %v3822 = vsel %vm575, %v3806, 0
        %3824 = vmatprep.subr.bf16.mxu0 %v3816
        %3825 = vmatpush1.bf16.msra.mxu0 %v3813
        %3826 = vmatprep.subr.bf16.mxu0 0
        %3827 = vmatpush1.bf16.msra.mxu0 0
        %3828 = vmatprep.subr.bf16.mxu0 0
        %3829 = vmatpush1.bf16.msra.mxu0 0
        %3830 = vmatprep.subr.bf16.mxu0 0
        %3831 = vmatpush1.bf16.msra.mxu0 0
        %3832 = vmatprep.subr.bf16.mxu0 0
        %3833 = vmatpush1.bf16.msra.mxu0 0
        %3834 = vmatprep.subr.bf16.mxu0 0
        %3835 = vmatpush1.bf16.msra.mxu0 0
        %3836 = vmatprep.subr.bf16.mxu0 0
        %3837 = vmatpush1.bf16.msra.mxu0 0
        %3838 = vmatprep.subr.bf16.mxu0 0
        %3839 = vmatpush1.bf16.msra.mxu0 0
        %3840 = vmatprep.subr.bf16.mxu0 0
        %3841 = vmatpush1.bf16.msra.mxu0 0
        %3842 = vmatprep.subr.bf16.mxu0 0
        %3843 = vmatpush1.bf16.msra.mxu0 0
        %3844 = vmatprep.subr.bf16.mxu0 0
        %3845 = vmatpush1.bf16.msra.mxu0 0
        %3846 = vmatprep.subr.bf16.mxu0 0
        %3847 = vmatpush1.bf16.msra.mxu0 0
        %3848 = vmatprep.subr.bf16.mxu0 0
        %3849 = vmatpush1.bf16.msra.mxu0 0
        %3850 = vmatprep.subr.bf16.mxu0 0
        %3851 = vmatpush1.bf16.msra.mxu0 0
        %3852 = vmatprep.subr.bf16.mxu0 0
        %3853 = vmatpush1.bf16.msra.mxu0 0
        %3854 = vmatprep.subr.bf16.mxu0 0
        %3855 = vmatpush1.bf16.msra.mxu0 0
        %3856 = vmatprep.mubr.bf16.mxu0 0
        %3857 = vmatmul.mubr.bf16.gmra.mrb[0].mxu0 %v3810
        %v3858 = vpop.f32.mrb[0].mxu0
        %v3859 = vadd.f32 0.0, %v3858
        %v3860 = vpop.f32.mrb[0].mxu0
        %v3861 = vadd.f32 0.0, %v3860
        %v3862 = vpop.f32.mrb[0].mxu0
        %v3863 = vpop.f32.mrb[0].mxu0
        %3864 = vdwg.mxu0
        %3865 = vmatprep.subr.bf16.mxu0 %v3822
        %3866 = vmatpush1.bf16.msra.mxu0 %v3819
        %3867 = vmatprep.subr.bf16.mxu0 0
        %3868 = vmatpush1.bf16.msra.mxu0 0
        %3869 = vmatprep.subr.bf16.mxu0 0
        %3870 = vmatpush1.bf16.msra.mxu0 0
        %3871 = vmatprep.subr.bf16.mxu0 0
        %3872 = vmatpush1.bf16.msra.mxu0 0
        %3873 = vmatprep.subr.bf16.mxu0 0
        %3874 = vmatpush1.bf16.msra.mxu0 0
        %3875 = vmatprep.subr.bf16.mxu0 0
        %3876 = vmatpush1.bf16.msra.mxu0 0
        %3877 = vmatprep.subr.bf16.mxu0 0
        %3878 = vmatpush1.bf16.msra.mxu0 0
        %3879 = vmatprep.subr.bf16.mxu0 0
        %3880 = vmatpush1.bf16.msra.mxu0 0
        %3881 = vmatprep.subr.bf16.mxu0 0
        %3882 = vmatpush1.bf16.msra.mxu0 0
        %3883 = vmatprep.subr.bf16.mxu0 0
        %3884 = vmatpush1.bf16.msra.mxu0 0
        %3885 = vmatprep.subr.bf16.mxu0 0
        %3886 = vmatpush1.bf16.msra.mxu0 0
        %3887 = vmatprep.subr.bf16.mxu0 0
        %3888 = vmatpush1.bf16.msra.mxu0 0
        %3889 = vmatprep.subr.bf16.mxu0 0
        %3890 = vmatpush1.bf16.msra.mxu0 0
        %3891 = vmatprep.subr.bf16.mxu0 0
        %3892 = vmatpush1.bf16.msra.mxu0 0
        %3893 = vmatprep.subr.bf16.mxu0 0
        %3894 = vmatpush1.bf16.msra.mxu0 0
        %3895 = vmatprep.subr.bf16.mxu0 0
        %3896 = vmatpush1.bf16.msra.mxu0 0
        %3897 = vmatprep.mubr.bf16.mxu0 0
        %3898 = vmatmul.mubr.bf16.gmra.mrb[0].mxu0 %v3810
        %v3899 = vpop.f32.mrb[0].mxu0
        %v3900 = vadd.f32 0.0, %v3899
        %v3901 = vpop.f32.mrb[0].mxu0
        %v3902 = vadd.f32 0.0, %v3901
        %v3903 = vpop.f32.mrb[0].mxu0
        %v3904 = vpop.f32.mrb[0].mxu0
        %3905 = vdwg.mxu0
        %v3906 = vadd.f32 %v3772, %v3859
        %v3907 = vadd.f32 %v3773, %v3861
        %v3908 = vadd.f32 %v3774, %v3900
        %v3909 = vadd.f32 %v3775, %v3902
        %s3910 = scalar_lea.vmem %s7, 96
        %v3911 = vld [vmem:[%s3910] sm:$0xf]
        %v3913 = vlaneseq
        %v3914 = vshrl.u32 %v3913, 7
        %v3915 = vsub.s32 0, %v3914
        %v3916 = vrot.slane %v3911, %v3915
        %v3917 = vlaneseq
        %v3918 = vshrl.u32 %v3917, 7
        %v3919 = vsub.s32 1, %v3918
        %v3920 = vrot.slane %v3911, %v3919
        %v3921 = vlaneseq
        %v3922 = vshrl.u32 %v3921, 7
        %v3923 = vsub.s32 2, %v3922
        %v3924 = vrot.slane %v3911, %v3923
        %v3925 = vlaneseq
        %v3926 = vshrl.u32 %v3925, 7
        %v3927 = vsub.s32 3, %v3926
        %v3928 = vrot.slane %v3911, %v3927
        %v3933 = vmul.f32 %v1366, %v3916
        %v3934 = vmul.f32 %v1365, %v3920
        %v3935 = vmul.f32 %v1364, %v3924
        %v3936 = vmul.f32 %v1367, %v3928
        %v3937 = vpack.c.bf16 %v3933, %v3933
        %v3938 = vpack.c.bf16 %v3934, %v3934
        %v3939 = vpack.c.bf16 %v3935, %v3935
        %v3940 = vpack.c.bf16 %v3936, %v3936
        %s3941 = scalar_lea.vmem %s2, 96
        %v3942 = vld [vmem:[%s3941] sm:$0xf]
        %v3944 = vsel %vm571, %v3942, 0
        %v3947 = vsel %vm575, %v3937, 0
        %v3950 = vsel %vm575, %v3938, 0
        %v3953 = vsel %vm575, %v3939, 0
        %v3956 = vsel %vm575, %v3940, 0
        %3958 = vmatprep.subr.bf16.mxu0 %v3950
        %3959 = vmatpush1.bf16.msra.mxu0 %v3947
        %3960 = vmatprep.subr.bf16.mxu0 0
        %3961 = vmatpush1.bf16.msra.mxu0 0
        %3962 = vmatprep.subr.bf16.mxu0 0
        %3963 = vmatpush1.bf16.msra.mxu0 0
        %3964 = vmatprep.subr.bf16.mxu0 0
        %3965 = vmatpush1.bf16.msra.mxu0 0
        %3966 = vmatprep.subr.bf16.mxu0 0
        %3967 = vmatpush1.bf16.msra.mxu0 0
        %3968 = vmatprep.subr.bf16.mxu0 0
        %3969 = vmatpush1.bf16.msra.mxu0 0
        %3970 = vmatprep.subr.bf16.mxu0 0
        %3971 = vmatpush1.bf16.msra.mxu0 0
        %3972 = vmatprep.subr.bf16.mxu0 0
        %3973 = vmatpush1.bf16.msra.mxu0 0
        %3974 = vmatprep.subr.bf16.mxu0 0
        %3975 = vmatpush1.bf16.msra.mxu0 0
        %3976 = vmatprep.subr.bf16.mxu0 0
        %3977 = vmatpush1.bf16.msra.mxu0 0
        %3978 = vmatprep.subr.bf16.mxu0 0
        %3979 = vmatpush1.bf16.msra.mxu0 0
        %3980 = vmatprep.subr.bf16.mxu0 0
        %3981 = vmatpush1.bf16.msra.mxu0 0
        %3982 = vmatprep.subr.bf16.mxu0 0
        %3983 = vmatpush1.bf16.msra.mxu0 0
        %3984 = vmatprep.subr.bf16.mxu0 0
        %3985 = vmatpush1.bf16.msra.mxu0 0
        %3986 = vmatprep.subr.bf16.mxu0 0
        %3987 = vmatpush1.bf16.msra.mxu0 0
        %3988 = vmatprep.subr.bf16.mxu0 0
        %3989 = vmatpush1.bf16.msra.mxu0 0
        %3990 = vmatprep.mubr.bf16.mxu0 0
        %3991 = vmatmul.mubr.bf16.gmra.mrb[0].mxu0 %v3944
        %v3992 = vpop.f32.mrb[0].mxu0
        %v3993 = vadd.f32 0.0, %v3992
        %v3994 = vpop.f32.mrb[0].mxu0
        %v3995 = vadd.f32 0.0, %v3994
        %v3996 = vpop.f32.mrb[0].mxu0
        %v3997 = vpop.f32.mrb[0].mxu0
        %3998 = vdwg.mxu0
        %3999 = vmatprep.subr.bf16.mxu0 %v3956
        %4000 = vmatpush1.bf16.msra.mxu0 %v3953
        %4001 = vmatprep.subr.bf16.mxu0 0
        %4002 = vmatpush1.bf16.msra.mxu0 0
        %4003 = vmatprep.subr.bf16.mxu0 0
        %4004 = vmatpush1.bf16.msra.mxu0 0
        %4005 = vmatprep.subr.bf16.mxu0 0
        %4006 = vmatpush1.bf16.msra.mxu0 0
        %4007 = vmatprep.subr.bf16.mxu0 0
        %4008 = vmatpush1.bf16.msra.mxu0 0
        %4009 = vmatprep.subr.bf16.mxu0 0
        %4010 = vmatpush1.bf16.msra.mxu0 0
        %4011 = vmatprep.subr.bf16.mxu0 0
        %4012 = vmatpush1.bf16.msra.mxu0 0
        %4013 = vmatprep.subr.bf16.mxu0 0
        %4014 = vmatpush1.bf16.msra.mxu0 0
        %4015 = vmatprep.subr.bf16.mxu0 0
        %4016 = vmatpush1.bf16.msra.mxu0 0
        %4017 = vmatprep.subr.bf16.mxu0 0
        %4018 = vmatpush1.bf16.msra.mxu0 0
        %4019 = vmatprep.subr.bf16.mxu0 0
        %4020 = vmatpush1.bf16.msra.mxu0 0
        %4021 = vmatprep.subr.bf16.mxu0 0
        %4022 = vmatpush1.bf16.msra.mxu0 0
        %4023 = vmatprep.subr.bf16.mxu0 0
        %4024 = vmatpush1.bf16.msra.mxu0 0
        %4025 = vmatprep.subr.bf16.mxu0 0
        %4026 = vmatpush1.bf16.msra.mxu0 0
        %4027 = vmatprep.subr.bf16.mxu0 0
        %4028 = vmatpush1.bf16.msra.mxu0 0
        %4029 = vmatprep.subr.bf16.mxu0 0
        %4030 = vmatpush1.bf16.msra.mxu0 0
        %4031 = vmatprep.mubr.bf16.mxu0 0
        %4032 = vmatmul.mubr.bf16.gmra.mrb[0].mxu0 %v3944
        %v4033 = vpop.f32.mrb[0].mxu0
        %v4034 = vadd.f32 0.0, %v4033
        %v4035 = vpop.f32.mrb[0].mxu0
        %v4036 = vadd.f32 0.0, %v4035
        %v4037 = vpop.f32.mrb[0].mxu0
        %v4038 = vpop.f32.mrb[0].mxu0
        %4039 = vdwg.mxu0
        %v4040 = vadd.f32 %v3906, %v3993
        %v4041 = vadd.f32 %v3907, %v3995
        %v4042 = vadd.f32 %v3908, %v4034
        %v4043 = vadd.f32 %v3909, %v4036
        %s4044 = scalar_lea.vmem %s7, 100
        %v4045 = vld [vmem:[%s4044] sm:$0xf]
        %v4047 = vlaneseq
        %v4048 = vshrl.u32 %v4047, 7
        %v4049 = vsub.s32 0, %v4048
        %v4050 = vrot.slane %v4045, %v4049
        %v4051 = vlaneseq
        %v4052 = vshrl.u32 %v4051, 7
        %v4053 = vsub.s32 1, %v4052
        %v4054 = vrot.slane %v4045, %v4053
        %v4055 = vlaneseq
        %v4056 = vshrl.u32 %v4055, 7
        %v4057 = vsub.s32 2, %v4056
        %v4058 = vrot.slane %v4045, %v4057
        %v4059 = vlaneseq
        %v4060 = vshrl.u32 %v4059, 7
        %v4061 = vsub.s32 3, %v4060
        %v4062 = vrot.slane %v4045, %v4061
        %v4067 = vmul.f32 %v1513, %v4050
        %v4068 = vmul.f32 %v1512, %v4054
        %v4069 = vmul.f32 %v1511, %v4058
        %v4070 = vmul.f32 %v1514, %v4062
        %v4071 = vpack.c.bf16 %v4067, %v4067
        %v4072 = vpack.c.bf16 %v4068, %v4068
        %v4073 = vpack.c.bf16 %v4069, %v4069
        %v4074 = vpack.c.bf16 %v4070, %v4070
        %s4075 = scalar_lea.vmem %s2, 100
        %v4076 = vld [vmem:[%s4075] sm:$0xf]
        %v4078 = vsel %vm571, %v4076, 0
        %v4081 = vsel %vm575, %v4071, 0
        %v4084 = vsel %vm575, %v4072, 0
        %v4087 = vsel %vm575, %v4073, 0
        %v4090 = vsel %vm575, %v4074, 0
        %4092 = vmatprep.subr.bf16.mxu0 %v4084
        %4093 = vmatpush1.bf16.msra.mxu0 %v4081
        %4094 = vmatprep.subr.bf16.mxu0 0
        %4095 = vmatpush1.bf16.msra.mxu0 0
        %4096 = vmatprep.subr.bf16.mxu0 0
        %4097 = vmatpush1.bf16.msra.mxu0 0
        %4098 = vmatprep.subr.bf16.mxu0 0
        %4099 = vmatpush1.bf16.msra.mxu0 0
        %4100 = vmatprep.subr.bf16.mxu0 0
        %4101 = vmatpush1.bf16.msra.mxu0 0
        %4102 = vmatprep.subr.bf16.mxu0 0
        %4103 = vmatpush1.bf16.msra.mxu0 0
        %4104 = vmatprep.subr.bf16.mxu0 0
        %4105 = vmatpush1.bf16.msra.mxu0 0
        %4106 = vmatprep.subr.bf16.mxu0 0
        %4107 = vmatpush1.bf16.msra.mxu0 0
        %4108 = vmatprep.subr.bf16.mxu0 0
        %4109 = vmatpush1.bf16.msra.mxu0 0
        %4110 = vmatprep.subr.bf16.mxu0 0
        %4111 = vmatpush1.bf16.msra.mxu0 0
        %4112 = vmatprep.subr.bf16.mxu0 0
        %4113 = vmatpush1.bf16.msra.mxu0 0
        %4114 = vmatprep.subr.bf16.mxu0 0
        %4115 = vmatpush1.bf16.msra.mxu0 0
        %4116 = vmatprep.subr.bf16.mxu0 0
        %4117 = vmatpush1.bf16.msra.mxu0 0
        %4118 = vmatprep.subr.bf16.mxu0 0
        %4119 = vmatpush1.bf16.msra.mxu0 0
        %4120 = vmatprep.subr.bf16.mxu0 0
        %4121 = vmatpush1.bf16.msra.mxu0 0
        %4122 = vmatprep.subr.bf16.mxu0 0
        %4123 = vmatpush1.bf16.msra.mxu0 0
        %4124 = vmatprep.mubr.bf16.mxu0 0
        %4125 = vmatmul.mubr.bf16.gmra.mrb[0].mxu0 %v4078
        %v4126 = vpop.f32.mrb[0].mxu0
        %v4127 = vadd.f32 0.0, %v4126
        %v4128 = vpop.f32.mrb[0].mxu0
        %v4129 = vadd.f32 0.0, %v4128
        %v4130 = vpop.f32.mrb[0].mxu0
        %v4131 = vpop.f32.mrb[0].mxu0
        %4132 = vdwg.mxu0
        %4133 = vmatprep.subr.bf16.mxu0 %v4090
        %4134 = vmatpush1.bf16.msra.mxu0 %v4087
        %4135 = vmatprep.subr.bf16.mxu0 0
        %4136 = vmatpush1.bf16.msra.mxu0 0
        %4137 = vmatprep.subr.bf16.mxu0 0
        %4138 = vmatpush1.bf16.msra.mxu0 0
        %4139 = vmatprep.subr.bf16.mxu0 0
        %4140 = vmatpush1.bf16.msra.mxu0 0
        %4141 = vmatprep.subr.bf16.mxu0 0
        %4142 = vmatpush1.bf16.msra.mxu0 0
        %4143 = vmatprep.subr.bf16.mxu0 0
        %4144 = vmatpush1.bf16.msra.mxu0 0
        %4145 = vmatprep.subr.bf16.mxu0 0
        %4146 = vmatpush1.bf16.msra.mxu0 0
        %4147 = vmatprep.subr.bf16.mxu0 0
        %4148 = vmatpush1.bf16.msra.mxu0 0
        %4149 = vmatprep.subr.bf16.mxu0 0
        %4150 = vmatpush1.bf16.msra.mxu0 0
        %4151 = vmatprep.subr.bf16.mxu0 0
        %4152 = vmatpush1.bf16.msra.mxu0 0
        %4153 = vmatprep.subr.bf16.mxu0 0
        %4154 = vmatpush1.bf16.msra.mxu0 0
        %4155 = vmatprep.subr.bf16.mxu0 0
        %4156 = vmatpush1.bf16.msra.mxu0 0
        %4157 = vmatprep.subr.bf16.mxu0 0
        %4158 = vmatpush1.bf16.msra.mxu0 0
        %4159 = vmatprep.subr.bf16.mxu0 0
        %4160 = vmatpush1.bf16.msra.mxu0 0
        %4161 = vmatprep.subr.bf16.mxu0 0
        %4162 = vmatpush1.bf16.msra.mxu0 0
        %4163 = vmatprep.subr.bf16.mxu0 0
        %4164 = vmatpush1.bf16.msra.mxu0 0
        %4165 = vmatprep.mubr.bf16.mxu0 0
        %4166 = vmatmul.mubr.bf16.gmra.mrb[0].mxu0 %v4078
        %v4167 = vpop.f32.mrb[0].mxu0
        %v4168 = vadd.f32 0.0, %v4167
        %v4169 = vpop.f32.mrb[0].mxu0
        %v4170 = vadd.f32 0.0, %v4169
        %v4171 = vpop.f32.mrb[0].mxu0
        %v4172 = vpop.f32.mrb[0].mxu0
        %4173 = vdwg.mxu0
        %v4174 = vadd.f32 %v4040, %v4127
        %v4175 = vadd.f32 %v4041, %v4129
        %v4176 = vadd.f32 %v4042, %v4168
        %v4177 = vadd.f32 %v4043, %v4170
        %s4178 = scalar_lea.vmem %s7, 104
        %v4179 = vld [vmem:[%s4178] sm:$0xf]
        %v4181 = vlaneseq
        %v4182 = vshrl.u32 %v4181, 7
        %v4183 = vsub.s32 0, %v4182
        %v4184 = vrot.slane %v4179, %v4183
        %v4185 = vlaneseq
        %v4186 = vshrl.u32 %v4185, 7
        %v4187 = vsub.s32 1, %v4186
        %v4188 = vrot.slane %v4179, %v4187
        %v4189 = vlaneseq
        %v4190 = vshrl.u32 %v4189, 7
        %v4191 = vsub.s32 2, %v4190
        %v4192 = vrot.slane %v4179, %v4191
        %v4193 = vlaneseq
        %v4194 = vshrl.u32 %v4193, 7
        %v4195 = vsub.s32 3, %v4194
        %v4196 = vrot.slane %v4179, %v4195
        %v4201 = vmul.f32 %v1660, %v4184
        %v4202 = vmul.f32 %v1659, %v4188
        %v4203 = vmul.f32 %v1658, %v4192
        %v4204 = vmul.f32 %v1661, %v4196
        %v4205 = vpack.c.bf16 %v4201, %v4201
        %v4206 = vpack.c.bf16 %v4202, %v4202
        %v4207 = vpack.c.bf16 %v4203, %v4203
        %v4208 = vpack.c.bf16 %v4204, %v4204
        %s4209 = scalar_lea.vmem %s2, 104
        %v4210 = vld [vmem:[%s4209] sm:$0xf]
        %v4212 = vsel %vm571, %v4210, 0
        %v4215 = vsel %vm575, %v4205, 0
        %v4218 = vsel %vm575, %v4206, 0
        %v4221 = vsel %vm575, %v4207, 0
        %v4224 = vsel %vm575, %v4208, 0
        %4226 = vmatprep.subr.bf16.mxu0 %v4218
        %4227 = vmatpush1.bf16.msra.mxu0 %v4215
        %4228 = vmatprep.subr.bf16.mxu0 0
        %4229 = vmatpush1.bf16.msra.mxu0 0
        %4230 = vmatprep.subr.bf16.mxu0 0
        %4231 = vmatpush1.bf16.msra.mxu0 0
        %4232 = vmatprep.subr.bf16.mxu0 0
        %4233 = vmatpush1.bf16.msra.mxu0 0
        %4234 = vmatprep.subr.bf16.mxu0 0
        %4235 = vmatpush1.bf16.msra.mxu0 0
        %4236 = vmatprep.subr.bf16.mxu0 0
        %4237 = vmatpush1.bf16.msra.mxu0 0
        %4238 = vmatprep.subr.bf16.mxu0 0
        %4239 = vmatpush1.bf16.msra.mxu0 0
        %4240 = vmatprep.subr.bf16.mxu0 0
        %4241 = vmatpush1.bf16.msra.mxu0 0
        %4242 = vmatprep.subr.bf16.mxu0 0
        %4243 = vmatpush1.bf16.msra.mxu0 0
        %4244 = vmatprep.subr.bf16.mxu0 0
        %4245 = vmatpush1.bf16.msra.mxu0 0
        %4246 = vmatprep.subr.bf16.mxu0 0
        %4247 = vmatpush1.bf16.msra.mxu0 0
        %4248 = vmatprep.subr.bf16.mxu0 0
        %4249 = vmatpush1.bf16.msra.mxu0 0
        %4250 = vmatprep.subr.bf16.mxu0 0
        %4251 = vmatpush1.bf16.msra.mxu0 0
        %4252 = vmatprep.subr.bf16.mxu0 0
        %4253 = vmatpush1.bf16.msra.mxu0 0
        %4254 = vmatprep.subr.bf16.mxu0 0
        %4255 = vmatpush1.bf16.msra.mxu0 0
        %4256 = vmatprep.subr.bf16.mxu0 0
        %4257 = vmatpush1.bf16.msra.mxu0 0
        %4258 = vmatprep.mubr.bf16.mxu0 0
        %4259 = vmatmul.mubr.bf16.gmra.mrb[0].mxu0 %v4212
        %v4260 = vpop.f32.mrb[0].mxu0
        %v4261 = vadd.f32 0.0, %v4260
        %v4262 = vpop.f32.mrb[0].mxu0
        %v4263 = vadd.f32 0.0, %v4262
        %v4264 = vpop.f32.mrb[0].mxu0
        %v4265 = vpop.f32.mrb[0].mxu0
        %4266 = vdwg.mxu0
        %4267 = vmatprep.subr.bf16.mxu0 %v4224
        %4268 = vmatpush1.bf16.msra.mxu0 %v4221
        %4269 = vmatprep.subr.bf16.mxu0 0
        %4270 = vmatpush1.bf16.msra.mxu0 0
        %4271 = vmatprep.subr.bf16.mxu0 0
        %4272 = vmatpush1.bf16.msra.mxu0 0
        %4273 = vmatprep.subr.bf16.mxu0 0
        %4274 = vmatpush1.bf16.msra.mxu0 0
        %4275 = vmatprep.subr.bf16.mxu0 0
        %4276 = vmatpush1.bf16.msra.mxu0 0
        %4277 = vmatprep.subr.bf16.mxu0 0
        %4278 = vmatpush1.bf16.msra.mxu0 0
        %4279 = vmatprep.subr.bf16.mxu0 0
        %4280 = vmatpush1.bf16.msra.mxu0 0
        %4281 = vmatprep.subr.bf16.mxu0 0
        %4282 = vmatpush1.bf16.msra.mxu0 0
        %4283 = vmatprep.subr.bf16.mxu0 0
        %4284 = vmatpush1.bf16.msra.mxu0 0
        %4285 = vmatprep.subr.bf16.mxu0 0
        %4286 = vmatpush1.bf16.msra.mxu0 0
        %4287 = vmatprep.subr.bf16.mxu0 0
        %4288 = vmatpush1.bf16.msra.mxu0 0
        %4289 = vmatprep.subr.bf16.mxu0 0
        %4290 = vmatpush1.bf16.msra.mxu0 0
        %4291 = vmatprep.subr.bf16.mxu0 0
        %4292 = vmatpush1.bf16.msra.mxu0 0
        %4293 = vmatprep.subr.bf16.mxu0 0
        %4294 = vmatpush1.bf16.msra.mxu0 0
        %4295 = vmatprep.subr.bf16.mxu0 0
        %4296 = vmatpush1.bf16.msra.mxu0 0
        %4297 = vmatprep.subr.bf16.mxu0 0
        %4298 = vmatpush1.bf16.msra.mxu0 0
        %4299 = vmatprep.mubr.bf16.mxu0 0
        %4300 = vmatmul.mubr.bf16.gmra.mrb[0].mxu0 %v4212
        %v4301 = vpop.f32.mrb[0].mxu0
        %v4302 = vadd.f32 0.0, %v4301
        %v4303 = vpop.f32.mrb[0].mxu0
        %v4304 = vadd.f32 0.0, %v4303
        %v4305 = vpop.f32.mrb[0].mxu0
        %v4306 = vpop.f32.mrb[0].mxu0
        %4307 = vdwg.mxu0
        %v4308 = vadd.f32 %v4174, %v4261
        %v4309 = vadd.f32 %v4175, %v4263
        %v4310 = vadd.f32 %v4176, %v4302
        %v4311 = vadd.f32 %v4177, %v4304
        %v4312 = vld [vmem:[%s5] sm:$0xff]
        %4314 = vset.pattern.permute.xlu0 0
        %4315 = vperm.xlu0 %4314, %v4312
        %v4316 = vpop.permute.xlu0 %4315
        %v4318 = vadd.f32 %v4308, %v4316
        %v4319 = vadd.f32 %v4309, %v4316
        %v4320 = vadd.f32 %v4310, %v4316
        %v4321 = vadd.f32 %v4311, %v4316
        %v4322 = vmax.f32 %v4318, 0.0
        %v4323 = vmax.f32 %v4319, 0.0
        %v4324 = vmax.f32 %v4320, 0.0
        %v4325 = vmax.f32 %v4321, 0.0
        %v4326 = vpack.c.bf16 %v4322, %v4322
        %v4327 = vpack.c.bf16 %v4323, %v4323
        %v4328 = vpack.c.bf16 %v4324, %v4324
        %v4329 = vpack.c.bf16 %v4325, %v4325
        %v4330 = vld [vmem:[%s3] sm:$0xf]
        %v4331 = vld [vmem:[%s3 + $0x4] sm:$0xf]
        %v4332 = vld [vmem:[%s3 + $0x8] sm:$0xf]
        %v4333 = vld [vmem:[%s3 + $0xc] sm:$0xf]
        %v4334 = vld [vmem:[%s6] sm:$0xff]
        %v4335 = vld [vmem:[%s6 + $0x8] sm:$0xff]
        %v4336 = vld [vmem:[%s6 + $0x10] sm:$0xff]
        %v4337 = vld [vmem:[%s6 + $0x18] sm:$0xff]
        %4339 = vset.pattern.permute.xlu0 0
        %4340 = vperm.xlu0 %4339, %v4334
        %v4341 = vpop.permute.xlu0 %4340
        %4344 = vset.pattern.permute.xlu0 0
        %4345 = vperm.xlu0 %4344, %v4335
        %v4346 = vpop.permute.xlu0 %4345
        %4349 = vset.pattern.permute.xlu0 0
        %4350 = vperm.xlu0 %4349, %v4336
        %v4351 = vpop.permute.xlu0 %4350
        %4354 = vset.pattern.permute.xlu0 0
        %4355 = vperm.xlu0 %4354, %v4337
        %v4356 = vpop.permute.xlu0 %4355
        %v4362 = vunpack.c.l.b16 %v4330
        %v4363 = vunpack.c.l.b16 %v4331
        %v4364 = vunpack.c.l.b16 %v4332
        %v4365 = vunpack.c.l.b16 %v4333
        %v4366 = vpack.c.b16 %v4363, %v4362
        %v4367 = vpack.c.b16 %v4365, %v4364
        %v4369 = vsel %vm571, %v4366, 0
        %v4372 = vsel %vm571, %v4367, 0
        %v4375 = vsel %vm575, %v4326, 0
        %v4378 = vsel %vm575, %v4327, 0
        %v4381 = vsel %vm575, %v4328, 0
        %v4384 = vsel %vm575, %v4329, 0
        %4386 = vmatprep.subr.bf16.mxu0 %v4378
        %4387 = vmatpush1.bf16.msra.mxu0 %v4375
        %4388 = vmatprep.subr.bf16.mxu0 0
        %4389 = vmatpush1.bf16.msra.mxu0 0
        %4390 = vmatprep.subr.bf16.mxu0 0
        %4391 = vmatpush1.bf16.msra.mxu0 0
        %4392 = vmatprep.subr.bf16.mxu0 0
        %4393 = vmatpush1.bf16.msra.mxu0 0
        %4394 = vmatprep.subr.bf16.mxu0 0
        %4395 = vmatpush1.bf16.msra.mxu0 0
        %4396 = vmatprep.subr.bf16.mxu0 0
        %4397 = vmatpush1.bf16.msra.mxu0 0
        %4398 = vmatprep.subr.bf16.mxu0 0
        %4399 = vmatpush1.bf16.msra.mxu0 0
        %4400 = vmatprep.subr.bf16.mxu0 0
        %4401 = vmatpush1.bf16.msra.mxu0 0
        %4402 = vmatprep.subr.bf16.mxu0 0
        %4403 = vmatpush1.bf16.msra.mxu0 0
        %4404 = vmatprep.subr.bf16.mxu0 0
        %4405 = vmatpush1.bf16.msra.mxu0 0
        %4406 = vmatprep.subr.bf16.mxu0 0
        %4407 = vmatpush1.bf16.msra.mxu0 0
        %4408 = vmatprep.subr.bf16.mxu0 0
        %4409 = vmatpush1.bf16.msra.mxu0 0
        %4410 = vmatprep.subr.bf16.mxu0 0
        %4411 = vmatpush1.bf16.msra.mxu0 0
        %4412 = vmatprep.subr.bf16.mxu0 0
        %4413 = vmatpush1.bf16.msra.mxu0 0
        %4414 = vmatprep.subr.bf16.mxu0 0
        %4415 = vmatpush1.bf16.msra.mxu0 0
        %4416 = vmatprep.subr.bf16.mxu0 0
        %4417 = vmatpush1.bf16.msra.mxu0 0
        %4418 = vmatprep.mubr.bf16.mxu0 0
        %4419 = vmatmul.mubr.bf16.gmra.mrb[0].mxu0 %v4369
        %v4420 = vpop.f32.mrb[0].mxu0
        %v4421 = vadd.f32 %v4341, %v4420
        %v4422 = vpop.f32.mrb[0].mxu0
        %v4423 = vadd.f32 %v4341, %v4422
        %v4424 = vpop.f32.mrb[0].mxu0
        %v4425 = vadd.f32 %v4346, %v4424
        %v4426 = vpop.f32.mrb[0].mxu0
        %v4427 = vadd.f32 %v4346, %v4426
        %4428 = vmatprep.mubr.bf16.mxu0 0
        %4429 = vmatmul.mubr.bf16.gmra.mrb[0].mxu0 %v4372
        %v4430 = vpop.f32.mrb[0].mxu0
        %v4431 = vadd.f32 %v4351, %v4430
        %v4432 = vpop.f32.mrb[0].mxu0
        %v4433 = vadd.f32 %v4351, %v4432
        %v4434 = vpop.f32.mrb[0].mxu0
        %v4435 = vadd.f32 %v4356, %v4434
        %v4436 = vpop.f32.mrb[0].mxu0
        %v4437 = vadd.f32 %v4356, %v4436
        %4438 = vdwg.mxu0
        %4439 = vmatprep.subr.bf16.mxu0 %v4384
        %4440 = vmatpush1.bf16.msra.mxu0 %v4381
        %4441 = vmatprep.subr.bf16.mxu0 0
        %4442 = vmatpush1.bf16.msra.mxu0 0
        %4443 = vmatprep.subr.bf16.mxu0 0
        %4444 = vmatpush1.bf16.msra.mxu0 0
        %4445 = vmatprep.subr.bf16.mxu0 0
        %4446 = vmatpush1.bf16.msra.mxu0 0
        %4447 = vmatprep.subr.bf16.mxu0 0
        %4448 = vmatpush1.bf16.msra.mxu0 0
        %4449 = vmatprep.subr.bf16.mxu0 0
        %4450 = vmatpush1.bf16.msra.mxu0 0
        %4451 = vmatprep.subr.bf16.mxu0 0
        %4452 = vmatpush1.bf16.msra.mxu0 0
        %4453 = vmatprep.subr.bf16.mxu0 0
        %4454 = vmatpush1.bf16.msra.mxu0 0
        %4455 = vmatprep.subr.bf16.mxu0 0
        %4456 = vmatpush1.bf16.msra.mxu0 0
        %4457 = vmatprep.subr.bf16.mxu0 0
        %4458 = vmatpush1.bf16.msra.mxu0 0
        %4459 = vmatprep.subr.bf16.mxu0 0
        %4460 = vmatpush1.bf16.msra.mxu0 0
        %4461 = vmatprep.subr.bf16.mxu0 0
        %4462 = vmatpush1.bf16.msra.mxu0 0
        %4463 = vmatprep.subr.bf16.mxu0 0
        %4464 = vmatpush1.bf16.msra.mxu0 0
        %4465 = vmatprep.subr.bf16.mxu0 0
        %4466 = vmatpush1.bf16.msra.mxu0 0
        %4467 = vmatprep.subr.bf16.mxu0 0
        %4468 = vmatpush1.bf16.msra.mxu0 0
        %4469 = vmatprep.subr.bf16.mxu0 0
        %4470 = vmatpush1.bf16.msra.mxu0 0
        %4471 = vmatprep.mubr.bf16.mxu0 0
        %4472 = vmatmul.mubr.bf16.gmra.mrb[0].mxu0 %v4369
        %v4473 = vpop.f32.mrb[0].mxu0
        %v4474 = vadd.f32 %v4341, %v4473
        %v4475 = vpop.f32.mrb[0].mxu0
        %v4476 = vadd.f32 %v4341, %v4475
        %v4477 = vpop.f32.mrb[0].mxu0
        %v4478 = vadd.f32 %v4346, %v4477
        %v4479 = vpop.f32.mrb[0].mxu0
        %v4480 = vadd.f32 %v4346, %v4479
        %4481 = vmatprep.mubr.bf16.mxu0 0
        %4482 = vmatmul.mubr.bf16.gmra.mrb[0].mxu0 %v4372
        %v4483 = vpop.f32.mrb[0].mxu0
        %v4484 = vadd.f32 %v4351, %v4483
        %v4485 = vpop.f32.mrb[0].mxu0
        %v4486 = vadd.f32 %v4351, %v4485
        %v4487 = vpop.f32.mrb[0].mxu0
        %v4488 = vadd.f32 %v4356, %v4487
        %v4489 = vpop.f32.mrb[0].mxu0
        %v4490 = vadd.f32 %v4356, %v4489
        %4491 = vdwg.mxu0
        %v4492 = vadd.f32 %v4421, %v326
        %v4493 = vadd.f32 %v4423, %v327
        %v4494 = vadd.f32 %v4474, %v328
        %v4495 = vadd.f32 %v4476, %v329
        %v4496 = vadd.f32 %v4425, %v330
        %v4497 = vadd.f32 %v4427, %v331
        %v4498 = vadd.f32 %v4478, %v332
        %v4499 = vadd.f32 %v4480, %v333
        %v4500 = vadd.f32 %v4431, %v334
        %v4501 = vadd.f32 %v4433, %v335
        %v4502 = vadd.f32 %v4484, %v336
        %v4503 = vadd.f32 %v4486, %v337
        %v4504 = vadd.f32 %v4435, %v338
        %v4505 = vadd.f32 %v4437, %v339
        %v4506 = vadd.f32 %v4488, %v340
        %v4507 = vadd.f32 %v4490, %v341
        %v4508 = vmax.f32 %v4492, 0.0
        %v4509 = vmax.f32 %v4493, 0.0
        %v4510 = vmax.f32 %v4494, 0.0
        %v4511 = vmax.f32 %v4495, 0.0
        %v4512 = vmax.f32 %v4496, 0.0
        %v4513 = vmax.f32 %v4497, 0.0
        %v4514 = vmax.f32 %v4498, 0.0
        %v4515 = vmax.f32 %v4499, 0.0
        %v4516 = vmax.f32 %v4500, 0.0
        %v4517 = vmax.f32 %v4501, 0.0
        %v4518 = vmax.f32 %v4502, 0.0
        %v4519 = vmax.f32 %v4503, 0.0
        %v4520 = vmax.f32 %v4504, 0.0
        %v4521 = vmax.f32 %v4505, 0.0
        %v4522 = vmax.f32 %v4506, 0.0
        %v4523 = vmax.f32 %v4507, 0.0
        %4524 = vst [vmem:[%s311] sm:$0xff] %v4508
        %4525 = vst [vmem:[%s311 + $0x8] sm:$0xff] %v4509
        %4526 = vst [vmem:[%s311 + $0x10] sm:$0xff] %v4510
        %4527 = vst [vmem:[%s311 + $0x18] sm:$0xff] %v4511
        %4528 = vst [vmem:[%s311 + $0x20] sm:$0xff] %v4512
        %4529 = vst [vmem:[%s311 + $0x28] sm:$0xff] %v4513
        %4530 = vst [vmem:[%s311 + $0x30] sm:$0xff] %v4514
        %4531 = vst [vmem:[%s311 + $0x38] sm:$0xff] %v4515
        %4532 = vst [vmem:[%s311 + $0x40] sm:$0xff] %v4516
        %4533 = vst [vmem:[%s311 + $0x48] sm:$0xff] %v4517
        %4534 = vst [vmem:[%s311 + $0x50] sm:$0xff] %v4518
        %4535 = vst [vmem:[%s311 + $0x58] sm:$0xff] %v4519
        %4536 = vst [vmem:[%s311 + $0x60] sm:$0xff] %v4520
        %4537 = vst [vmem:[%s311 + $0x68] sm:$0xff] %v4521
        %4538 = vst [vmem:[%s311 + $0x70] sm:$0xff] %v4522
        %4539 = vst [vmem:[%s311 + $0x78] sm:$0xff] %v4523
        %s4540 = sand.u32 %s204, 1
        %s4541 = scalar_lea.sflag [#allocation4], %s4540
        %s4542 = sand.u32 %s204, 1
        %s4543 = smul.addr %s4542, 128
        %s4544 = scalar_lea.vmem [#allocation5], %s4543
        // Predicated region
        $region57: #{tpu_custom_call.1} parent=51 // pred_check
          %p4545 = pneg %p214
        $region58: #{tpu_custom_call.1} parent=51 // pred_check_branch
          %4547 = sbr.rel (%p4545) target = $region60
        $region59: #{tpu_custom_call.1} parent=51 // pred_region
          %s4549 = ssub.s32 2048, 2048
          %4550 = vsyncadd %s4541, %s4549
          %s4551 = smul.addr %s23, 16
          %s4552 = smul.addr %s4551, 128
          %s4553 = scalar_lea.hbm %s8, %s4552
          %s4554 = sshll.u32 %s4544, 4
          %s4555 = int_to_ptr.vmem [resolvable:$true] %s4554
          %4560 = dma.vmem_to_hbm [thread:$0]  %s4555, 2048, %s4553, %s4541, 512, 512, 32
        $region60: #{tpu_custom_call.1} parent=51 // pred_fallthru
          _
      $region52: #{tpu_custom_call.1} parent=5 // pred_fallthru
        _
      %p4561 = scmp.le.s32.totalorder 2, %s18
      // Predicated region
      $region61: #{tpu_custom_call.1} parent=5 // pred_check
        %p4562 = pneg %p4561
      $region62: #{tpu_custom_call.1} parent=5 // pred_check_branch
        %4564 = sbr.rel (%p4562) target = $region64
      $region63: #{tpu_custom_call.1} parent=5 // pred_region
        %s4565 = ssub.s32 %s18, 2
        // Predicated region
        $region65: #{tpu_custom_call.1} parent=63 // pred_check
          %p4566 = pneg %p220
        $region66: #{tpu_custom_call.1} parent=63 // pred_check_branch
          %4568 = sbr.rel (%p4566) target = $region68
        $region67: #{tpu_custom_call.1} parent=63 // pred_region
          %s4569 = sand.u32 %s205, 1
          %s4570 = scalar_lea.sflag [#allocation4], %s4569
          %s4571 = sand.u32 %s205, 1
          %s4572 = smul.addr %s4571, 128
          %s4573 = scalar_lea.vmem [#allocation5], %s4572
          %4574 = dma.done %s4570, 2048
        $region68: #{tpu_custom_call.1} parent=63 // pred_fallthru
          _
      $region64: #{tpu_custom_call.1} parent=5 // pred_fallthru
        _
    $region6: #{tpu_custom_call.1} parent=1 // loop_footer
      %s22 = sadd.s32 1, %s18
    $region7: #{tpu_custom_call.1} parent=1 // loop_footer_branch
      %17 = sbr.rel target = $region3
    $region8: #{tpu_custom_call.1} parent=1 // loop_exit
      _
    %4575 = vsyncpa [#allocation3], 1
    %s4576 = scalar_lea.sflag [#allocation3], 1
    %4577 = vsyncpa %s4576, 1
    %4578 = vsyncpa [#allocation4], 1
    %s4579 = scalar_lea.sflag [#allocation4], 1
    %4580 = vsyncpa %s4579, 1

</llo_original>
